<compile_context>
chip_gen: v7x
topology: tpu7x:2x2x1
jax: 0.10.0
libtpu: 0.0.40
codegen_flags: <defaults>
</compile_context>

<pallas_src>
import functools

import numpy as np
import jax
import jax.numpy as jnp
from jax.experimental import pallas as pl
from jax.experimental.pallas import tpu as pltpu

D_MODEL = 128
NUM_HEADS = 4
FF_DIM = 256
NUM_LAYERS = 2
MAX_LEN = 50
# TODO(synk): FlaubertTokenizer.vocab_size (~68k) replaced by a synthetic 512
# vocab; a real-size vocab needs V tiling of the output projection.
VOCAB_SIZE = 512
LN_EPS = 1e-5        # PyTorch nn.LayerNorm default


# ----------------------------------------------------------------------------
# Fused Pallas kernel: 2 decoder layers + output projection, Bt batch elements
# per grid step (rows are batch-folded for the dense matmuls).
# ----------------------------------------------------------------------------
def minigpt_kernel(
    x_ref,                                   # (Bt, S, D)  f32
    wqkv_ref, bqkv_ref,                      # (L, D, 3D) bf16, (L, 1, 3D) f32
    wo_ref, bo_ref,                          # (L, D, D) bf16,  (L, 1, D) f32
    xadd_ref,                                # (L, 1, D) f32   folded cross-attn
    g1_ref, be1_ref, g2_ref, be2_ref, g3_ref, be3_ref,   # (L, 1, D) f32
    w1_ref, fb1_ref, w2_ref, fb2_ref,        # (L,D,F) bf16, (L,1,F) f32, (L,F,D) bf16, (L,1,D) f32
    ow_ref, ob_ref,                          # (D, V) bf16, (1, V) f32
    o_ref,                                   # (Bt, S, V)  f32
    *, Bt, S, D, H, L):
    Dh = D // H
    M = Bt * S
    V = ow_ref.shape[1]
    scale = jnp.float32(1.0 / np.sqrt(Dh))

    # Residual stream stays f32; batch is folded into the row dimension.
    x = x_ref[...].reshape(M, D)

    # Causal additive mask generated in-kernel (matches
    # nn.Transformer.generate_square_subsequent_mask; -1e9 instead of -inf,
    # masked probabilities underflow to exactly 0 after the row-max shift).
    rows = jax.lax.broadcasted_iota(jnp.int32, (S, S), 0)
    cols = jax.lax.broadcasted_iota(jnp.int32, (S, S), 1)
    mask = jnp.where(cols > rows, jnp.float32(-1e9), jnp.float32(0.0))[None]  # (1,S,S)

    def layer_norm(v, g, b):
        mu = jnp.mean(v, axis=-1, keepdims=True)
        var = jnp.mean(jnp.square(v - mu), axis=-1, keepdims=True)
        return (v - mu) * jax.lax.rsqrt(var + LN_EPS) * g + b

    def mm(a_f32, w_bf16):
        # bf16 x bf16 MXU matmul with f32 accumulation.
        return jnp.dot(a_f32.astype(jnp.bfloat16), w_bf16,
                       preferred_element_type=jnp.float32)

    for l in range(L):
        # ---------------- self attention (causal) ----------------
        qkv = mm(x, wqkv_ref[l]) + bqkv_ref[l]                 # (M, 3D) f32
        heads = []
        for h in range(H):
            base = h * Dh
            qh = qkv[:, 0 * D + base:0 * D + base + Dh].reshape(Bt, S, Dh)
            kh = qkv[:, 1 * D + base:1 * D + base + Dh].reshape(Bt, S, Dh)
            vh = qkv[:, 2 * D + base:2 * D + base + Dh].reshape(Bt, S, Dh)
            s = jnp.einsum('bqd,bkd->bqk',
                           qh.astype(jnp.bfloat16), kh.astype(jnp.bfloat16),
                           preferred_element_type=jnp.float32) * scale
            s = s + mask
            m = jnp.max(s, axis=-1, keepdims=True)
            e = jnp.exp(s - m)
            p = e * pl.reciprocal(jnp.sum(e, axis=-1, keepdims=True), approx=True)
            hout = jnp.einsum('bqk,bkd->bqd',
                              p.astype(jnp.bfloat16), vh.astype(jnp.bfloat16),
                              preferred_element_type=jnp.float32)
            heads.append(hout.reshape(M, Dh))
        attn = jnp.concatenate(heads, axis=-1)                 # (M, D), stays in vregs
        sa = mm(attn, wo_ref[l]) + bo_ref[l]
        x = layer_norm(x + sa, g1_ref[l], be1_ref[l])

        # ------------- cross attention (memory == zeros, length 1) -------------
        # Softmax over a single key is exactly 1 and k/v of a zero memory reduce
        # to their biases, so the block output is the precomputed constant row
        # xadd = cbv @ cwo + cbo broadcast over the sequence.  Exact fold.
        x = layer_norm(x + xadd_ref[l], g2_ref[l], be2_ref[l])

        # ---------------- feed-forward (ReLU) ----------------
        hdn = jnp.maximum(mm(x, w1_ref[l]) + fb1_ref[l], 0.0)
        ff = mm(hdn, w2_ref[l]) + fb2_ref[l]
        x = layer_norm(x + ff, g3_ref[l], be3_ref[l])

    # -------------- output projection (full vocab, lane-dense) --------------
    o_ref[...] = (mm(x, ow_ref[...]) + ob_ref[...]).reshape(Bt, S, V)


# ----------------------------------------------------------------------------
# Wrapper
# ----------------------------------------------------------------------------
def _pick_batch_block(B, S):
    """Rows per grid step ~256, but keep >= 2 steps when B >= 2 (v7x 2 TCs)."""
    target_rows = 256
    bt = max(1, min(B, target_rows // max(S, 1)))
    if B >= 2:
        bt = min(bt, max(1, B // 2))
    while B % bt:               # make it a divisor of B
        bt -= 1
    return bt


def run_minigpt(x, fp):
    """x: (B, S, D) f32 embedded inputs (S a multiple of 8); fp: fused params."""
    B, S, D = x.shape
    V = fp["out_w"].shape[1]
    Bt = _pick_batch_block(B, S)

    weight_args = (
        fp["wqkv"], fp["bqkv"], fp["wo"], fp["bo"], fp["xadd"],
        fp["g1"], fp["be1"], fp["g2"], fp["be2"], fp["g3"], fp["be3"],
        fp["w1"], fp["fb1"], fp["w2"], fp["fb2"],
        fp["out_w"], fp["out_b"],
    )

    in_specs = [pl.BlockSpec((Bt, S, D), lambda b: (b, 0, 0))]  # Bt batch elems / step
    for w in weight_args:
        # Full weight array with a constant index_map: DMA'd into VMEM once,
        # resident across the whole grid.
        in_specs.append(pl.BlockSpec(w.shape, lambda b, n=w.ndim: (0,) * n))

    return pl.pallas_call(
        functools.partial(minigpt_kernel, Bt=Bt, S=S, D=D,
                          H=NUM_HEADS, L=NUM_LAYERS),
        out_shape=jax.ShapeDtypeStruct((B, S, V), jnp.float32),
        grid=(B // Bt,),
        in_specs=in_specs,
        out_specs=pl.BlockSpec((Bt, S, V), lambda b: (b, 0, 0)),
        compiler_params=pltpu.CompilerParams(
            dimension_semantics=("parallel",)),   # batches independent -> 2 TCs on v7x
    )(x, *weight_args)


def minigpt_forward(input_ids, fp):
    B, S = input_ids.shape
    # glue: embedding gather + positional encoding add (no clean tiny-gather
    # Pallas win at this size).
    x = jnp.take(fp["emb"], input_ids, axis=0) + fp["pe"][:S][None, :, :]
    x = x.astype(jnp.float32)
    # Pad S up to a multiple of 8 (sublane aligned tiles); causal mask keeps
    # real rows from attending to the padded tail, padded logits are dropped.
    s_pad = ((S + 7) // 8) * 8
    if s_pad != S:
        x = jnp.pad(x, ((0, 0), (0, s_pad - S), (0, 0)))
    logits = run_minigpt(x, fp)
    return logits[:, :S, :]


# ----------------------------------------------------------------------------
# Deterministic parameter construction + algebraic fusion
# ----------------------------------------------------------------------------
def make_positional_encoding(max_len, d_model):
    pe = np.zeros((max_len, d_model), dtype=np.float32)
    for pos in range(max_len):
        for i in range(0, d_model, 2):
            div_term = 10000 ** (i / d_model)
            pe[pos, i] = np.sin(pos / div_term)
            if i + 1 < d_model:
                pe[pos, i + 1] = np.cos(pos / div_term)
    return jnp.asarray(pe)


def init_params(key):
    """PyTorch-equivalent parameter set (weights stored as (in, out))."""
    keys = iter(jax.random.split(key, 64))

    def rnd(shape, scale=0.02):
        return (scale * jax.random.normal(next(keys), shape)).astype(jnp.float32)

    D, F = D_MODEL, FF_DIM
    layers = []
    for _ in range(NUM_LAYERS):
        layers.append(dict(
            # self-attn
            wq=rnd((D, D)), bq=rnd((1, D)), wk=rnd((D, D)), bk=rnd((1, D)),
            wv=rnd((D, D)), bv=rnd((1, D)), wo=rnd((D, D)), bo=rnd((1, D)),
            # cross-attn
            cwq=rnd((D, D)), cbq=rnd((1, D)), cwk=rnd((D, D)), cbk=rnd((1, D)),
            cwv=rnd((D, D)), cbv=rnd((1, D)), cwo=rnd((D, D)), cbo=rnd((1, D)),
            # layer norms
            g1=jnp.ones((1, D), jnp.float32), be1=jnp.zeros((1, D), jnp.float32),
            g2=jnp.ones((1, D), jnp.float32), be2=jnp.zeros((1, D), jnp.float32),
            g3=jnp.ones((1, D), jnp.float32), be3=jnp.zeros((1, D), jnp.float32),
            # feed-forward
            w1=rnd((D, F)), fb1=rnd((1, F)), w2=rnd((F, D)), fb2=rnd((1, D)),
        ))

    return {
        "emb": rnd((VOCAB_SIZE, D_MODEL)),
        "pe": make_positional_encoding(MAX_LEN, D_MODEL),
        "layers": layers,
        "out_w": rnd((D_MODEL, VOCAB_SIZE)),
        "out_b": rnd((1, VOCAB_SIZE)),
    }


def fuse_params(params):
    """Stack per-layer weights, fold the degenerate cross-attention, cast the
    big matmul weights to bf16 (biases / LN params / residual constants stay
    f32; matmuls accumulate in f32).

    Cross-attn fold: with memory = zeros of length 1, softmax over one key is
    exactly 1 and the k/v projections of a zero input reduce to their biases,
    so the block output is the constant row cbv @ cwo + cbo broadcast over the
    sequence (cwq/cbq/cwk/cbk cancel exactly).
    """
    ls = params["layers"]

    def stack(fn):
        return jnp.stack([fn(l) for l in ls])

    def bf16(a):
        return a.astype(jnp.bfloat16)

    return {
        "emb": params["emb"],
        "pe": params["pe"],
        "wqkv": bf16(stack(lambda l: jnp.concatenate([l["wq"], l["wk"], l["wv"]], axis=1))),
        "bqkv": stack(lambda l: jnp.concatenate([l["bq"], l["bk"], l["bv"]], axis=1)),
        "wo": bf16(stack(lambda l: l["wo"])),
        "bo": stack(lambda l: l["bo"]),
        "xadd": stack(lambda l: jnp.dot(l["cbv"], l["cwo"],
                                        preferred_element_type=jnp.float32) + l["cbo"]),
        "g1": stack(lambda l: l["g1"]), "be1": stack(lambda l: l["be1"]),
        "g2": stack(lambda l: l["g2"]), "be2": stack(lambda l: l["be2"]),
        "g3": stack(lambda l: l["g3"]), "be3": stack(lambda l: l["be3"]),
        "w1": bf16(stack(lambda l: l["w1"])), "fb1": stack(lambda l: l["fb1"]),
        "w2": bf16(stack(lambda l: l["w2"])), "fb2": stack(lambda l: l["fb2"]),
        "out_w": bf16(params["out_w"]),
        "out_b": params["out_b"],
    }


# ----------------------------------------------------------------------------
if __name__ == "__main__":
    key = jax.random.PRNGKey(0)
    pkey, dkey = jax.random.split(key)

    params = init_params(pkey)
    fparams = fuse_params(params)          # done once, outside jit

    B, S = 2, 8
    input_ids = jax.random.randint(dkey, (B, S), 0, VOCAB_SIZE, dtype=jnp.int32)

    logits = jax.jit(minigpt_forward)(input_ids, fparams)
    jax.block_until_ready(logits)

    assert logits.shape == (B, S, VOCAB_SIZE)
    assert bool(jnp.all(jnp.isfinite(logits)))
    print("KERNEL_OK")
</pallas_src>

<mosaic_0001>
module attributes {stable_mosaic.version = 11 : i64} {
  func.func @minigpt_kernel(%arg0: i32, %arg1: memref<1x8x128xf32, #tpu.memory_space<vmem>>, %arg2: memref<2x128x384xbf16, #tpu.memory_space<vmem>>, %arg3: memref<2x1x384xf32, #tpu.memory_space<vmem>>, %arg4: memref<2x128x128xbf16, #tpu.memory_space<vmem>>, %arg5: memref<2x1x128xf32, #tpu.memory_space<vmem>>, %arg6: memref<2x1x128xf32, #tpu.memory_space<vmem>>, %arg7: memref<2x1x128xf32, #tpu.memory_space<vmem>>, %arg8: memref<2x1x128xf32, #tpu.memory_space<vmem>>, %arg9: memref<2x1x128xf32, #tpu.memory_space<vmem>>, %arg10: memref<2x1x128xf32, #tpu.memory_space<vmem>>, %arg11: memref<2x1x128xf32, #tpu.memory_space<vmem>>, %arg12: memref<2x1x128xf32, #tpu.memory_space<vmem>>, %arg13: memref<2x128x256xbf16, #tpu.memory_space<vmem>>, %arg14: memref<2x1x256xf32, #tpu.memory_space<vmem>>, %arg15: memref<2x256x128xbf16, #tpu.memory_space<vmem>>, %arg16: memref<2x1x128xf32, #tpu.memory_space<vmem>>, %arg17: memref<128x512xbf16, #tpu.memory_space<vmem>>, %arg18: memref<1x512xf32, #tpu.memory_space<vmem>>, %arg19: memref<1x8x512xf32, #tpu.memory_space<vmem>>) attributes {dimension_semantics = [#tpu.dimension_semantics<parallel>], iteration_bounds = array<i64: 2>, scalar_prefetch = 0 : i64, scratch_operands = 0 : i64, tpu.core_type = #tpu.core_type<tc>, window_params = [{transform_indices = @transform_0, window_bounds = array<i64: 1, 8, 128>}, {pipeline_mode = #tpu.pipeline_mode<synchronous>, transform_indices = @transform_1, window_bounds = array<i64: 2, 128, 384>}, {pipeline_mode = #tpu.pipeline_mode<synchronous>, transform_indices = @transform_2, window_bounds = array<i64: 2, 1, 384>}, {pipeline_mode = #tpu.pipeline_mode<synchronous>, transform_indices = @transform_3, window_bounds = array<i64: 2, 128, 128>}, {pipeline_mode = #tpu.pipeline_mode<synchronous>, transform_indices = @transform_4, window_bounds = array<i64: 2, 1, 128>}, {pipeline_mode = #tpu.pipeline_mode<synchronous>, transform_indices = @transform_5, window_bounds = array<i64: 2, 1, 128>}, {pipeline_mode = #tpu.pipeline_mode<synchronous>, transform_indices = @transform_6, window_bounds = array<i64: 2, 1, 128>}, {pipeline_mode = #tpu.pipeline_mode<synchronous>, transform_indices = @transform_7, window_bounds = array<i64: 2, 1, 128>}, {pipeline_mode = #tpu.pipeline_mode<synchronous>, transform_indices = @transform_8, window_bounds = array<i64: 2, 1, 128>}, {pipeline_mode = #tpu.pipeline_mode<synchronous>, transform_indices = @transform_9, window_bounds = array<i64: 2, 1, 128>}, {pipeline_mode = #tpu.pipeline_mode<synchronous>, transform_indices = @transform_10, window_bounds = array<i64: 2, 1, 128>}, {pipeline_mode = #tpu.pipeline_mode<synchronous>, transform_indices = @transform_11, window_bounds = array<i64: 2, 1, 128>}, {pipeline_mode = #tpu.pipeline_mode<synchronous>, transform_indices = @transform_12, window_bounds = array<i64: 2, 128, 256>}, {pipeline_mode = #tpu.pipeline_mode<synchronous>, transform_indices = @transform_13, window_bounds = array<i64: 2, 1, 256>}, {pipeline_mode = #tpu.pipeline_mode<synchronous>, transform_indices = @transform_14, window_bounds = array<i64: 2, 256, 128>}, {pipeline_mode = #tpu.pipeline_mode<synchronous>, transform_indices = @transform_15, window_bounds = array<i64: 2, 1, 128>}, {pipeline_mode = #tpu.pipeline_mode<synchronous>, transform_indices = @transform_16, window_bounds = array<i64: 128, 512>}, {pipeline_mode = #tpu.pipeline_mode<synchronous>, transform_indices = @transform_17, window_bounds = array<i64: 1, 512>}, {transform_indices = @transform_18, window_bounds = array<i64: 1, 8, 512>}]} {
    %c0 = arith.constant 0 : index
    %c0_0 = arith.constant 0 : index
    %c0_1 = arith.constant 0 : index
    %0 = vector.load %arg1[%c0, %c0_0, %c0_1] : memref<1x8x128xf32, #tpu.memory_space<vmem>>, vector<1x8x128xf32>
    %1 = vector.shape_cast %0 : vector<1x8x128xf32> to vector<8x128xf32>
    %2 = tpu.iota {dimensions = array<i32: 0>} : vector<8x8xi32>
    %3 = tpu.iota {dimensions = array<i32: 1>} : vector<8x8xi32>
    %4 = arith.cmpi sgt, %3, %2 : vector<8x8xi32>
    %cst = arith.constant -1.000000e+09 : f32
    %cst_2 = arith.constant 0.000000e+00 : f32
    %5 = vector.broadcast %cst : f32 to vector<8x8xf32>
    %6 = vector.broadcast %cst_2 : f32 to vector<8x8xf32>
    %7 = arith.select %4, %5, %6 : vector<8x8xi1>, vector<8x8xf32>
    %8 = vector.shape_cast %7 : vector<8x8xf32> to vector<1x8x8xf32>
    %c0_3 = arith.constant 0 : index
    %c0_4 = arith.constant 0 : index
    %c0_5 = arith.constant 0 : index
    %9 = vector.load %arg2[%c0_3, %c0_4, %c0_5] : memref<2x128x384xbf16, #tpu.memory_space<vmem>>, vector<1x128x384xbf16>
    %10 = vector.shape_cast %9 : vector<1x128x384xbf16> to vector<128x384xbf16>
    %11 = arith.truncf %1 : vector<8x128xf32> to vector<8x128xbf16>
    %cst_6 = arith.constant dense<0.000000e+00> : vector<8x384xf32>
    %12 = tpu.matmul %11, %10, %cst_6 {dimension_numbers = #tpu.dot_dimension_numbers<[1], [0], [0], [1], [0, 0, 1, 1], [], []>} : vector<8x128xbf16>, vector<128x384xbf16>, vector<8x384xf32> -> vector<8x384xf32>
    %c0_7 = arith.constant 0 : index
    %c0_8 = arith.constant 0 : index
    %c0_9 = arith.constant 0 : index
    %13 = vector.load %arg3[%c0_7, %c0_8, %c0_9] : memref<2x1x384xf32, #tpu.memory_space<vmem>>, vector<1x1x384xf32>
    %14 = vector.shape_cast %13 : vector<1x1x384xf32> to vector<1x384xf32>
    %15 = vector.broadcast %14 : vector<1x384xf32> to vector<8x384xf32>
    %16 = arith.addf %12, %15 : vector<8x384xf32>
    %17 = vector.extract_strided_slice %16 {offsets = [0, 0], sizes = [8, 32], strides = [1, 1]} : vector<8x384xf32> to vector<8x32xf32>
    %18 = vector.shape_cast %17 : vector<8x32xf32> to vector<1x8x32xf32>
    %19 = vector.extract_strided_slice %16 {offsets = [0, 128], sizes = [8, 32], strides = [1, 1]} : vector<8x384xf32> to vector<8x32xf32>
    %20 = vector.shape_cast %19 : vector<8x32xf32> to vector<1x8x32xf32>
    %21 = vector.extract_strided_slice %16 {offsets = [0, 256], sizes = [8, 32], strides = [1, 1]} : vector<8x384xf32> to vector<8x32xf32>
    %22 = vector.shape_cast %21 : vector<8x32xf32> to vector<1x8x32xf32>
    %23 = arith.truncf %18 : vector<1x8x32xf32> to vector<1x8x32xbf16>
    %24 = arith.truncf %20 : vector<1x8x32xf32> to vector<1x8x32xbf16>
    "tpu.trace_start"() <{level = 10 : i32, message = "bqd,bkd->bqk"}> : () -> ()
    %cst_10 = arith.constant dense<0.000000e+00> : vector<1x8x8xf32>
    %25 = tpu.matmul %23, %24, %cst_10 {dimension_numbers = #tpu.dot_dimension_numbers<[2], [2], [1], [1], [0, 0, 0, 1, 1, 1], [0], [0]>} : vector<1x8x32xbf16>, vector<1x8x32xbf16>, vector<1x8x8xf32> -> vector<1x8x8xf32>
    "tpu.trace_stop"() : () -> ()
    %cst_11 = arith.constant 0.176776692 : f32
    %26 = vector.broadcast %cst_11 : f32 to vector<1x8x8xf32>
    %27 = arith.mulf %25, %26 : vector<1x8x8xf32>
    %28 = arith.addf %27, %8 : vector<1x8x8xf32>
    %cst_12 = arith.constant dense<0xFF800000> : vector<1x8xf32>
    %29 = vector.multi_reduction <maximumf>, %28, %cst_12 [2] : vector<1x8x8xf32> to vector<1x8xf32>
    %30 = vector.shape_cast %29 : vector<1x8xf32> to vector<1x8x1xf32>
    %31 = vector.broadcast %30 : vector<1x8x1xf32> to vector<1x8x8xf32>
    %32 = arith.subf %28, %31 : vector<1x8x8xf32>
    %33 = math.exp %32 : vector<1x8x8xf32>
    %cst_13 = arith.constant dense<0.000000e+00> : vector<1x8xf32>
    %34 = vector.multi_reduction <add>, %33, %cst_13 [2] : vector<1x8x8xf32> to vector<1x8xf32>
    %35 = vector.shape_cast %34 : vector<1x8xf32> to vector<1x8x1xf32>
    %36 = tpu.reciprocal %35 {approx = true} : vector<1x8x1xf32> -> vector<1x8x1xf32>
    %37 = vector.broadcast %36 : vector<1x8x1xf32> to vector<1x8x8xf32>
    %38 = arith.mulf %33, %37 : vector<1x8x8xf32>
    %39 = arith.truncf %38 : vector<1x8x8xf32> to vector<1x8x8xbf16>
    %40 = arith.truncf %22 : vector<1x8x32xf32> to vector<1x8x32xbf16>
    "tpu.trace_start"() <{level = 10 : i32, message = "bqk,bkd->bqd"}> : () -> ()
    %cst_14 = arith.constant dense<0.000000e+00> : vector<1x8x32xf32>
    %41 = tpu.matmul %39, %40, %cst_14 {dimension_numbers = #tpu.dot_dimension_numbers<[2], [1], [1], [2], [0, 0, 0, 1, 1, 2], [0], [0]>} : vector<1x8x8xbf16>, vector<1x8x32xbf16>, vector<1x8x32xf32> -> vector<1x8x32xf32>
    "tpu.trace_stop"() : () -> ()
    %42 = vector.shape_cast %41 : vector<1x8x32xf32> to vector<8x32xf32>
    %43 = vector.extract_strided_slice %16 {offsets = [0, 32], sizes = [8, 32], strides = [1, 1]} : vector<8x384xf32> to vector<8x32xf32>
    %44 = vector.shape_cast %43 : vector<8x32xf32> to vector<1x8x32xf32>
    %45 = vector.extract_strided_slice %16 {offsets = [0, 160], sizes = [8, 32], strides = [1, 1]} : vector<8x384xf32> to vector<8x32xf32>
    %46 = vector.shape_cast %45 : vector<8x32xf32> to vector<1x8x32xf32>
    %47 = vector.extract_strided_slice %16 {offsets = [0, 288], sizes = [8, 32], strides = [1, 1]} : vector<8x384xf32> to vector<8x32xf32>
    %48 = vector.shape_cast %47 : vector<8x32xf32> to vector<1x8x32xf32>
    %49 = arith.truncf %44 : vector<1x8x32xf32> to vector<1x8x32xbf16>
    %50 = arith.truncf %46 : vector<1x8x32xf32> to vector<1x8x32xbf16>
    "tpu.trace_start"() <{level = 10 : i32, message = "bqd,bkd->bqk"}> : () -> ()
    %cst_15 = arith.constant dense<0.000000e+00> : vector<1x8x8xf32>
    %51 = tpu.matmul %49, %50, %cst_15 {dimension_numbers = #tpu.dot_dimension_numbers<[2], [2], [1], [1], [0, 0, 0, 1, 1, 1], [0], [0]>} : vector<1x8x32xbf16>, vector<1x8x32xbf16>, vector<1x8x8xf32> -> vector<1x8x8xf32>
    "tpu.trace_stop"() : () -> ()
    %cst_16 = arith.constant 0.176776692 : f32
    %52 = vector.broadcast %cst_16 : f32 to vector<1x8x8xf32>
    %53 = arith.mulf %51, %52 : vector<1x8x8xf32>
    %54 = arith.addf %53, %8 : vector<1x8x8xf32>
    %cst_17 = arith.constant dense<0xFF800000> : vector<1x8xf32>
    %55 = vector.multi_reduction <maximumf>, %54, %cst_17 [2] : vector<1x8x8xf32> to vector<1x8xf32>
    %56 = vector.shape_cast %55 : vector<1x8xf32> to vector<1x8x1xf32>
    %57 = vector.broadcast %56 : vector<1x8x1xf32> to vector<1x8x8xf32>
    %58 = arith.subf %54, %57 : vector<1x8x8xf32>
    %59 = math.exp %58 : vector<1x8x8xf32>
    %cst_18 = arith.constant dense<0.000000e+00> : vector<1x8xf32>
    %60 = vector.multi_reduction <add>, %59, %cst_18 [2] : vector<1x8x8xf32> to vector<1x8xf32>
    %61 = vector.shape_cast %60 : vector<1x8xf32> to vector<1x8x1xf32>
    %62 = tpu.reciprocal %61 {approx = true} : vector<1x8x1xf32> -> vector<1x8x1xf32>
    %63 = vector.broadcast %62 : vector<1x8x1xf32> to vector<1x8x8xf32>
    %64 = arith.mulf %59, %63 : vector<1x8x8xf32>
    %65 = arith.truncf %64 : vector<1x8x8xf32> to vector<1x8x8xbf16>
    %66 = arith.truncf %48 : vector<1x8x32xf32> to vector<1x8x32xbf16>
    "tpu.trace_start"() <{level = 10 : i32, message = "bqk,bkd->bqd"}> : () -> ()
    %cst_19 = arith.constant dense<0.000000e+00> : vector<1x8x32xf32>
    %67 = tpu.matmul %65, %66, %cst_19 {dimension_numbers = #tpu.dot_dimension_numbers<[2], [1], [1], [2], [0, 0, 0, 1, 1, 2], [0], [0]>} : vector<1x8x8xbf16>, vector<1x8x32xbf16>, vector<1x8x32xf32> -> vector<1x8x32xf32>
    "tpu.trace_stop"() : () -> ()
    %68 = vector.shape_cast %67 : vector<1x8x32xf32> to vector<8x32xf32>
    %69 = vector.extract_strided_slice %16 {offsets = [0, 64], sizes = [8, 32], strides = [1, 1]} : vector<8x384xf32> to vector<8x32xf32>
    %70 = vector.shape_cast %69 : vector<8x32xf32> to vector<1x8x32xf32>
    %71 = vector.extract_strided_slice %16 {offsets = [0, 192], sizes = [8, 32], strides = [1, 1]} : vector<8x384xf32> to vector<8x32xf32>
    %72 = vector.shape_cast %71 : vector<8x32xf32> to vector<1x8x32xf32>
    %73 = vector.extract_strided_slice %16 {offsets = [0, 320], sizes = [8, 32], strides = [1, 1]} : vector<8x384xf32> to vector<8x32xf32>
    %74 = vector.shape_cast %73 : vector<8x32xf32> to vector<1x8x32xf32>
    %75 = arith.truncf %70 : vector<1x8x32xf32> to vector<1x8x32xbf16>
    %76 = arith.truncf %72 : vector<1x8x32xf32> to vector<1x8x32xbf16>
    "tpu.trace_start"() <{level = 10 : i32, message = "bqd,bkd->bqk"}> : () -> ()
    %cst_20 = arith.constant dense<0.000000e+00> : vector<1x8x8xf32>
    %77 = tpu.matmul %75, %76, %cst_20 {dimension_numbers = #tpu.dot_dimension_numbers<[2], [2], [1], [1], [0, 0, 0, 1, 1, 1], [0], [0]>} : vector<1x8x32xbf16>, vector<1x8x32xbf16>, vector<1x8x8xf32> -> vector<1x8x8xf32>
    "tpu.trace_stop"() : () -> ()
    %cst_21 = arith.constant 0.176776692 : f32
    %78 = vector.broadcast %cst_21 : f32 to vector<1x8x8xf32>
    %79 = arith.mulf %77, %78 : vector<1x8x8xf32>
    %80 = arith.addf %79, %8 : vector<1x8x8xf32>
    %cst_22 = arith.constant dense<0xFF800000> : vector<1x8xf32>
    %81 = vector.multi_reduction <maximumf>, %80, %cst_22 [2] : vector<1x8x8xf32> to vector<1x8xf32>
    %82 = vector.shape_cast %81 : vector<1x8xf32> to vector<1x8x1xf32>
    %83 = vector.broadcast %82 : vector<1x8x1xf32> to vector<1x8x8xf32>
    %84 = arith.subf %80, %83 : vector<1x8x8xf32>
    %85 = math.exp %84 : vector<1x8x8xf32>
    %cst_23 = arith.constant dense<0.000000e+00> : vector<1x8xf32>
    %86 = vector.multi_reduction <add>, %85, %cst_23 [2] : vector<1x8x8xf32> to vector<1x8xf32>
    %87 = vector.shape_cast %86 : vector<1x8xf32> to vector<1x8x1xf32>
    %88 = tpu.reciprocal %87 {approx = true} : vector<1x8x1xf32> -> vector<1x8x1xf32>
    %89 = vector.broadcast %88 : vector<1x8x1xf32> to vector<1x8x8xf32>
    %90 = arith.mulf %85, %89 : vector<1x8x8xf32>
    %91 = arith.truncf %90 : vector<1x8x8xf32> to vector<1x8x8xbf16>
    %92 = arith.truncf %74 : vector<1x8x32xf32> to vector<1x8x32xbf16>
    "tpu.trace_start"() <{level = 10 : i32, message = "bqk,bkd->bqd"}> : () -> ()
    %cst_24 = arith.constant dense<0.000000e+00> : vector<1x8x32xf32>
    %93 = tpu.matmul %91, %92, %cst_24 {dimension_numbers = #tpu.dot_dimension_numbers<[2], [1], [1], [2], [0, 0, 0, 1, 1, 2], [0], [0]>} : vector<1x8x8xbf16>, vector<1x8x32xbf16>, vector<1x8x32xf32> -> vector<1x8x32xf32>
    "tpu.trace_stop"() : () -> ()
    %94 = vector.shape_cast %93 : vector<1x8x32xf32> to vector<8x32xf32>
    %95 = vector.extract_strided_slice %16 {offsets = [0, 96], sizes = [8, 32], strides = [1, 1]} : vector<8x384xf32> to vector<8x32xf32>
    %96 = vector.shape_cast %95 : vector<8x32xf32> to vector<1x8x32xf32>
    %97 = vector.extract_strided_slice %16 {offsets = [0, 224], sizes = [8, 32], strides = [1, 1]} : vector<8x384xf32> to vector<8x32xf32>
    %98 = vector.shape_cast %97 : vector<8x32xf32> to vector<1x8x32xf32>
    %99 = vector.extract_strided_slice %16 {offsets = [0, 352], sizes = [8, 32], strides = [1, 1]} : vector<8x384xf32> to vector<8x32xf32>
    %100 = vector.shape_cast %99 : vector<8x32xf32> to vector<1x8x32xf32>
    %101 = arith.truncf %96 : vector<1x8x32xf32> to vector<1x8x32xbf16>
    %102 = arith.truncf %98 : vector<1x8x32xf32> to vector<1x8x32xbf16>
    "tpu.trace_start"() <{level = 10 : i32, message = "bqd,bkd->bqk"}> : () -> ()
    %cst_25 = arith.constant dense<0.000000e+00> : vector<1x8x8xf32>
    %103 = tpu.matmul %101, %102, %cst_25 {dimension_numbers = #tpu.dot_dimension_numbers<[2], [2], [1], [1], [0, 0, 0, 1, 1, 1], [0], [0]>} : vector<1x8x32xbf16>, vector<1x8x32xbf16>, vector<1x8x8xf32> -> vector<1x8x8xf32>
    "tpu.trace_stop"() : () -> ()
    %cst_26 = arith.constant 0.176776692 : f32
    %104 = vector.broadcast %cst_26 : f32 to vector<1x8x8xf32>
    %105 = arith.mulf %103, %104 : vector<1x8x8xf32>
    %106 = arith.addf %105, %8 : vector<1x8x8xf32>
    %cst_27 = arith.constant dense<0xFF800000> : vector<1x8xf32>
    %107 = vector.multi_reduction <maximumf>, %106, %cst_27 [2] : vector<1x8x8xf32> to vector<1x8xf32>
    %108 = vector.shape_cast %107 : vector<1x8xf32> to vector<1x8x1xf32>
    %109 = vector.broadcast %108 : vector<1x8x1xf32> to vector<1x8x8xf32>
    %110 = arith.subf %106, %109 : vector<1x8x8xf32>
    %111 = math.exp %110 : vector<1x8x8xf32>
    %cst_28 = arith.constant dense<0.000000e+00> : vector<1x8xf32>
    %112 = vector.multi_reduction <add>, %111, %cst_28 [2] : vector<1x8x8xf32> to vector<1x8xf32>
    %113 = vector.shape_cast %112 : vector<1x8xf32> to vector<1x8x1xf32>
    %114 = tpu.reciprocal %113 {approx = true} : vector<1x8x1xf32> -> vector<1x8x1xf32>
    %115 = vector.broadcast %114 : vector<1x8x1xf32> to vector<1x8x8xf32>
    %116 = arith.mulf %111, %115 : vector<1x8x8xf32>
    %117 = arith.truncf %116 : vector<1x8x8xf32> to vector<1x8x8xbf16>
    %118 = arith.truncf %100 : vector<1x8x32xf32> to vector<1x8x32xbf16>
    "tpu.trace_start"() <{level = 10 : i32, message = "bqk,bkd->bqd"}> : () -> ()
    %cst_29 = arith.constant dense<0.000000e+00> : vector<1x8x32xf32>
    %119 = tpu.matmul %117, %118, %cst_29 {dimension_numbers = #tpu.dot_dimension_numbers<[2], [1], [1], [2], [0, 0, 0, 1, 1, 2], [0], [0]>} : vector<1x8x8xbf16>, vector<1x8x32xbf16>, vector<1x8x32xf32> -> vector<1x8x32xf32>
    "tpu.trace_stop"() : () -> ()
    %120 = vector.shape_cast %119 : vector<1x8x32xf32> to vector<8x32xf32>
    %121 = tpu.concatenate %42, %68, %94, %120 in 1 : vector<8x32xf32>, vector<8x32xf32>, vector<8x32xf32>, vector<8x32xf32> -> vector<8x128xf32>
    %c0_30 = arith.constant 0 : index
    %c0_31 = arith.constant 0 : index
    %c0_32 = arith.constant 0 : index
    %122 = vector.load %arg4[%c0_30, %c0_31, %c0_32] : memref<2x128x128xbf16, #tpu.memory_space<vmem>>, vector<1x128x128xbf16>
    %123 = vector.shape_cast %122 : vector<1x128x128xbf16> to vector<128x128xbf16>
    %124 = arith.truncf %121 : vector<8x128xf32> to vector<8x128xbf16>
    %cst_33 = arith.constant dense<0.000000e+00> : vector<8x128xf32>
    %125 = tpu.matmul %124, %123, %cst_33 {dimension_numbers = #tpu.dot_dimension_numbers<[1], [0], [0], [1], [0, 0, 1, 1], [], []>} : vector<8x128xbf16>, vector<128x128xbf16>, vector<8x128xf32> -> vector<8x128xf32>
    %c0_34 = arith.constant 0 : index
    %c0_35 = arith.constant 0 : index
    %c0_36 = arith.constant 0 : index
    %126 = vector.load %arg5[%c0_34, %c0_35, %c0_36] : memref<2x1x128xf32, #tpu.memory_space<vmem>>, vector<1x1x128xf32>
    %127 = vector.shape_cast %126 : vector<1x1x128xf32> to vector<1x128xf32>
    %128 = vector.broadcast %127 : vector<1x128xf32> to vector<8x128xf32>
    %129 = arith.addf %125, %128 : vector<8x128xf32>
    %130 = arith.addf %1, %129 : vector<8x128xf32>
    %c0_37 = arith.constant 0 : index
    %c0_38 = arith.constant 0 : index
    %c0_39 = arith.constant 0 : index
    %131 = vector.load %arg7[%c0_37, %c0_38, %c0_39] : memref<2x1x128xf32, #tpu.memory_space<vmem>>, vector<1x1x128xf32>
    %132 = vector.shape_cast %131 : vector<1x1x128xf32> to vector<1x128xf32>
    %c0_40 = arith.constant 0 : index
    %c0_41 = arith.constant 0 : index
    %c0_42 = arith.constant 0 : index
    %133 = vector.load %arg8[%c0_40, %c0_41, %c0_42] : memref<2x1x128xf32, #tpu.memory_space<vmem>>, vector<1x1x128xf32>
    %134 = vector.shape_cast %133 : vector<1x1x128xf32> to vector<1x128xf32>
    %cst_43 = arith.constant dense<0.000000e+00> : vector<8xf32>
    %135 = vector.multi_reduction <add>, %130, %cst_43 [1] : vector<8x128xf32> to vector<8xf32>
    %136 = vector.shape_cast %135 : vector<8xf32> to vector<8x1xf32>
    %cst_44 = arith.constant 1.280000e+02 : f32
    %137 = vector.broadcast %cst_44 : f32 to vector<8x1xf32>
    %138 = arith.divf %136, %137 : vector<8x1xf32>
    %139 = vector.broadcast %138 : vector<8x1xf32> to vector<8x128xf32>
    %140 = arith.subf %130, %139 : vector<8x128xf32>
    %141 = arith.mulf %140, %140 : vector<8x128xf32>
    %cst_45 = arith.constant dense<0.000000e+00> : vector<8xf32>
    %142 = vector.multi_reduction <add>, %141, %cst_45 [1] : vector<8x128xf32> to vector<8xf32>
    %143 = vector.shape_cast %142 : vector<8xf32> to vector<8x1xf32>
    %cst_46 = arith.constant 1.280000e+02 : f32
    %144 = vector.broadcast %cst_46 : f32 to vector<8x1xf32>
    %145 = arith.divf %143, %144 : vector<8x1xf32>
    %146 = vector.broadcast %138 : vector<8x1xf32> to vector<8x128xf32>
    %147 = arith.subf %130, %146 : vector<8x128xf32>
    %cst_47 = arith.constant 9.99999974E-6 : f32
    %148 = vector.broadcast %cst_47 : f32 to vector<8x1xf32>
    %149 = arith.addf %145, %148 : vector<8x1xf32>
    %150 = math.rsqrt %149 : vector<8x1xf32>
    %151 = vector.broadcast %150 : vector<8x1xf32> to vector<8x128xf32>
    %152 = arith.mulf %147, %151 : vector<8x128xf32>
    %153 = vector.broadcast %132 : vector<1x128xf32> to vector<8x128xf32>
    %154 = arith.mulf %152, %153 : vector<8x128xf32>
    %155 = vector.broadcast %134 : vector<1x128xf32> to vector<8x128xf32>
    %156 = arith.addf %154, %155 : vector<8x128xf32>
    %c0_48 = arith.constant 0 : index
    %c0_49 = arith.constant 0 : index
    %c0_50 = arith.constant 0 : index
    %157 = vector.load %arg6[%c0_48, %c0_49, %c0_50] : memref<2x1x128xf32, #tpu.memory_space<vmem>>, vector<1x1x128xf32>
    %158 = vector.shape_cast %157 : vector<1x1x128xf32> to vector<1x128xf32>
    %159 = vector.broadcast %158 : vector<1x128xf32> to vector<8x128xf32>
    %160 = arith.addf %156, %159 : vector<8x128xf32>
    %c0_51 = arith.constant 0 : index
    %c0_52 = arith.constant 0 : index
    %c0_53 = arith.constant 0 : index
    %161 = vector.load %arg9[%c0_51, %c0_52, %c0_53] : memref<2x1x128xf32, #tpu.memory_space<vmem>>, vector<1x1x128xf32>
    %162 = vector.shape_cast %161 : vector<1x1x128xf32> to vector<1x128xf32>
    %c0_54 = arith.constant 0 : index
    %c0_55 = arith.constant 0 : index
    %c0_56 = arith.constant 0 : index
    %163 = vector.load %arg10[%c0_54, %c0_55, %c0_56] : memref<2x1x128xf32, #tpu.memory_space<vmem>>, vector<1x1x128xf32>
    %164 = vector.shape_cast %163 : vector<1x1x128xf32> to vector<1x128xf32>
    %cst_57 = arith.constant dense<0.000000e+00> : vector<8xf32>
    %165 = vector.multi_reduction <add>, %160, %cst_57 [1] : vector<8x128xf32> to vector<8xf32>
    %166 = vector.shape_cast %165 : vector<8xf32> to vector<8x1xf32>
    %cst_58 = arith.constant 1.280000e+02 : f32
    %167 = vector.broadcast %cst_58 : f32 to vector<8x1xf32>
    %168 = arith.divf %166, %167 : vector<8x1xf32>
    %169 = vector.broadcast %168 : vector<8x1xf32> to vector<8x128xf32>
    %170 = arith.subf %160, %169 : vector<8x128xf32>
    %171 = arith.mulf %170, %170 : vector<8x128xf32>
    %cst_59 = arith.constant dense<0.000000e+00> : vector<8xf32>
    %172 = vector.multi_reduction <add>, %171, %cst_59 [1] : vector<8x128xf32> to vector<8xf32>
    %173 = vector.shape_cast %172 : vector<8xf32> to vector<8x1xf32>
    %cst_60 = arith.constant 1.280000e+02 : f32
    %174 = vector.broadcast %cst_60 : f32 to vector<8x1xf32>
    %175 = arith.divf %173, %174 : vector<8x1xf32>
    %176 = vector.broadcast %168 : vector<8x1xf32> to vector<8x128xf32>
    %177 = arith.subf %160, %176 : vector<8x128xf32>
    %cst_61 = arith.constant 9.99999974E-6 : f32
    %178 = vector.broadcast %cst_61 : f32 to vector<8x1xf32>
    %179 = arith.addf %175, %178 : vector<8x1xf32>
    %180 = math.rsqrt %179 : vector<8x1xf32>
    %181 = vector.broadcast %180 : vector<8x1xf32> to vector<8x128xf32>
    %182 = arith.mulf %177, %181 : vector<8x128xf32>
    %183 = vector.broadcast %162 : vector<1x128xf32> to vector<8x128xf32>
    %184 = arith.mulf %182, %183 : vector<8x128xf32>
    %185 = vector.broadcast %164 : vector<1x128xf32> to vector<8x128xf32>
    %186 = arith.addf %184, %185 : vector<8x128xf32>
    %c0_62 = arith.constant 0 : index
    %c0_63 = arith.constant 0 : index
    %c0_64 = arith.constant 0 : index
    %187 = vector.load %arg13[%c0_62, %c0_63, %c0_64] : memref<2x128x256xbf16, #tpu.memory_space<vmem>>, vector<1x128x256xbf16>
    %188 = vector.shape_cast %187 : vector<1x128x256xbf16> to vector<128x256xbf16>
    %189 = arith.truncf %186 : vector<8x128xf32> to vector<8x128xbf16>
    %cst_65 = arith.constant dense<0.000000e+00> : vector<8x256xf32>
    %190 = tpu.matmul %189, %188, %cst_65 {dimension_numbers = #tpu.dot_dimension_numbers<[1], [0], [0], [1], [0, 0, 1, 1], [], []>} : vector<8x128xbf16>, vector<128x256xbf16>, vector<8x256xf32> -> vector<8x256xf32>
    %c0_66 = arith.constant 0 : index
    %c0_67 = arith.constant 0 : index
    %c0_68 = arith.constant 0 : index
    %191 = vector.load %arg14[%c0_66, %c0_67, %c0_68] : memref<2x1x256xf32, #tpu.memory_space<vmem>>, vector<1x1x256xf32>
    %192 = vector.shape_cast %191 : vector<1x1x256xf32> to vector<1x256xf32>
    %193 = vector.broadcast %192 : vector<1x256xf32> to vector<8x256xf32>
    %194 = arith.addf %190, %193 : vector<8x256xf32>
    %cst_69 = arith.constant 0.000000e+00 : f32
    %195 = vector.broadcast %cst_69 : f32 to vector<8x256xf32>
    %196 = arith.maximumf %194, %195 : vector<8x256xf32>
    %c0_70 = arith.constant 0 : index
    %c0_71 = arith.constant 0 : index
    %c0_72 = arith.constant 0 : index
    %197 = vector.load %arg15[%c0_70, %c0_71, %c0_72] : memref<2x256x128xbf16, #tpu.memory_space<vmem>>, vector<1x256x128xbf16>
    %198 = vector.shape_cast %197 : vector<1x256x128xbf16> to vector<256x128xbf16>
    %199 = arith.truncf %196 : vector<8x256xf32> to vector<8x256xbf16>
    %cst_73 = arith.constant dense<0.000000e+00> : vector<8x128xf32>
    %200 = tpu.matmul %199, %198, %cst_73 {dimension_numbers = #tpu.dot_dimension_numbers<[1], [0], [0], [1], [0, 0, 1, 1], [], []>} : vector<8x256xbf16>, vector<256x128xbf16>, vector<8x128xf32> -> vector<8x128xf32>
    %c0_74 = arith.constant 0 : index
    %c0_75 = arith.constant 0 : index
    %c0_76 = arith.constant 0 : index
    %201 = vector.load %arg16[%c0_74, %c0_75, %c0_76] : memref<2x1x128xf32, #tpu.memory_space<vmem>>, vector<1x1x128xf32>
    %202 = vector.shape_cast %201 : vector<1x1x128xf32> to vector<1x128xf32>
    %203 = vector.broadcast %202 : vector<1x128xf32> to vector<8x128xf32>
    %204 = arith.addf %200, %203 : vector<8x128xf32>
    %205 = arith.addf %186, %204 : vector<8x128xf32>
    %c0_77 = arith.constant 0 : index
    %c0_78 = arith.constant 0 : index
    %c0_79 = arith.constant 0 : index
    %206 = vector.load %arg11[%c0_77, %c0_78, %c0_79] : memref<2x1x128xf32, #tpu.memory_space<vmem>>, vector<1x1x128xf32>
    %207 = vector.shape_cast %206 : vector<1x1x128xf32> to vector<1x128xf32>
    %c0_80 = arith.constant 0 : index
    %c0_81 = arith.constant 0 : index
    %c0_82 = arith.constant 0 : index
    %208 = vector.load %arg12[%c0_80, %c0_81, %c0_82] : memref<2x1x128xf32, #tpu.memory_space<vmem>>, vector<1x1x128xf32>
    %209 = vector.shape_cast %208 : vector<1x1x128xf32> to vector<1x128xf32>
    %cst_83 = arith.constant dense<0.000000e+00> : vector<8xf32>
    %210 = vector.multi_reduction <add>, %205, %cst_83 [1] : vector<8x128xf32> to vector<8xf32>
    %211 = vector.shape_cast %210 : vector<8xf32> to vector<8x1xf32>
    %cst_84 = arith.constant 1.280000e+02 : f32
    %212 = vector.broadcast %cst_84 : f32 to vector<8x1xf32>
    %213 = arith.divf %211, %212 : vector<8x1xf32>
    %214 = vector.broadcast %213 : vector<8x1xf32> to vector<8x128xf32>
    %215 = arith.subf %205, %214 : vector<8x128xf32>
    %216 = arith.mulf %215, %215 : vector<8x128xf32>
    %cst_85 = arith.constant dense<0.000000e+00> : vector<8xf32>
    %217 = vector.multi_reduction <add>, %216, %cst_85 [1] : vector<8x128xf32> to vector<8xf32>
    %218 = vector.shape_cast %217 : vector<8xf32> to vector<8x1xf32>
    %cst_86 = arith.constant 1.280000e+02 : f32
    %219 = vector.broadcast %cst_86 : f32 to vector<8x1xf32>
    %220 = arith.divf %218, %219 : vector<8x1xf32>
    %221 = vector.broadcast %213 : vector<8x1xf32> to vector<8x128xf32>
    %222 = arith.subf %205, %221 : vector<8x128xf32>
    %cst_87 = arith.constant 9.99999974E-6 : f32
    %223 = vector.broadcast %cst_87 : f32 to vector<8x1xf32>
    %224 = arith.addf %220, %223 : vector<8x1xf32>
    %225 = math.rsqrt %224 : vector<8x1xf32>
    %226 = vector.broadcast %225 : vector<8x1xf32> to vector<8x128xf32>
    %227 = arith.mulf %222, %226 : vector<8x128xf32>
    %228 = vector.broadcast %207 : vector<1x128xf32> to vector<8x128xf32>
    %229 = arith.mulf %227, %228 : vector<8x128xf32>
    %230 = vector.broadcast %209 : vector<1x128xf32> to vector<8x128xf32>
    %231 = arith.addf %229, %230 : vector<8x128xf32>
    %c1 = arith.constant 1 : index
    %c0_88 = arith.constant 0 : index
    %c0_89 = arith.constant 0 : index
    %232 = vector.load %arg2[%c1, %c0_88, %c0_89] : memref<2x128x384xbf16, #tpu.memory_space<vmem>>, vector<1x128x384xbf16>
    %233 = vector.shape_cast %232 : vector<1x128x384xbf16> to vector<128x384xbf16>
    %234 = arith.truncf %231 : vector<8x128xf32> to vector<8x128xbf16>
    %cst_90 = arith.constant dense<0.000000e+00> : vector<8x384xf32>
    %235 = tpu.matmul %234, %233, %cst_90 {dimension_numbers = #tpu.dot_dimension_numbers<[1], [0], [0], [1], [0, 0, 1, 1], [], []>} : vector<8x128xbf16>, vector<128x384xbf16>, vector<8x384xf32> -> vector<8x384xf32>
    %c1_91 = arith.constant 1 : index
    %c0_92 = arith.constant 0 : index
    %c0_93 = arith.constant 0 : index
    %236 = vector.load %arg3[%c1_91, %c0_92, %c0_93] : memref<2x1x384xf32, #tpu.memory_space<vmem>>, vector<1x1x384xf32>
    %237 = vector.shape_cast %236 : vector<1x1x384xf32> to vector<1x384xf32>
    %238 = vector.broadcast %237 : vector<1x384xf32> to vector<8x384xf32>
    %239 = arith.addf %235, %238 : vector<8x384xf32>
    %240 = vector.extract_strided_slice %239 {offsets = [0, 0], sizes = [8, 32], strides = [1, 1]} : vector<8x384xf32> to vector<8x32xf32>
    %241 = vector.shape_cast %240 : vector<8x32xf32> to vector<1x8x32xf32>
    %242 = vector.extract_strided_slice %239 {offsets = [0, 128], sizes = [8, 32], strides = [1, 1]} : vector<8x384xf32> to vector<8x32xf32>
    %243 = vector.shape_cast %242 : vector<8x32xf32> to vector<1x8x32xf32>
    %244 = vector.extract_strided_slice %239 {offsets = [0, 256], sizes = [8, 32], strides = [1, 1]} : vector<8x384xf32> to vector<8x32xf32>
    %245 = vector.shape_cast %244 : vector<8x32xf32> to vector<1x8x32xf32>
    %246 = arith.truncf %241 : vector<1x8x32xf32> to vector<1x8x32xbf16>
    %247 = arith.truncf %243 : vector<1x8x32xf32> to vector<1x8x32xbf16>
    "tpu.trace_start"() <{level = 10 : i32, message = "bqd,bkd->bqk"}> : () -> ()
    %cst_94 = arith.constant dense<0.000000e+00> : vector<1x8x8xf32>
    %248 = tpu.matmul %246, %247, %cst_94 {dimension_numbers = #tpu.dot_dimension_numbers<[2], [2], [1], [1], [0, 0, 0, 1, 1, 1], [0], [0]>} : vector<1x8x32xbf16>, vector<1x8x32xbf16>, vector<1x8x8xf32> -> vector<1x8x8xf32>
    "tpu.trace_stop"() : () -> ()
    %cst_95 = arith.constant 0.176776692 : f32
    %249 = vector.broadcast %cst_95 : f32 to vector<1x8x8xf32>
    %250 = arith.mulf %248, %249 : vector<1x8x8xf32>
    %251 = arith.addf %250, %8 : vector<1x8x8xf32>
    %cst_96 = arith.constant dense<0xFF800000> : vector<1x8xf32>
    %252 = vector.multi_reduction <maximumf>, %251, %cst_96 [2] : vector<1x8x8xf32> to vector<1x8xf32>
    %253 = vector.shape_cast %252 : vector<1x8xf32> to vector<1x8x1xf32>
    %254 = vector.broadcast %253 : vector<1x8x1xf32> to vector<1x8x8xf32>
    %255 = arith.subf %251, %254 : vector<1x8x8xf32>
    %256 = math.exp %255 : vector<1x8x8xf32>
    %cst_97 = arith.constant dense<0.000000e+00> : vector<1x8xf32>
    %257 = vector.multi_reduction <add>, %256, %cst_97 [2] : vector<1x8x8xf32> to vector<1x8xf32>
    %258 = vector.shape_cast %257 : vector<1x8xf32> to vector<1x8x1xf32>
    %259 = tpu.reciprocal %258 {approx = true} : vector<1x8x1xf32> -> vector<1x8x1xf32>
    %260 = vector.broadcast %259 : vector<1x8x1xf32> to vector<1x8x8xf32>
    %261 = arith.mulf %256, %260 : vector<1x8x8xf32>
    %262 = arith.truncf %261 : vector<1x8x8xf32> to vector<1x8x8xbf16>
    %263 = arith.truncf %245 : vector<1x8x32xf32> to vector<1x8x32xbf16>
    "tpu.trace_start"() <{level = 10 : i32, message = "bqk,bkd->bqd"}> : () -> ()
    %cst_98 = arith.constant dense<0.000000e+00> : vector<1x8x32xf32>
    %264 = tpu.matmul %262, %263, %cst_98 {dimension_numbers = #tpu.dot_dimension_numbers<[2], [1], [1], [2], [0, 0, 0, 1, 1, 2], [0], [0]>} : vector<1x8x8xbf16>, vector<1x8x32xbf16>, vector<1x8x32xf32> -> vector<1x8x32xf32>
    "tpu.trace_stop"() : () -> ()
    %265 = vector.shape_cast %264 : vector<1x8x32xf32> to vector<8x32xf32>
    %266 = vector.extract_strided_slice %239 {offsets = [0, 32], sizes = [8, 32], strides = [1, 1]} : vector<8x384xf32> to vector<8x32xf32>
    %267 = vector.shape_cast %266 : vector<8x32xf32> to vector<1x8x32xf32>
    %268 = vector.extract_strided_slice %239 {offsets = [0, 160], sizes = [8, 32], strides = [1, 1]} : vector<8x384xf32> to vector<8x32xf32>
    %269 = vector.shape_cast %268 : vector<8x32xf32> to vector<1x8x32xf32>
    %270 = vector.extract_strided_slice %239 {offsets = [0, 288], sizes = [8, 32], strides = [1, 1]} : vector<8x384xf32> to vector<8x32xf32>
    %271 = vector.shape_cast %270 : vector<8x32xf32> to vector<1x8x32xf32>
    %272 = arith.truncf %267 : vector<1x8x32xf32> to vector<1x8x32xbf16>
    %273 = arith.truncf %269 : vector<1x8x32xf32> to vector<1x8x32xbf16>
    "tpu.trace_start"() <{level = 10 : i32, message = "bqd,bkd->bqk"}> : () -> ()
    %cst_99 = arith.constant dense<0.000000e+00> : vector<1x8x8xf32>
    %274 = tpu.matmul %272, %273, %cst_99 {dimension_numbers = #tpu.dot_dimension_numbers<[2], [2], [1], [1], [0, 0, 0, 1, 1, 1], [0], [0]>} : vector<1x8x32xbf16>, vector<1x8x32xbf16>, vector<1x8x8xf32> -> vector<1x8x8xf32>
    "tpu.trace_stop"() : () -> ()
    %cst_100 = arith.constant 0.176776692 : f32
    %275 = vector.broadcast %cst_100 : f32 to vector<1x8x8xf32>
    %276 = arith.mulf %274, %275 : vector<1x8x8xf32>
    %277 = arith.addf %276, %8 : vector<1x8x8xf32>
    %cst_101 = arith.constant dense<0xFF800000> : vector<1x8xf32>
    %278 = vector.multi_reduction <maximumf>, %277, %cst_101 [2] : vector<1x8x8xf32> to vector<1x8xf32>
    %279 = vector.shape_cast %278 : vector<1x8xf32> to vector<1x8x1xf32>
    %280 = vector.broadcast %279 : vector<1x8x1xf32> to vector<1x8x8xf32>
    %281 = arith.subf %277, %280 : vector<1x8x8xf32>
    %282 = math.exp %281 : vector<1x8x8xf32>
    %cst_102 = arith.constant dense<0.000000e+00> : vector<1x8xf32>
    %283 = vector.multi_reduction <add>, %282, %cst_102 [2] : vector<1x8x8xf32> to vector<1x8xf32>
    %284 = vector.shape_cast %283 : vector<1x8xf32> to vector<1x8x1xf32>
    %285 = tpu.reciprocal %284 {approx = true} : vector<1x8x1xf32> -> vector<1x8x1xf32>
    %286 = vector.broadcast %285 : vector<1x8x1xf32> to vector<1x8x8xf32>
    %287 = arith.mulf %282, %286 : vector<1x8x8xf32>
    %288 = arith.truncf %287 : vector<1x8x8xf32> to vector<1x8x8xbf16>
    %289 = arith.truncf %271 : vector<1x8x32xf32> to vector<1x8x32xbf16>
    "tpu.trace_start"() <{level = 10 : i32, message = "bqk,bkd->bqd"}> : () -> ()
    %cst_103 = arith.constant dense<0.000000e+00> : vector<1x8x32xf32>
    %290 = tpu.matmul %288, %289, %cst_103 {dimension_numbers = #tpu.dot_dimension_numbers<[2], [1], [1], [2], [0, 0, 0, 1, 1, 2], [0], [0]>} : vector<1x8x8xbf16>, vector<1x8x32xbf16>, vector<1x8x32xf32> -> vector<1x8x32xf32>
    "tpu.trace_stop"() : () -> ()
    %291 = vector.shape_cast %290 : vector<1x8x32xf32> to vector<8x32xf32>
    %292 = vector.extract_strided_slice %239 {offsets = [0, 64], sizes = [8, 32], strides = [1, 1]} : vector<8x384xf32> to vector<8x32xf32>
    %293 = vector.shape_cast %292 : vector<8x32xf32> to vector<1x8x32xf32>
    %294 = vector.extract_strided_slice %239 {offsets = [0, 192], sizes = [8, 32], strides = [1, 1]} : vector<8x384xf32> to vector<8x32xf32>
    %295 = vector.shape_cast %294 : vector<8x32xf32> to vector<1x8x32xf32>
    %296 = vector.extract_strided_slice %239 {offsets = [0, 320], sizes = [8, 32], strides = [1, 1]} : vector<8x384xf32> to vector<8x32xf32>
    %297 = vector.shape_cast %296 : vector<8x32xf32> to vector<1x8x32xf32>
    %298 = arith.truncf %293 : vector<1x8x32xf32> to vector<1x8x32xbf16>
    %299 = arith.truncf %295 : vector<1x8x32xf32> to vector<1x8x32xbf16>
    "tpu.trace_start"() <{level = 10 : i32, message = "bqd,bkd->bqk"}> : () -> ()
    %cst_104 = arith.constant dense<0.000000e+00> : vector<1x8x8xf32>
    %300 = tpu.matmul %298, %299, %cst_104 {dimension_numbers = #tpu.dot_dimension_numbers<[2], [2], [1], [1], [0, 0, 0, 1, 1, 1], [0], [0]>} : vector<1x8x32xbf16>, vector<1x8x32xbf16>, vector<1x8x8xf32> -> vector<1x8x8xf32>
    "tpu.trace_stop"() : () -> ()
    %cst_105 = arith.constant 0.176776692 : f32
    %301 = vector.broadcast %cst_105 : f32 to vector<1x8x8xf32>
    %302 = arith.mulf %300, %301 : vector<1x8x8xf32>
    %303 = arith.addf %302, %8 : vector<1x8x8xf32>
    %cst_106 = arith.constant dense<0xFF800000> : vector<1x8xf32>
    %304 = vector.multi_reduction <maximumf>, %303, %cst_106 [2] : vector<1x8x8xf32> to vector<1x8xf32>
    %305 = vector.shape_cast %304 : vector<1x8xf32> to vector<1x8x1xf32>
    %306 = vector.broadcast %305 : vector<1x8x1xf32> to vector<1x8x8xf32>
    %307 = arith.subf %303, %306 : vector<1x8x8xf32>
    %308 = math.exp %307 : vector<1x8x8xf32>
    %cst_107 = arith.constant dense<0.000000e+00> : vector<1x8xf32>
    %309 = vector.multi_reduction <add>, %308, %cst_107 [2] : vector<1x8x8xf32> to vector<1x8xf32>
    %310 = vector.shape_cast %309 : vector<1x8xf32> to vector<1x8x1xf32>
    %311 = tpu.reciprocal %310 {approx = true} : vector<1x8x1xf32> -> vector<1x8x1xf32>
    %312 = vector.broadcast %311 : vector<1x8x1xf32> to vector<1x8x8xf32>
    %313 = arith.mulf %308, %312 : vector<1x8x8xf32>
    %314 = arith.truncf %313 : vector<1x8x8xf32> to vector<1x8x8xbf16>
    %315 = arith.truncf %297 : vector<1x8x32xf32> to vector<1x8x32xbf16>
    "tpu.trace_start"() <{level = 10 : i32, message = "bqk,bkd->bqd"}> : () -> ()
    %cst_108 = arith.constant dense<0.000000e+00> : vector<1x8x32xf32>
    %316 = tpu.matmul %314, %315, %cst_108 {dimension_numbers = #tpu.dot_dimension_numbers<[2], [1], [1], [2], [0, 0, 0, 1, 1, 2], [0], [0]>} : vector<1x8x8xbf16>, vector<1x8x32xbf16>, vector<1x8x32xf32> -> vector<1x8x32xf32>
    "tpu.trace_stop"() : () -> ()
    %317 = vector.shape_cast %316 : vector<1x8x32xf32> to vector<8x32xf32>
    %318 = vector.extract_strided_slice %239 {offsets = [0, 96], sizes = [8, 32], strides = [1, 1]} : vector<8x384xf32> to vector<8x32xf32>
    %319 = vector.shape_cast %318 : vector<8x32xf32> to vector<1x8x32xf32>
    %320 = vector.extract_strided_slice %239 {offsets = [0, 224], sizes = [8, 32], strides = [1, 1]} : vector<8x384xf32> to vector<8x32xf32>
    %321 = vector.shape_cast %320 : vector<8x32xf32> to vector<1x8x32xf32>
    %322 = vector.extract_strided_slice %239 {offsets = [0, 352], sizes = [8, 32], strides = [1, 1]} : vector<8x384xf32> to vector<8x32xf32>
    %323 = vector.shape_cast %322 : vector<8x32xf32> to vector<1x8x32xf32>
    %324 = arith.truncf %319 : vector<1x8x32xf32> to vector<1x8x32xbf16>
    %325 = arith.truncf %321 : vector<1x8x32xf32> to vector<1x8x32xbf16>
    "tpu.trace_start"() <{level = 10 : i32, message = "bqd,bkd->bqk"}> : () -> ()
    %cst_109 = arith.constant dense<0.000000e+00> : vector<1x8x8xf32>
    %326 = tpu.matmul %324, %325, %cst_109 {dimension_numbers = #tpu.dot_dimension_numbers<[2], [2], [1], [1], [0, 0, 0, 1, 1, 1], [0], [0]>} : vector<1x8x32xbf16>, vector<1x8x32xbf16>, vector<1x8x8xf32> -> vector<1x8x8xf32>
    "tpu.trace_stop"() : () -> ()
    %cst_110 = arith.constant 0.176776692 : f32
    %327 = vector.broadcast %cst_110 : f32 to vector<1x8x8xf32>
    %328 = arith.mulf %326, %327 : vector<1x8x8xf32>
    %329 = arith.addf %328, %8 : vector<1x8x8xf32>
    %cst_111 = arith.constant dense<0xFF800000> : vector<1x8xf32>
    %330 = vector.multi_reduction <maximumf>, %329, %cst_111 [2] : vector<1x8x8xf32> to vector<1x8xf32>
    %331 = vector.shape_cast %330 : vector<1x8xf32> to vector<1x8x1xf32>
    %332 = vector.broadcast %331 : vector<1x8x1xf32> to vector<1x8x8xf32>
    %333 = arith.subf %329, %332 : vector<1x8x8xf32>
    %334 = math.exp %333 : vector<1x8x8xf32>
    %cst_112 = arith.constant dense<0.000000e+00> : vector<1x8xf32>
    %335 = vector.multi_reduction <add>, %334, %cst_112 [2] : vector<1x8x8xf32> to vector<1x8xf32>
    %336 = vector.shape_cast %335 : vector<1x8xf32> to vector<1x8x1xf32>
    %337 = tpu.reciprocal %336 {approx = true} : vector<1x8x1xf32> -> vector<1x8x1xf32>
    %338 = vector.broadcast %337 : vector<1x8x1xf32> to vector<1x8x8xf32>
    %339 = arith.mulf %334, %338 : vector<1x8x8xf32>
    %340 = arith.truncf %339 : vector<1x8x8xf32> to vector<1x8x8xbf16>
    %341 = arith.truncf %323 : vector<1x8x32xf32> to vector<1x8x32xbf16>
    "tpu.trace_start"() <{level = 10 : i32, message = "bqk,bkd->bqd"}> : () -> ()
    %cst_113 = arith.constant dense<0.000000e+00> : vector<1x8x32xf32>
    %342 = tpu.matmul %340, %341, %cst_113 {dimension_numbers = #tpu.dot_dimension_numbers<[2], [1], [1], [2], [0, 0, 0, 1, 1, 2], [0], [0]>} : vector<1x8x8xbf16>, vector<1x8x32xbf16>, vector<1x8x32xf32> -> vector<1x8x32xf32>
    "tpu.trace_stop"() : () -> ()
    %343 = vector.shape_cast %342 : vector<1x8x32xf32> to vector<8x32xf32>
    %344 = tpu.concatenate %265, %291, %317, %343 in 1 : vector<8x32xf32>, vector<8x32xf32>, vector<8x32xf32>, vector<8x32xf32> -> vector<8x128xf32>
    %c1_114 = arith.constant 1 : index
    %c0_115 = arith.constant 0 : index
    %c0_116 = arith.constant 0 : index
    %345 = vector.load %arg4[%c1_114, %c0_115, %c0_116] : memref<2x128x128xbf16, #tpu.memory_space<vmem>>, vector<1x128x128xbf16>
    %346 = vector.shape_cast %345 : vector<1x128x128xbf16> to vector<128x128xbf16>
    %347 = arith.truncf %344 : vector<8x128xf32> to vector<8x128xbf16>
    %cst_117 = arith.constant dense<0.000000e+00> : vector<8x128xf32>
    %348 = tpu.matmul %347, %346, %cst_117 {dimension_numbers = #tpu.dot_dimension_numbers<[1], [0], [0], [1], [0, 0, 1, 1], [], []>} : vector<8x128xbf16>, vector<128x128xbf16>, vector<8x128xf32> -> vector<8x128xf32>
    %c1_118 = arith.constant 1 : index
    %c0_119 = arith.constant 0 : index
    %c0_120 = arith.constant 0 : index
    %349 = vector.load %arg5[%c1_118, %c0_119, %c0_120] : memref<2x1x128xf32, #tpu.memory_space<vmem>>, vector<1x1x128xf32>
    %350 = vector.shape_cast %349 : vector<1x1x128xf32> to vector<1x128xf32>
    %351 = vector.broadcast %350 : vector<1x128xf32> to vector<8x128xf32>
    %352 = arith.addf %348, %351 : vector<8x128xf32>
    %353 = arith.addf %231, %352 : vector<8x128xf32>
    %c1_121 = arith.constant 1 : index
    %c0_122 = arith.constant 0 : index
    %c0_123 = arith.constant 0 : index
    %354 = vector.load %arg7[%c1_121, %c0_122, %c0_123] : memref<2x1x128xf32, #tpu.memory_space<vmem>>, vector<1x1x128xf32>
    %355 = vector.shape_cast %354 : vector<1x1x128xf32> to vector<1x128xf32>
    %c1_124 = arith.constant 1 : index
    %c0_125 = arith.constant 0 : index
    %c0_126 = arith.constant 0 : index
    %356 = vector.load %arg8[%c1_124, %c0_125, %c0_126] : memref<2x1x128xf32, #tpu.memory_space<vmem>>, vector<1x1x128xf32>
    %357 = vector.shape_cast %356 : vector<1x1x128xf32> to vector<1x128xf32>
    %cst_127 = arith.constant dense<0.000000e+00> : vector<8xf32>
    %358 = vector.multi_reduction <add>, %353, %cst_127 [1] : vector<8x128xf32> to vector<8xf32>
    %359 = vector.shape_cast %358 : vector<8xf32> to vector<8x1xf32>
    %cst_128 = arith.constant 1.280000e+02 : f32
    %360 = vector.broadcast %cst_128 : f32 to vector<8x1xf32>
    %361 = arith.divf %359, %360 : vector<8x1xf32>
    %362 = vector.broadcast %361 : vector<8x1xf32> to vector<8x128xf32>
    %363 = arith.subf %353, %362 : vector<8x128xf32>
    %364 = arith.mulf %363, %363 : vector<8x128xf32>
    %cst_129 = arith.constant dense<0.000000e+00> : vector<8xf32>
    %365 = vector.multi_reduction <add>, %364, %cst_129 [1] : vector<8x128xf32> to vector<8xf32>
    %366 = vector.shape_cast %365 : vector<8xf32> to vector<8x1xf32>
    %cst_130 = arith.constant 1.280000e+02 : f32
    %367 = vector.broadcast %cst_130 : f32 to vector<8x1xf32>
    %368 = arith.divf %366, %367 : vector<8x1xf32>
    %369 = vector.broadcast %361 : vector<8x1xf32> to vector<8x128xf32>
    %370 = arith.subf %353, %369 : vector<8x128xf32>
    %cst_131 = arith.constant 9.99999974E-6 : f32
    %371 = vector.broadcast %cst_131 : f32 to vector<8x1xf32>
    %372 = arith.addf %368, %371 : vector<8x1xf32>
    %373 = math.rsqrt %372 : vector<8x1xf32>
    %374 = vector.broadcast %373 : vector<8x1xf32> to vector<8x128xf32>
    %375 = arith.mulf %370, %374 : vector<8x128xf32>
    %376 = vector.broadcast %355 : vector<1x128xf32> to vector<8x128xf32>
    %377 = arith.mulf %375, %376 : vector<8x128xf32>
    %378 = vector.broadcast %357 : vector<1x128xf32> to vector<8x128xf32>
    %379 = arith.addf %377, %378 : vector<8x128xf32>
    %c1_132 = arith.constant 1 : index
    %c0_133 = arith.constant 0 : index
    %c0_134 = arith.constant 0 : index
    %380 = vector.load %arg6[%c1_132, %c0_133, %c0_134] : memref<2x1x128xf32, #tpu.memory_space<vmem>>, vector<1x1x128xf32>
    %381 = vector.shape_cast %380 : vector<1x1x128xf32> to vector<1x128xf32>
    %382 = vector.broadcast %381 : vector<1x128xf32> to vector<8x128xf32>
    %383 = arith.addf %379, %382 : vector<8x128xf32>
    %c1_135 = arith.constant 1 : index
    %c0_136 = arith.constant 0 : index
    %c0_137 = arith.constant 0 : index
    %384 = vector.load %arg9[%c1_135, %c0_136, %c0_137] : memref<2x1x128xf32, #tpu.memory_space<vmem>>, vector<1x1x128xf32>
    %385 = vector.shape_cast %384 : vector<1x1x128xf32> to vector<1x128xf32>
    %c1_138 = arith.constant 1 : index
    %c0_139 = arith.constant 0 : index
    %c0_140 = arith.constant 0 : index
    %386 = vector.load %arg10[%c1_138, %c0_139, %c0_140] : memref<2x1x128xf32, #tpu.memory_space<vmem>>, vector<1x1x128xf32>
    %387 = vector.shape_cast %386 : vector<1x1x128xf32> to vector<1x128xf32>
    %cst_141 = arith.constant dense<0.000000e+00> : vector<8xf32>
    %388 = vector.multi_reduction <add>, %383, %cst_141 [1] : vector<8x128xf32> to vector<8xf32>
    %389 = vector.shape_cast %388 : vector<8xf32> to vector<8x1xf32>
    %cst_142 = arith.constant 1.280000e+02 : f32
    %390 = vector.broadcast %cst_142 : f32 to vector<8x1xf32>
    %391 = arith.divf %389, %390 : vector<8x1xf32>
    %392 = vector.broadcast %391 : vector<8x1xf32> to vector<8x128xf32>
    %393 = arith.subf %383, %392 : vector<8x128xf32>
    %394 = arith.mulf %393, %393 : vector<8x128xf32>
    %cst_143 = arith.constant dense<0.000000e+00> : vector<8xf32>
    %395 = vector.multi_reduction <add>, %394, %cst_143 [1] : vector<8x128xf32> to vector<8xf32>
    %396 = vector.shape_cast %395 : vector<8xf32> to vector<8x1xf32>
    %cst_144 = arith.constant 1.280000e+02 : f32
    %397 = vector.broadcast %cst_144 : f32 to vector<8x1xf32>
    %398 = arith.divf %396, %397 : vector<8x1xf32>
    %399 = vector.broadcast %391 : vector<8x1xf32> to vector<8x128xf32>
    %400 = arith.subf %383, %399 : vector<8x128xf32>
    %cst_145 = arith.constant 9.99999974E-6 : f32
    %401 = vector.broadcast %cst_145 : f32 to vector<8x1xf32>
    %402 = arith.addf %398, %401 : vector<8x1xf32>
    %403 = math.rsqrt %402 : vector<8x1xf32>
    %404 = vector.broadcast %403 : vector<8x1xf32> to vector<8x128xf32>
    %405 = arith.mulf %400, %404 : vector<8x128xf32>
    %406 = vector.broadcast %385 : vector<1x128xf32> to vector<8x128xf32>
    %407 = arith.mulf %405, %406 : vector<8x128xf32>
    %408 = vector.broadcast %387 : vector<1x128xf32> to vector<8x128xf32>
    %409 = arith.addf %407, %408 : vector<8x128xf32>
    %c1_146 = arith.constant 1 : index
    %c0_147 = arith.constant 0 : index
    %c0_148 = arith.constant 0 : index
    %410 = vector.load %arg13[%c1_146, %c0_147, %c0_148] : memref<2x128x256xbf16, #tpu.memory_space<vmem>>, vector<1x128x256xbf16>
    %411 = vector.shape_cast %410 : vector<1x128x256xbf16> to vector<128x256xbf16>
    %412 = arith.truncf %409 : vector<8x128xf32> to vector<8x128xbf16>
    %cst_149 = arith.constant dense<0.000000e+00> : vector<8x256xf32>
    %413 = tpu.matmul %412, %411, %cst_149 {dimension_numbers = #tpu.dot_dimension_numbers<[1], [0], [0], [1], [0, 0, 1, 1], [], []>} : vector<8x128xbf16>, vector<128x256xbf16>, vector<8x256xf32> -> vector<8x256xf32>
    %c1_150 = arith.constant 1 : index
    %c0_151 = arith.constant 0 : index
    %c0_152 = arith.constant 0 : index
    %414 = vector.load %arg14[%c1_150, %c0_151, %c0_152] : memref<2x1x256xf32, #tpu.memory_space<vmem>>, vector<1x1x256xf32>
    %415 = vector.shape_cast %414 : vector<1x1x256xf32> to vector<1x256xf32>
    %416 = vector.broadcast %415 : vector<1x256xf32> to vector<8x256xf32>
    %417 = arith.addf %413, %416 : vector<8x256xf32>
    %cst_153 = arith.constant 0.000000e+00 : f32
    %418 = vector.broadcast %cst_153 : f32 to vector<8x256xf32>
    %419 = arith.maximumf %417, %418 : vector<8x256xf32>
    %c1_154 = arith.constant 1 : index
    %c0_155 = arith.constant 0 : index
    %c0_156 = arith.constant 0 : index
    %420 = vector.load %arg15[%c1_154, %c0_155, %c0_156] : memref<2x256x128xbf16, #tpu.memory_space<vmem>>, vector<1x256x128xbf16>
    %421 = vector.shape_cast %420 : vector<1x256x128xbf16> to vector<256x128xbf16>
    %422 = arith.truncf %419 : vector<8x256xf32> to vector<8x256xbf16>
    %cst_157 = arith.constant dense<0.000000e+00> : vector<8x128xf32>
    %423 = tpu.matmul %422, %421, %cst_157 {dimension_numbers = #tpu.dot_dimension_numbers<[1], [0], [0], [1], [0, 0, 1, 1], [], []>} : vector<8x256xbf16>, vector<256x128xbf16>, vector<8x128xf32> -> vector<8x128xf32>
    %c1_158 = arith.constant 1 : index
    %c0_159 = arith.constant 0 : index
    %c0_160 = arith.constant 0 : index
    %424 = vector.load %arg16[%c1_158, %c0_159, %c0_160] : memref<2x1x128xf32, #tpu.memory_space<vmem>>, vector<1x1x128xf32>
    %425 = vector.shape_cast %424 : vector<1x1x128xf32> to vector<1x128xf32>
    %426 = vector.broadcast %425 : vector<1x128xf32> to vector<8x128xf32>
    %427 = arith.addf %423, %426 : vector<8x128xf32>
    %428 = arith.addf %409, %427 : vector<8x128xf32>
    %c1_161 = arith.constant 1 : index
    %c0_162 = arith.constant 0 : index
    %c0_163 = arith.constant 0 : index
    %429 = vector.load %arg11[%c1_161, %c0_162, %c0_163] : memref<2x1x128xf32, #tpu.memory_space<vmem>>, vector<1x1x128xf32>
    %430 = vector.shape_cast %429 : vector<1x1x128xf32> to vector<1x128xf32>
    %c1_164 = arith.constant 1 : index
    %c0_165 = arith.constant 0 : index
    %c0_166 = arith.constant 0 : index
    %431 = vector.load %arg12[%c1_164, %c0_165, %c0_166] : memref<2x1x128xf32, #tpu.memory_space<vmem>>, vector<1x1x128xf32>
    %432 = vector.shape_cast %431 : vector<1x1x128xf32> to vector<1x128xf32>
    %cst_167 = arith.constant dense<0.000000e+00> : vector<8xf32>
    %433 = vector.multi_reduction <add>, %428, %cst_167 [1] : vector<8x128xf32> to vector<8xf32>
    %434 = vector.shape_cast %433 : vector<8xf32> to vector<8x1xf32>
    %cst_168 = arith.constant 1.280000e+02 : f32
    %435 = vector.broadcast %cst_168 : f32 to vector<8x1xf32>
    %436 = arith.divf %434, %435 : vector<8x1xf32>
    %437 = vector.broadcast %436 : vector<8x1xf32> to vector<8x128xf32>
    %438 = arith.subf %428, %437 : vector<8x128xf32>
    %439 = arith.mulf %438, %438 : vector<8x128xf32>
    %cst_169 = arith.constant dense<0.000000e+00> : vector<8xf32>
    %440 = vector.multi_reduction <add>, %439, %cst_169 [1] : vector<8x128xf32> to vector<8xf32>
    %441 = vector.shape_cast %440 : vector<8xf32> to vector<8x1xf32>
    %cst_170 = arith.constant 1.280000e+02 : f32
    %442 = vector.broadcast %cst_170 : f32 to vector<8x1xf32>
    %443 = arith.divf %441, %442 : vector<8x1xf32>
    %444 = vector.broadcast %436 : vector<8x1xf32> to vector<8x128xf32>
    %445 = arith.subf %428, %444 : vector<8x128xf32>
    %cst_171 = arith.constant 9.99999974E-6 : f32
    %446 = vector.broadcast %cst_171 : f32 to vector<8x1xf32>
    %447 = arith.addf %443, %446 : vector<8x1xf32>
    %448 = math.rsqrt %447 : vector<8x1xf32>
    %449 = vector.broadcast %448 : vector<8x1xf32> to vector<8x128xf32>
    %450 = arith.mulf %445, %449 : vector<8x128xf32>
    %451 = vector.broadcast %430 : vector<1x128xf32> to vector<8x128xf32>
    %452 = arith.mulf %450, %451 : vector<8x128xf32>
    %453 = vector.broadcast %432 : vector<1x128xf32> to vector<8x128xf32>
    %454 = arith.addf %452, %453 : vector<8x128xf32>
    %c0_172 = arith.constant 0 : index
    %c0_173 = arith.constant 0 : index
    %455 = vector.load %arg17[%c0_172, %c0_173] : memref<128x512xbf16, #tpu.memory_space<vmem>>, vector<128x512xbf16>
    %456 = arith.truncf %454 : vector<8x128xf32> to vector<8x128xbf16>
    %cst_174 = arith.constant dense<0.000000e+00> : vector<8x512xf32>
    %457 = tpu.matmul %456, %455, %cst_174 {dimension_numbers = #tpu.dot_dimension_numbers<[1], [0], [0], [1], [0, 0, 1, 1], [], []>} : vector<8x128xbf16>, vector<128x512xbf16>, vector<8x512xf32> -> vector<8x512xf32>
    %c0_175 = arith.constant 0 : index
    %c0_176 = arith.constant 0 : index
    %458 = vector.load %arg18[%c0_175, %c0_176] : memref<1x512xf32, #tpu.memory_space<vmem>>, vector<1x512xf32>
    %459 = vector.broadcast %458 : vector<1x512xf32> to vector<8x512xf32>
    %460 = arith.addf %457, %459 : vector<8x512xf32>
    %461 = vector.shape_cast %460 : vector<8x512xf32> to vector<1x8x512xf32>
    %c0_177 = arith.constant 0 : index
    %c0_178 = arith.constant 0 : index
    %c0_179 = arith.constant 0 : index
    %462 = vector.load %arg19[%c0_177, %c0_178, %c0_179] : memref<1x8x512xf32, #tpu.memory_space<vmem>>, vector<1x8x512xf32>
    tpu.vector_store %arg19[%c0_177, %c0_178, %c0_179], %461 {strides = array<i32>} : memref<1x8x512xf32, #tpu.memory_space<vmem>>, vector<1x8x512xf32>,
    return
  }
  func.func @transform_0(%arg0: i32) -> (i32, i32, i32) {
    %c0_i32 = arith.constant 0 : i32
    %c0_i32_0 = arith.constant 0 : i32
    %c0_i32_1 = arith.constant 0 : i32
    return %arg0, %c0_i32, %c0_i32_0 : i32, i32, i32
  }
  func.func @transform_1(%arg0: i32) -> (i32, i32, i32) {
    %c0_i32 = arith.constant 0 : i32
    %c0_i32_0 = arith.constant 0 : i32
    %c0_i32_1 = arith.constant 0 : i32
    %c0_i32_2 = arith.constant 0 : i32
    return %c0_i32, %c0_i32_0, %c0_i32_1 : i32, i32, i32
  }
  func.func @transform_2(%arg0: i32) -> (i32, i32, i32) {
    %c0_i32 = arith.constant 0 : i32
    %c0_i32_0 = arith.constant 0 : i32
    %c0_i32_1 = arith.constant 0 : i32
    %c0_i32_2 = arith.constant 0 : i32
    return %c0_i32, %c0_i32_0, %c0_i32_1 : i32, i32, i32
  }
  func.func @transform_3(%arg0: i32) -> (i32, i32, i32) {
    %c0_i32 = arith.constant 0 : i32
    %c0_i32_0 = arith.constant 0 : i32
    %c0_i32_1 = arith.constant 0 : i32
    %c0_i32_2 = arith.constant 0 : i32
    return %c0_i32, %c0_i32_0, %c0_i32_1 : i32, i32, i32
  }
  func.func @transform_4(%arg0: i32) -> (i32, i32, i32) {
    %c0_i32 = arith.constant 0 : i32
    %c0_i32_0 = arith.constant 0 : i32
    %c0_i32_1 = arith.constant 0 : i32
    %c0_i32_2 = arith.constant 0 : i32
    return %c0_i32, %c0_i32_0, %c0_i32_1 : i32, i32, i32
  }
  func.func @transform_5(%arg0: i32) -> (i32, i32, i32) {
    %c0_i32 = arith.constant 0 : i32
    %c0_i32_0 = arith.constant 0 : i32
    %c0_i32_1 = arith.constant 0 : i32
    %c0_i32_2 = arith.constant 0 : i32
    return %c0_i32, %c0_i32_0, %c0_i32_1 : i32, i32, i32
  }
  func.func @transform_6(%arg0: i32) -> (i32, i32, i32) {
    %c0_i32 = arith.constant 0 : i32
    %c0_i32_0 = arith.constant 0 : i32
    %c0_i32_1 = arith.constant 0 : i32
    %c0_i32_2 = arith.constant 0 : i32
    return %c0_i32, %c0_i32_0, %c0_i32_1 : i32, i32, i32
  }
  func.func @transform_7(%arg0: i32) -> (i32, i32, i32) {
    %c0_i32 = arith.constant 0 : i32
    %c0_i32_0 = arith.constant 0 : i32
    %c0_i32_1 = arith.constant 0 : i32
    %c0_i32_2 = arith.constant 0 : i32
    return %c0_i32, %c0_i32_0, %c0_i32_1 : i32, i32, i32
  }
  func.func @transform_8(%arg0: i32) -> (i32, i32, i32) {
    %c0_i32 = arith.constant 0 : i32
    %c0_i32_0 = arith.constant 0 : i32
    %c0_i32_1 = arith.constant 0 : i32
    %c0_i32_2 = arith.constant 0 : i32
    return %c0_i32, %c0_i32_0, %c0_i32_1 : i32, i32, i32
  }
  func.func @transform_9(%arg0: i32) -> (i32, i32, i32) {
    %c0_i32 = arith.constant 0 : i32
    %c0_i32_0 = arith.constant 0 : i32
    %c0_i32_1 = arith.constant 0 : i32
    %c0_i32_2 = arith.constant 0 : i32
    return %c0_i32, %c0_i32_0, %c0_i32_1 : i32, i32, i32
  }
  func.func @transform_10(%arg0: i32) -> (i32, i32, i32) {
    %c0_i32 = arith.constant 0 : i32
    %c0_i32_0 = arith.constant 0 : i32
    %c0_i32_1 = arith.constant 0 : i32
    %c0_i32_2 = arith.constant 0 : i32
    return %c0_i32, %c0_i32_0, %c0_i32_1 : i32, i32, i32
  }
  func.func @transform_11(%arg0: i32) -> (i32, i32, i32) {
    %c0_i32 = arith.constant 0 : i32
    %c0_i32_0 = arith.constant 0 : i32
    %c0_i32_1 = arith.constant 0 : i32
    %c0_i32_2 = arith.constant 0 : i32
    return %c0_i32, %c0_i32_0, %c0_i32_1 : i32, i32, i32
  }
  func.func @transform_12(%arg0: i32) -> (i32, i32, i32) {
    %c0_i32 = arith.constant 0 : i32
    %c0_i32_0 = arith.constant 0 : i32
    %c0_i32_1 = arith.constant 0 : i32
    %c0_i32_2 = arith.constant 0 : i32
    return %c0_i32, %c0_i32_0, %c0_i32_1 : i32, i32, i32
  }
  func.func @transform_13(%arg0: i32) -> (i32, i32, i32) {
    %c0_i32 = arith.constant 0 : i32
    %c0_i32_0 = arith.constant 0 : i32
    %c0_i32_1 = arith.constant 0 : i32
    %c0_i32_2 = arith.constant 0 : i32
    return %c0_i32, %c0_i32_0, %c0_i32_1 : i32, i32, i32
  }
  func.func @transform_14(%arg0: i32) -> (i32, i32, i32) {
    %c0_i32 = arith.constant 0 : i32
    %c0_i32_0 = arith.constant 0 : i32
    %c0_i32_1 = arith.constant 0 : i32
    %c0_i32_2 = arith.constant 0 : i32
    return %c0_i32, %c0_i32_0, %c0_i32_1 : i32, i32, i32
  }
  func.func @transform_15(%arg0: i32) -> (i32, i32, i32) {
    %c0_i32 = arith.constant 0 : i32
    %c0_i32_0 = arith.constant 0 : i32
    %c0_i32_1 = arith.constant 0 : i32
    %c0_i32_2 = arith.constant 0 : i32
    return %c0_i32, %c0_i32_0, %c0_i32_1 : i32, i32, i32
  }
  func.func @transform_16(%arg0: i32) -> (i32, i32) {
    %c0_i32 = arith.constant 0 : i32
    %c0_i32_0 = arith.constant 0 : i32
    %c0_i32_1 = arith.constant 0 : i32
    return %c0_i32, %c0_i32_0 : i32, i32
  }
  func.func @transform_17(%arg0: i32) -> (i32, i32) {
    %c0_i32 = arith.constant 0 : i32
    %c0_i32_0 = arith.constant 0 : i32
    %c0_i32_1 = arith.constant 0 : i32
    return %c0_i32, %c0_i32_0 : i32, i32
  }
  func.func @transform_18(%arg0: i32) -> (i32, i32, i32) {
    %c0_i32 = arith.constant 0 : i32
    %c0_i32_0 = arith.constant 0 : i32
    %c0_i32_1 = arith.constant 0 : i32
    return %arg0, %c0_i32, %c0_i32_0 : i32, i32, i32
  }
}

</mosaic_0001>

<llo_original>
// kernel: minigpt_forward.1
$region0: #{minigpt_forward.1}
  #allocation0 [shape = 'u32[]', space=smem, size = 0x4, offset = 0x4, fixed_abs, tag = 'smem constant byte address 0x4 - core index']
  #allocation1 [shape = 'u32[144,128]{1,0:T(1,128)}', space=vmem, size = 0x12000, scoped, tag = 'internal scratch']
  %s0 = inlined_call_operand.vmem [shape: f32[2,8,128], index: 0, kind: input, shape index: {}]
  %s1 = inlined_call_operand.hbm [shape: bf16[2,128,384], index: 1, kind: input, shape index: {}]
  %s2 = inlined_call_operand.vmem [shape: f32[2,1,384], index: 2, kind: input, shape index: {}]
  %s3 = inlined_call_operand.hbm [shape: bf16[2,128,128], index: 3, kind: input, shape index: {}]
  %s4 = inlined_call_operand.vmem [shape: f32[2,1,128], index: 4, kind: input, shape index: {}]
  %s5 = inlined_call_operand.vmem [shape: f32[2,1,128], index: 5, kind: input, shape index: {}]
  %s6 = inlined_call_operand.vmem [shape: f32[2,1,128], index: 6, kind: input, shape index: {}]
  %s7 = inlined_call_operand.hbm [shape: f32[2,1,128], index: 7, kind: input, shape index: {}]
  %s8 = inlined_call_operand.hbm [shape: f32[2,1,128], index: 8, kind: input, shape index: {}]
  %s9 = inlined_call_operand.hbm [shape: f32[2,1,128], index: 9, kind: input, shape index: {}]
  %s10 = inlined_call_operand.hbm [shape: f32[2,1,128], index: 10, kind: input, shape index: {}]
  %s11 = inlined_call_operand.hbm [shape: f32[2,1,128], index: 11, kind: input, shape index: {}]
  %s12 = inlined_call_operand.vmem [shape: bf16[2,128,256], index: 12, kind: input, shape index: {}]
  %s13 = inlined_call_operand.vmem [shape: f32[2,1,256], index: 13, kind: input, shape index: {}]
  %s14 = inlined_call_operand.hbm [shape: bf16[2,256,128], index: 14, kind: input, shape index: {}]
  %s15 = inlined_call_operand.hbm [shape: f32[2,1,128], index: 15, kind: input, shape index: {}]
  %s16 = inlined_call_operand.hbm [shape: bf16[128,512], index: 16, kind: input, shape index: {}]
  %s17 = inlined_call_operand.vmem [shape: f32[1,512], index: 17, kind: input, shape index: {}]
  %s18 = inlined_call_operand.hbm [shape: f32[2,8,512], index: 18, kind: output, shape index: {}]
  %s19 = sld [smem:[#allocation0]]
  $region145: #{minigpt_forward.1} parent=0
    _
  %s21 = ssub.s32 1, %s19
  %s22 = scalar_select 0, %s21, %s19
  $region1: #{minigpt_forward.1} parent=0
    #allocation2 [shape = 'u8[196608]{0}', space=vmem, size = 0x30000, scoped, tag = 'input window, operand 1, single buffered']
    #allocation3 [shape = 's32[2]{0}', space=sflag, size = 0x8, scoped, tag = 'scoped memory for minigpt_forward.1']
    #allocation4 [shape = 's32[2]{0}', space=sflag, size = 0x8, scoped, tag = 'scoped memory for minigpt_forward.1']
    #allocation5 [shape = 'u8[65536]{0}', space=vmem, size = 0x10000, scoped, tag = 'input window, operand 3, single buffered']
    #allocation6 [shape = 's32[1]{0}', space=sflag, size = 0x4, scoped, tag = 'scoped memory for minigpt_forward.1']
    #allocation7 [shape = 'u8[1024]{0}', space=vmem, size = 0x400, scoped, tag = 'input window, operand 7, single buffered']
    #allocation8 [shape = 'u8[1024]{0}', space=vmem, size = 0x400, scoped, tag = 'input window, operand 8, single buffered']
    #allocation9 [shape = 's32[1]{0}', space=sflag, size = 0x4, scoped, tag = 'scoped memory for minigpt_forward.1']
    #allocation10 [shape = 'u8[1024]{0}', space=vmem, size = 0x400, scoped, tag = 'input window, operand 9, single buffered']
    #allocation11 [shape = 'u8[1024]{0}', space=vmem, size = 0x400, scoped, tag = 'input window, operand 10, single buffered']
    #allocation12 [shape = 's32[1]{0}', space=sflag, size = 0x4, scoped, tag = 'scoped memory for minigpt_forward.1']
    #allocation13 [shape = 'u8[1024]{0}', space=vmem, size = 0x400, scoped, tag = 'input window, operand 11, single buffered']
    #allocation14 [shape = 'u8[131072]{0}', space=vmem, size = 0x20000, scoped, tag = 'input window, operand 14, single buffered']
    #allocation15 [shape = 's32[1]{0}', space=sflag, size = 0x4, scoped, tag = 'scoped memory for minigpt_forward.1']
    #allocation16 [shape = 'u8[1024]{0}', space=vmem, size = 0x400, scoped, tag = 'input window, operand 15, single buffered']
    #allocation17 [shape = 'u8[131072]{0}', space=vmem, size = 0x20000, scoped, tag = 'input window, operand 16, single buffered']
    #allocation18 [shape = 's32[1]{0}', space=sflag, size = 0x4, scoped, tag = 'scoped memory for minigpt_forward.1']
    #allocation19 [shape = 'u8[32768]{0}', space=vmem, size = 0x8000, scoped, tag = 'output window, operand 0']
    %23 = vsyncpa [#allocation3], 0
    %24 = vsyncpa [#allocation6], 0
    %25 = vsyncpa [#allocation9], 0
    %26 = vsyncpa [#allocation12], 0
    %27 = vsyncpa [#allocation15], 0
    %28 = vsyncpa [#allocation18], 0
    %29 = vsyncpa [#allocation4], 0
    %s30 = scalar_lea.sflag [#allocation4], 1
    %31 = vsyncpa %s30, 0
    loop: start=0, step=1, limit=4
    $region2: #{minigpt_forward.1} parent=1 // loop_pre_header
      _
    $region3: #{minigpt_forward.1} parent=1 // loop_header
      %s33 = sphi 0, %s37
      %p34 = scmp.ge.s32.totalorder %s33, 4
      %s43 = sphi 0, %s45
      %s46 = sphi 0, %s43
      %s47 = sphi 0, %s46
      %s63 = sphi 0, %s47
      %s67 = sphi 0, %s67
      %s69 = sphi 0, %s67
      %s70 = sphi 0, %s69
      %s84 = sphi 0, %s70
      %s88 = sphi 0, %s88
      %s90 = sphi 0, %s88
      %s91 = sphi 0, %s90
      %s105 = sphi 0, %s91
      %s109 = sphi 0, %s109
      %s111 = sphi 0, %s109
      %s112 = sphi 0, %s111
      %s126 = sphi 0, %s112
      %s130 = sphi 0, %s130
      %s132 = sphi 0, %s130
      %s133 = sphi 0, %s132
      %s147 = sphi 0, %s133
      %s151 = sphi 0, %s151
      %s153 = sphi 0, %s151
      %s154 = sphi 0, %s153
      %s168 = sphi 0, %s154
      %s172 = sphi 0, %s172
      %s174 = sphi 0, %s172
      %s175 = sphi 0, %s174
      %s189 = sphi 0, %s175
      %s193 = sphi 0, %s193
      %s195 = sphi 0, %s193
      %s196 = sphi 0, %s195
      %s210 = sphi 0, %s196
      %s214 = sphi 0, %s214
      %s216 = sphi 0, %s214
      %s217 = sphi 0, %s216
      %s231 = sphi 0, %s217
      %s235 = sphi 0, %s235
      %s237 = sphi 0, %s235
      %s238 = sphi 0, %s237
      %s252 = sphi 0, %s238
      %s256 = sphi 0, %s256
      %s258 = sphi 0, %s256
      %s259 = sphi 0, %s258
      %s273 = sphi 0, %s259
      %s277 = sphi 0, %s277
      %s279 = sphi 0, %s277
      %s280 = sphi 0, %s279
      %s294 = sphi 0, %s280
      %s298 = sphi 0, %s298
      %s300 = sphi 0, %s298
      %s301 = sphi 0, %s300
      %s315 = sphi 0, %s301
      %s319 = sphi 0, %s319
      %s321 = sphi 0, %s319
      %s322 = sphi 0, %s321
      %s336 = sphi 0, %s322
      %s340 = sphi 0, %s340
      %s342 = sphi 0, %s340
      %s343 = sphi 0, %s342
      %s357 = sphi 0, %s343
      %s361 = sphi 0, %s361
      %s363 = sphi 0, %s361
      %s364 = sphi 0, %s363
      %s378 = sphi 0, %s364
      %s382 = sphi 0, %s382
      %s384 = sphi 0, %s382
      %s385 = sphi 0, %s384
      %s399 = sphi 0, %s385
      %s403 = sphi 0, %s403
      %s405 = sphi 0, %s403
      %s406 = sphi 0, %s405
      %s420 = sphi 0, %s406
      %s426 = sphi 0, %s428
      %s429 = sphi 0, %s426
      %s430 = sphi 0, %s429
      %s446 = sphi 0, %s430
    $region4: #{minigpt_forward.1} parent=1 // loop_header_branch
      %36 = sbr.rel (%p34) target = $region8
    $region5: #{minigpt_forward.1} parent=1 // loop_body
      %s38 = ssub.s32 %s33, 1
      %s39 = ssub.s32 %s33, 2
      %s40 = sadd.s32 %s33, 1
      %s41 = ssub.s32 %s33, %s40
      %p42 = scmp.eq.s32.totalorder %s41, 0
      %s44 = sadd.s32 %s43, 1
      %s45 = scalar_select %p42, %s43, %s44
      %p48 = pneg %p42
      %p49 = scmp.eq.s32.totalorder %s33, 1
      %p50 = por %p48, %p49
      %p51 = scmp.ne.s32.totalorder %s43, %s46
      %p52 = scmp.eq.s32.totalorder %s33, 0
      %p53 = por %p51, %p52
      %p54 = scmp.ne.s32.totalorder %s43, %s46
      %p55 = scmp.eq.s32.totalorder %s38, 1
      %p56 = por %p54, %p55
      %p57 = scmp.ne.s32.totalorder %s46, %s47
      %p58 = scmp.eq.s32.totalorder %s38, 0
      %p59 = por %p57, %p58
      %p60 = scmp.ne.s32.totalorder %s46, %s47
      %p61 = scmp.eq.s32.totalorder %s39, 1
      %p62 = por %p60, %p61
      %p64 = scmp.ne.s32.totalorder %s47, %s63
      %p65 = scmp.eq.s32.totalorder %s39, 0
      %p66 = por %p64, %p65
      %s68 = sadd.s32 %s67, 1
      %p71 = scmp.eq.s32.totalorder %s33, 1
      %p72 = scmp.ne.s32.totalorder %s67, %s69
      %p73 = scmp.eq.s32.totalorder %s33, 0
      %p74 = por %p72, %p73
      %p75 = scmp.ne.s32.totalorder %s67, %s69
      %p76 = scmp.eq.s32.totalorder %s38, 1
      %p77 = por %p75, %p76
      %p78 = scmp.ne.s32.totalorder %s69, %s70
      %p79 = scmp.eq.s32.totalorder %s38, 0
      %p80 = por %p78, %p79
      %p81 = scmp.ne.s32.totalorder %s69, %s70
      %p82 = scmp.eq.s32.totalorder %s39, 1
      %p83 = por %p81, %p82
      %p85 = scmp.ne.s32.totalorder %s70, %s84
      %p86 = scmp.eq.s32.totalorder %s39, 0
      %p87 = por %p85, %p86
      %s89 = sadd.s32 %s88, 1
      %p92 = scmp.eq.s32.totalorder %s33, 1
      %p93 = scmp.ne.s32.totalorder %s88, %s90
      %p94 = scmp.eq.s32.totalorder %s33, 0
      %p95 = por %p93, %p94
      %p96 = scmp.ne.s32.totalorder %s88, %s90
      %p97 = scmp.eq.s32.totalorder %s38, 1
      %p98 = por %p96, %p97
      %p99 = scmp.ne.s32.totalorder %s90, %s91
      %p100 = scmp.eq.s32.totalorder %s38, 0
      %p101 = por %p99, %p100
      %p102 = scmp.ne.s32.totalorder %s90, %s91
      %p103 = scmp.eq.s32.totalorder %s39, 1
      %p104 = por %p102, %p103
      %p106 = scmp.ne.s32.totalorder %s91, %s105
      %p107 = scmp.eq.s32.totalorder %s39, 0
      %p108 = por %p106, %p107
      %s110 = sadd.s32 %s109, 1
      %p113 = scmp.eq.s32.totalorder %s33, 1
      %p114 = scmp.ne.s32.totalorder %s109, %s111
      %p115 = scmp.eq.s32.totalorder %s33, 0
      %p116 = por %p114, %p115
      %p117 = scmp.ne.s32.totalorder %s109, %s111
      %p118 = scmp.eq.s32.totalorder %s38, 1
      %p119 = por %p117, %p118
      %p120 = scmp.ne.s32.totalorder %s111, %s112
      %p121 = scmp.eq.s32.totalorder %s38, 0
      %p122 = por %p120, %p121
      %p123 = scmp.ne.s32.totalorder %s111, %s112
      %p124 = scmp.eq.s32.totalorder %s39, 1
      %p125 = por %p123, %p124
      %p127 = scmp.ne.s32.totalorder %s112, %s126
      %p128 = scmp.eq.s32.totalorder %s39, 0
      %p129 = por %p127, %p128
      %s131 = sadd.s32 %s130, 1
      %p134 = scmp.eq.s32.totalorder %s33, 1
      %p135 = scmp.ne.s32.totalorder %s130, %s132
      %p136 = scmp.eq.s32.totalorder %s33, 0
      %p137 = por %p135, %p136
      %p138 = scmp.ne.s32.totalorder %s130, %s132
      %p139 = scmp.eq.s32.totalorder %s38, 1
      %p140 = por %p138, %p139
      %p141 = scmp.ne.s32.totalorder %s132, %s133
      %p142 = scmp.eq.s32.totalorder %s38, 0
      %p143 = por %p141, %p142
      %p144 = scmp.ne.s32.totalorder %s132, %s133
      %p145 = scmp.eq.s32.totalorder %s39, 1
      %p146 = por %p144, %p145
      %p148 = scmp.ne.s32.totalorder %s133, %s147
      %p149 = scmp.eq.s32.totalorder %s39, 0
      %p150 = por %p148, %p149
      %s152 = sadd.s32 %s151, 1
      %p155 = scmp.eq.s32.totalorder %s33, 1
      %p156 = scmp.ne.s32.totalorder %s151, %s153
      %p157 = scmp.eq.s32.totalorder %s33, 0
      %p158 = por %p156, %p157
      %p159 = scmp.ne.s32.totalorder %s151, %s153
      %p160 = scmp.eq.s32.totalorder %s38, 1
      %p161 = por %p159, %p160
      %p162 = scmp.ne.s32.totalorder %s153, %s154
      %p163 = scmp.eq.s32.totalorder %s38, 0
      %p164 = por %p162, %p163
      %p165 = scmp.ne.s32.totalorder %s153, %s154
      %p166 = scmp.eq.s32.totalorder %s39, 1
      %p167 = por %p165, %p166
      %p169 = scmp.ne.s32.totalorder %s154, %s168
      %p170 = scmp.eq.s32.totalorder %s39, 0
      %p171 = por %p169, %p170
      %s173 = sadd.s32 %s172, 1
      %p176 = scmp.eq.s32.totalorder %s33, 1
      %p177 = scmp.ne.s32.totalorder %s172, %s174
      %p178 = scmp.eq.s32.totalorder %s33, 0
      %p179 = por %p177, %p178
      %p180 = scmp.ne.s32.totalorder %s172, %s174
      %p181 = scmp.eq.s32.totalorder %s38, 1
      %p182 = por %p180, %p181
      %p183 = scmp.ne.s32.totalorder %s174, %s175
      %p184 = scmp.eq.s32.totalorder %s38, 0
      %p185 = por %p183, %p184
      %p186 = scmp.ne.s32.totalorder %s174, %s175
      %p187 = scmp.eq.s32.totalorder %s39, 1
      %p188 = por %p186, %p187
      %p190 = scmp.ne.s32.totalorder %s175, %s189
      %p191 = scmp.eq.s32.totalorder %s39, 0
      %p192 = por %p190, %p191
      %s194 = sadd.s32 %s193, 1
      %p197 = scmp.eq.s32.totalorder %s33, 1
      %p198 = scmp.ne.s32.totalorder %s193, %s195
      %p199 = scmp.eq.s32.totalorder %s33, 0
      %p200 = por %p198, %p199
      %p201 = scmp.ne.s32.totalorder %s193, %s195
      %p202 = scmp.eq.s32.totalorder %s38, 1
      %p203 = por %p201, %p202
      %p204 = scmp.ne.s32.totalorder %s195, %s196
      %p205 = scmp.eq.s32.totalorder %s38, 0
      %p206 = por %p204, %p205
      %p207 = scmp.ne.s32.totalorder %s195, %s196
      %p208 = scmp.eq.s32.totalorder %s39, 1
      %p209 = por %p207, %p208
      %p211 = scmp.ne.s32.totalorder %s196, %s210
      %p212 = scmp.eq.s32.totalorder %s39, 0
      %p213 = por %p211, %p212
      %s215 = sadd.s32 %s214, 1
      %p218 = scmp.eq.s32.totalorder %s33, 1
      %p219 = scmp.ne.s32.totalorder %s214, %s216
      %p220 = scmp.eq.s32.totalorder %s33, 0
      %p221 = por %p219, %p220
      %p222 = scmp.ne.s32.totalorder %s214, %s216
      %p223 = scmp.eq.s32.totalorder %s38, 1
      %p224 = por %p222, %p223
      %p225 = scmp.ne.s32.totalorder %s216, %s217
      %p226 = scmp.eq.s32.totalorder %s38, 0
      %p227 = por %p225, %p226
      %p228 = scmp.ne.s32.totalorder %s216, %s217
      %p229 = scmp.eq.s32.totalorder %s39, 1
      %p230 = por %p228, %p229
      %p232 = scmp.ne.s32.totalorder %s217, %s231
      %p233 = scmp.eq.s32.totalorder %s39, 0
      %p234 = por %p232, %p233
      %s236 = sadd.s32 %s235, 1
      %p239 = scmp.eq.s32.totalorder %s33, 1
      %p240 = scmp.ne.s32.totalorder %s235, %s237
      %p241 = scmp.eq.s32.totalorder %s33, 0
      %p242 = por %p240, %p241
      %p243 = scmp.ne.s32.totalorder %s235, %s237
      %p244 = scmp.eq.s32.totalorder %s38, 1
      %p245 = por %p243, %p244
      %p246 = scmp.ne.s32.totalorder %s237, %s238
      %p247 = scmp.eq.s32.totalorder %s38, 0
      %p248 = por %p246, %p247
      %p249 = scmp.ne.s32.totalorder %s237, %s238
      %p250 = scmp.eq.s32.totalorder %s39, 1
      %p251 = por %p249, %p250
      %p253 = scmp.ne.s32.totalorder %s238, %s252
      %p254 = scmp.eq.s32.totalorder %s39, 0
      %p255 = por %p253, %p254
      %s257 = sadd.s32 %s256, 1
      %p260 = scmp.eq.s32.totalorder %s33, 1
      %p261 = scmp.ne.s32.totalorder %s256, %s258
      %p262 = scmp.eq.s32.totalorder %s33, 0
      %p263 = por %p261, %p262
      %p264 = scmp.ne.s32.totalorder %s256, %s258
      %p265 = scmp.eq.s32.totalorder %s38, 1
      %p266 = por %p264, %p265
      %p267 = scmp.ne.s32.totalorder %s258, %s259
      %p268 = scmp.eq.s32.totalorder %s38, 0
      %p269 = por %p267, %p268
      %p270 = scmp.ne.s32.totalorder %s258, %s259
      %p271 = scmp.eq.s32.totalorder %s39, 1
      %p272 = por %p270, %p271
      %p274 = scmp.ne.s32.totalorder %s259, %s273
      %p275 = scmp.eq.s32.totalorder %s39, 0
      %p276 = por %p274, %p275
      %s278 = sadd.s32 %s277, 1
      %p281 = scmp.eq.s32.totalorder %s33, 1
      %p282 = scmp.ne.s32.totalorder %s277, %s279
      %p283 = scmp.eq.s32.totalorder %s33, 0
      %p284 = por %p282, %p283
      %p285 = scmp.ne.s32.totalorder %s277, %s279
      %p286 = scmp.eq.s32.totalorder %s38, 1
      %p287 = por %p285, %p286
      %p288 = scmp.ne.s32.totalorder %s279, %s280
      %p289 = scmp.eq.s32.totalorder %s38, 0
      %p290 = por %p288, %p289
      %p291 = scmp.ne.s32.totalorder %s279, %s280
      %p292 = scmp.eq.s32.totalorder %s39, 1
      %p293 = por %p291, %p292
      %p295 = scmp.ne.s32.totalorder %s280, %s294
      %p296 = scmp.eq.s32.totalorder %s39, 0
      %p297 = por %p295, %p296
      %s299 = sadd.s32 %s298, 1
      %p302 = scmp.eq.s32.totalorder %s33, 1
      %p303 = scmp.ne.s32.totalorder %s298, %s300
      %p304 = scmp.eq.s32.totalorder %s33, 0
      %p305 = por %p303, %p304
      %p306 = scmp.ne.s32.totalorder %s298, %s300
      %p307 = scmp.eq.s32.totalorder %s38, 1
      %p308 = por %p306, %p307
      %p309 = scmp.ne.s32.totalorder %s300, %s301
      %p310 = scmp.eq.s32.totalorder %s38, 0
      %p311 = por %p309, %p310
      %p312 = scmp.ne.s32.totalorder %s300, %s301
      %p313 = scmp.eq.s32.totalorder %s39, 1
      %p314 = por %p312, %p313
      %p316 = scmp.ne.s32.totalorder %s301, %s315
      %p317 = scmp.eq.s32.totalorder %s39, 0
      %p318 = por %p316, %p317
      %s320 = sadd.s32 %s319, 1
      %p323 = scmp.eq.s32.totalorder %s33, 1
      %p324 = scmp.ne.s32.totalorder %s319, %s321
      %p325 = scmp.eq.s32.totalorder %s33, 0
      %p326 = por %p324, %p325
      %p327 = scmp.ne.s32.totalorder %s319, %s321
      %p328 = scmp.eq.s32.totalorder %s38, 1
      %p329 = por %p327, %p328
      %p330 = scmp.ne.s32.totalorder %s321, %s322
      %p331 = scmp.eq.s32.totalorder %s38, 0
      %p332 = por %p330, %p331
      %p333 = scmp.ne.s32.totalorder %s321, %s322
      %p334 = scmp.eq.s32.totalorder %s39, 1
      %p335 = por %p333, %p334
      %p337 = scmp.ne.s32.totalorder %s322, %s336
      %p338 = scmp.eq.s32.totalorder %s39, 0
      %p339 = por %p337, %p338
      %s341 = sadd.s32 %s340, 1
      %p344 = scmp.eq.s32.totalorder %s33, 1
      %p345 = scmp.ne.s32.totalorder %s340, %s342
      %p346 = scmp.eq.s32.totalorder %s33, 0
      %p347 = por %p345, %p346
      %p348 = scmp.ne.s32.totalorder %s340, %s342
      %p349 = scmp.eq.s32.totalorder %s38, 1
      %p350 = por %p348, %p349
      %p351 = scmp.ne.s32.totalorder %s342, %s343
      %p352 = scmp.eq.s32.totalorder %s38, 0
      %p353 = por %p351, %p352
      %p354 = scmp.ne.s32.totalorder %s342, %s343
      %p355 = scmp.eq.s32.totalorder %s39, 1
      %p356 = por %p354, %p355
      %p358 = scmp.ne.s32.totalorder %s343, %s357
      %p359 = scmp.eq.s32.totalorder %s39, 0
      %p360 = por %p358, %p359
      %s362 = sadd.s32 %s361, 1
      %p365 = scmp.eq.s32.totalorder %s33, 1
      %p366 = scmp.ne.s32.totalorder %s361, %s363
      %p367 = scmp.eq.s32.totalorder %s33, 0
      %p368 = por %p366, %p367
      %p369 = scmp.ne.s32.totalorder %s361, %s363
      %p370 = scmp.eq.s32.totalorder %s38, 1
      %p371 = por %p369, %p370
      %p372 = scmp.ne.s32.totalorder %s363, %s364
      %p373 = scmp.eq.s32.totalorder %s38, 0
      %p374 = por %p372, %p373
      %p375 = scmp.ne.s32.totalorder %s363, %s364
      %p376 = scmp.eq.s32.totalorder %s39, 1
      %p377 = por %p375, %p376
      %p379 = scmp.ne.s32.totalorder %s364, %s378
      %p380 = scmp.eq.s32.totalorder %s39, 0
      %p381 = por %p379, %p380
      %s383 = sadd.s32 %s382, 1
      %p386 = scmp.eq.s32.totalorder %s33, 1
      %p387 = scmp.ne.s32.totalorder %s382, %s384
      %p388 = scmp.eq.s32.totalorder %s33, 0
      %p389 = por %p387, %p388
      %p390 = scmp.ne.s32.totalorder %s382, %s384
      %p391 = scmp.eq.s32.totalorder %s38, 1
      %p392 = por %p390, %p391
      %p393 = scmp.ne.s32.totalorder %s384, %s385
      %p394 = scmp.eq.s32.totalorder %s38, 0
      %p395 = por %p393, %p394
      %p396 = scmp.ne.s32.totalorder %s384, %s385
      %p397 = scmp.eq.s32.totalorder %s39, 1
      %p398 = por %p396, %p397
      %p400 = scmp.ne.s32.totalorder %s385, %s399
      %p401 = scmp.eq.s32.totalorder %s39, 0
      %p402 = por %p400, %p401
      %s404 = sadd.s32 %s403, 1
      %p407 = scmp.eq.s32.totalorder %s33, 1
      %p408 = scmp.ne.s32.totalorder %s403, %s405
      %p409 = scmp.eq.s32.totalorder %s33, 0
      %p410 = por %p408, %p409
      %p411 = scmp.ne.s32.totalorder %s403, %s405
      %p412 = scmp.eq.s32.totalorder %s38, 1
      %p413 = por %p411, %p412
      %p414 = scmp.ne.s32.totalorder %s405, %s406
      %p415 = scmp.eq.s32.totalorder %s38, 0
      %p416 = por %p414, %p415
      %p417 = scmp.ne.s32.totalorder %s405, %s406
      %p418 = scmp.eq.s32.totalorder %s39, 1
      %p419 = por %p417, %p418
      %p421 = scmp.ne.s32.totalorder %s406, %s420
      %p422 = scmp.eq.s32.totalorder %s39, 0
      %p423 = por %p421, %p422
      %s424 = ssub.s32 %s33, %s40
      %p425 = scmp.eq.s32.totalorder %s424, 0
      %s427 = sadd.s32 %s426, 1
      %s428 = scalar_select %p425, %s426, %s427
      %p431 = pneg %p425
      %p432 = scmp.eq.s32.totalorder %s33, 1
      %p433 = por %p431, %p432
      %p434 = scmp.ne.s32.totalorder %s426, %s429
      %p435 = scmp.eq.s32.totalorder %s33, 0
      %p436 = por %p434, %p435
      %p437 = scmp.ne.s32.totalorder %s426, %s429
      %p438 = scmp.eq.s32.totalorder %s38, 1
      %p439 = por %p437, %p438
      %p440 = scmp.ne.s32.totalorder %s429, %s430
      %p441 = scmp.eq.s32.totalorder %s38, 0
      %p442 = por %p440, %p441
      %p443 = scmp.ne.s32.totalorder %s429, %s430
      %p444 = scmp.eq.s32.totalorder %s39, 1
      %p445 = por %p443, %p444
      %p447 = scmp.ne.s32.totalorder %s430, %s446
      %p448 = scmp.eq.s32.totalorder %s39, 0
      %p449 = por %p447, %p448
      %p450 = scmp.le.s32.totalorder 1, %s33
      %p451 = scmp.lt.s32.totalorder %s33, 3
      %p452 = pnand %p450, %p451
      %p453 = pneg %p452
      // Predicated region
      $region9: #{minigpt_forward.1} parent=5 // pred_check
        _
      $region10: #{minigpt_forward.1} parent=5 // pred_check_branch
        %455 = sbr.rel (%p452) target = $region12
      $region11: #{minigpt_forward.1} parent=5 // pred_region
        %s456 = ssub.s32 %s33, 1
        // Predicated region
        $region13: #{minigpt_forward.1} parent=11 // pred_check
          %p457 = pneg %p80
        $region14: #{minigpt_forward.1} parent=11 // pred_check_branch
          %459 = sbr.rel (%p457) target = $region16
        $region15: #{minigpt_forward.1} parent=11 // pred_region
          %s461 = ssub.s32 6144, 6144
          %462 = vsyncadd [#allocation3], %s461
          %s463 = sshll.u32 [#allocation2], 4
          %s464 = int_to_ptr.vmem [resolvable:$true] %s463
          %469 = dma.hbm_to_vmem [thread:$0]  %s1, 6144, %s464, [#allocation3], 192, 192, 12
        $region16: #{minigpt_forward.1} parent=11 // pred_fallthru
          _
        // Predicated region
        $region17: #{minigpt_forward.1} parent=11 // pred_check
          %p470 = pneg %p101
        $region18: #{minigpt_forward.1} parent=11 // pred_check_branch
          %472 = sbr.rel (%p470) target = $region20
        $region19: #{minigpt_forward.1} parent=11 // pred_region
          _
        $region20: #{minigpt_forward.1} parent=11 // pred_fallthru
          _
        // Predicated region
        $region21: #{minigpt_forward.1} parent=11 // pred_check
          %p473 = pneg %p122
        $region22: #{minigpt_forward.1} parent=11 // pred_check_branch
          %475 = sbr.rel (%p473) target = $region24
        $region23: #{minigpt_forward.1} parent=11 // pred_region
          %s477 = ssub.s32 2048, 2048
          %478 = vsyncadd [#allocation6], %s477
          %s479 = sshll.u32 [#allocation5], 4
          %s480 = int_to_ptr.vmem [resolvable:$true] %s479
          %485 = dma.hbm_to_vmem [thread:$0]  %s3, 2048, %s480, [#allocation6], 64, 64, 4
        $region24: #{minigpt_forward.1} parent=11 // pred_fallthru
          _
        // Predicated region
        $region25: #{minigpt_forward.1} parent=11 // pred_check
          %p486 = pneg %p143
        $region26: #{minigpt_forward.1} parent=11 // pred_check_branch
          %488 = sbr.rel (%p486) target = $region28
        $region27: #{minigpt_forward.1} parent=11 // pred_region
          _
        $region28: #{minigpt_forward.1} parent=11 // pred_fallthru
          _
        // Predicated region
        $region29: #{minigpt_forward.1} parent=11 // pred_check
          %p489 = pneg %p164
        $region30: #{minigpt_forward.1} parent=11 // pred_check_branch
          %491 = sbr.rel (%p489) target = $region32
        $region31: #{minigpt_forward.1} parent=11 // pred_region
          _
        $region32: #{minigpt_forward.1} parent=11 // pred_fallthru
          _
        // Predicated region
        $region33: #{minigpt_forward.1} parent=11 // pred_check
          %p492 = pneg %p185
        $region34: #{minigpt_forward.1} parent=11 // pred_check_branch
          %494 = sbr.rel (%p492) target = $region36
        $region35: #{minigpt_forward.1} parent=11 // pred_region
          _
        $region36: #{minigpt_forward.1} parent=11 // pred_fallthru
          _
        // Predicated region
        $region37: #{minigpt_forward.1} parent=11 // pred_check
          %p495 = pneg %p206
        $region38: #{minigpt_forward.1} parent=11 // pred_check_branch
          %497 = sbr.rel (%p495) target = $region40
        $region39: #{minigpt_forward.1} parent=11 // pred_region
          %s499 = ssub.s32 32, 32
          %500 = vsyncadd [#allocation6], %s499
          %s501 = sshll.u32 [#allocation7], 4
          %s502 = int_to_ptr.vmem [resolvable:$true] %s501
          %507 = dma.hbm_to_vmem [thread:$0]  %s7, 32, %s502, [#allocation6], 16, 16, 1
        $region40: #{minigpt_forward.1} parent=11 // pred_fallthru
          _
        // Predicated region
        $region41: #{minigpt_forward.1} parent=11 // pred_check
          %p508 = pneg %p227
        $region42: #{minigpt_forward.1} parent=11 // pred_check_branch
          %510 = sbr.rel (%p508) target = $region44
        $region43: #{minigpt_forward.1} parent=11 // pred_region
          %s512 = ssub.s32 32, 32
          %513 = vsyncadd [#allocation9], %s512
          %s514 = sshll.u32 [#allocation8], 4
          %s515 = int_to_ptr.vmem [resolvable:$true] %s514
          %520 = dma.hbm_to_vmem [thread:$0]  %s8, 32, %s515, [#allocation9], 16, 16, 1
        $region44: #{minigpt_forward.1} parent=11 // pred_fallthru
          _
        // Predicated region
        $region45: #{minigpt_forward.1} parent=11 // pred_check
          %p521 = pneg %p248
        $region46: #{minigpt_forward.1} parent=11 // pred_check_branch
          %523 = sbr.rel (%p521) target = $region48
        $region47: #{minigpt_forward.1} parent=11 // pred_region
          %s525 = ssub.s32 32, 32
          %526 = vsyncadd [#allocation9], %s525
          %s527 = sshll.u32 [#allocation10], 4
          %s528 = int_to_ptr.vmem [resolvable:$true] %s527
          %533 = dma.hbm_to_vmem [thread:$0]  %s9, 32, %s528, [#allocation9], 16, 16, 1
        $region48: #{minigpt_forward.1} parent=11 // pred_fallthru
          _
        // Predicated region
        $region49: #{minigpt_forward.1} parent=11 // pred_check
          %p534 = pneg %p269
        $region50: #{minigpt_forward.1} parent=11 // pred_check_branch
          %536 = sbr.rel (%p534) target = $region52
        $region51: #{minigpt_forward.1} parent=11 // pred_region
          %s538 = ssub.s32 32, 32
          %539 = vsyncadd [#allocation12], %s538
          %s540 = sshll.u32 [#allocation11], 4
          %s541 = int_to_ptr.vmem [resolvable:$true] %s540
          %546 = dma.hbm_to_vmem [thread:$0]  %s10, 32, %s541, [#allocation12], 16, 16, 1
        $region52: #{minigpt_forward.1} parent=11 // pred_fallthru
          _
        // Predicated region
        $region53: #{minigpt_forward.1} parent=11 // pred_check
          %p547 = pneg %p290
        $region54: #{minigpt_forward.1} parent=11 // pred_check_branch
          %549 = sbr.rel (%p547) target = $region56
        $region55: #{minigpt_forward.1} parent=11 // pred_region
          %s551 = ssub.s32 32, 32
          %552 = vsyncadd [#allocation12], %s551
          %s553 = sshll.u32 [#allocation13], 4
          %s554 = int_to_ptr.vmem [resolvable:$true] %s553
          %559 = dma.hbm_to_vmem [thread:$0]  %s11, 32, %s554, [#allocation12], 16, 16, 1
        $region56: #{minigpt_forward.1} parent=11 // pred_fallthru
          _
        // Predicated region
        $region57: #{minigpt_forward.1} parent=11 // pred_check
          %p560 = pneg %p311
        $region58: #{minigpt_forward.1} parent=11 // pred_check_branch
          %562 = sbr.rel (%p560) target = $region60
        $region59: #{minigpt_forward.1} parent=11 // pred_region
          _
        $region60: #{minigpt_forward.1} parent=11 // pred_fallthru
          _
        // Predicated region
        $region61: #{minigpt_forward.1} parent=11 // pred_check
          %p563 = pneg %p332
        $region62: #{minigpt_forward.1} parent=11 // pred_check_branch
          %565 = sbr.rel (%p563) target = $region64
        $region63: #{minigpt_forward.1} parent=11 // pred_region
          _
        $region64: #{minigpt_forward.1} parent=11 // pred_fallthru
          _
        // Predicated region
        $region65: #{minigpt_forward.1} parent=11 // pred_check
          %p566 = pneg %p353
        $region66: #{minigpt_forward.1} parent=11 // pred_check_branch
          %568 = sbr.rel (%p566) target = $region68
        $region67: #{minigpt_forward.1} parent=11 // pred_region
          %s570 = ssub.s32 4096, 4096
          %571 = vsyncadd [#allocation15], %s570
          %s572 = sshll.u32 [#allocation14], 4
          %s573 = int_to_ptr.vmem [resolvable:$true] %s572
          %578 = dma.hbm_to_vmem [thread:$0]  %s14, 4096, %s573, [#allocation15], 64, 64, 4
        $region68: #{minigpt_forward.1} parent=11 // pred_fallthru
          _
        // Predicated region
        $region69: #{minigpt_forward.1} parent=11 // pred_check
          %p579 = pneg %p374
        $region70: #{minigpt_forward.1} parent=11 // pred_check_branch
          %581 = sbr.rel (%p579) target = $region72
        $region71: #{minigpt_forward.1} parent=11 // pred_region
          %s583 = ssub.s32 32, 32
          %584 = vsyncadd [#allocation15], %s583
          %s585 = sshll.u32 [#allocation16], 4
          %s586 = int_to_ptr.vmem [resolvable:$true] %s585
          %591 = dma.hbm_to_vmem [thread:$0]  %s15, 32, %s586, [#allocation15], 16, 16, 1
        $region72: #{minigpt_forward.1} parent=11 // pred_fallthru
          _
        // Predicated region
        $region73: #{minigpt_forward.1} parent=11 // pred_check
          %p592 = pneg %p395
        $region74: #{minigpt_forward.1} parent=11 // pred_check_branch
          %594 = sbr.rel (%p592) target = $region76
        $region75: #{minigpt_forward.1} parent=11 // pred_region
          %s596 = ssub.s32 4096, 4096
          %597 = vsyncadd [#allocation18], %s596
          %s598 = sshll.u32 [#allocation17], 4
          %s599 = int_to_ptr.vmem [resolvable:$true] %s598
          %604 = dma.hbm_to_vmem [thread:$0]  %s16, 4096, %s599, [#allocation18], 256, 256, 16
        $region76: #{minigpt_forward.1} parent=11 // pred_fallthru
          _
        // Predicated region
        $region77: #{minigpt_forward.1} parent=11 // pred_check
          %p605 = pneg %p416
        $region78: #{minigpt_forward.1} parent=11 // pred_check_branch
          %607 = sbr.rel (%p605) target = $region80
        $region79: #{minigpt_forward.1} parent=11 // pred_region
          _
        $region80: #{minigpt_forward.1} parent=11 // pred_fallthru
          _
      $region12: #{minigpt_forward.1} parent=5 // pred_fallthru
        _
      %p608 = scmp.lt.s32.totalorder %s33, 2
      // Predicated region
      $region81: #{minigpt_forward.1} parent=5 // pred_check
        %p609 = pneg %p608
      $region82: #{minigpt_forward.1} parent=5 // pred_check_branch
        %611 = sbr.rel (%p609) target = $region84
      $region83: #{minigpt_forward.1} parent=5 // pred_region
        // Predicated region
        $region85: #{minigpt_forward.1} parent=83 // pred_check
          %p612 = pneg %p53
        $region86: #{minigpt_forward.1} parent=83 // pred_check_branch
          %614 = sbr.rel (%p612) target = $region88
        $region87: #{minigpt_forward.1} parent=83 // pred_region
          %p615 = scmp.lt.s32.totalorder %s33, 1
          %s616 = scalar_select %p615, %s33, 1
          %s617 = smul.addr %s616, 8
          %s618 = scalar_lea.vmem %s0, %s617
        $region88: #{minigpt_forward.1} parent=83 // pred_fallthru
          _
      $region84: #{minigpt_forward.1} parent=5 // pred_fallthru
        _
      %p619 = scmp.le.s32.totalorder 1, %s33
      %p620 = scmp.lt.s32.totalorder %s33, 3
      %p621 = pnand %p619, %p620
      %p622 = pneg %p621
      // Predicated region
      $region89: #{minigpt_forward.1} parent=5 // pred_check
        _
      $region90: #{minigpt_forward.1} parent=5 // pred_check_branch
        %624 = sbr.rel (%p621) target = $region92
      $region91: #{minigpt_forward.1} parent=5 // pred_region
        %s625 = ssub.s32 %s33, 1
        // Predicated region
        $region93: #{minigpt_forward.1} parent=91 // pred_check
          %p626 = pneg %p80
        $region94: #{minigpt_forward.1} parent=91 // pred_check_branch
          %628 = sbr.rel (%p626) target = $region96
        $region95: #{minigpt_forward.1} parent=91 // pred_region
          %629 = dma.done [#allocation3], 6144
        $region96: #{minigpt_forward.1} parent=91 // pred_fallthru
          _
        // Predicated region
        $region97: #{minigpt_forward.1} parent=91 // pred_check
          %p630 = pneg %p122
        $region98: #{minigpt_forward.1} parent=91 // pred_check_branch
          %632 = sbr.rel (%p630) target = $region100
        $region99: #{minigpt_forward.1} parent=91 // pred_region
          %633 = dma.done [#allocation6], 2048
        $region100: #{minigpt_forward.1} parent=91 // pred_fallthru
          _
        // Predicated region
        $region101: #{minigpt_forward.1} parent=91 // pred_check
          %p634 = pneg %p206
        $region102: #{minigpt_forward.1} parent=91 // pred_check_branch
          %636 = sbr.rel (%p634) target = $region104
        $region103: #{minigpt_forward.1} parent=91 // pred_region
          %637 = dma.done [#allocation6], 32
        $region104: #{minigpt_forward.1} parent=91 // pred_fallthru
          _
        // Predicated region
        $region105: #{minigpt_forward.1} parent=91 // pred_check
          %p638 = pneg %p227
        $region106: #{minigpt_forward.1} parent=91 // pred_check_branch
          %640 = sbr.rel (%p638) target = $region108
        $region107: #{minigpt_forward.1} parent=91 // pred_region
          %641 = dma.done [#allocation9], 32
        $region108: #{minigpt_forward.1} parent=91 // pred_fallthru
          _
        // Predicated region
        $region109: #{minigpt_forward.1} parent=91 // pred_check
          %p642 = pneg %p248
        $region110: #{minigpt_forward.1} parent=91 // pred_check_branch
          %644 = sbr.rel (%p642) target = $region112
        $region111: #{minigpt_forward.1} parent=91 // pred_region
          %645 = dma.done [#allocation9], 32
        $region112: #{minigpt_forward.1} parent=91 // pred_fallthru
          _
        // Predicated region
        $region113: #{minigpt_forward.1} parent=91 // pred_check
          %p646 = pneg %p269
        $region114: #{minigpt_forward.1} parent=91 // pred_check_branch
          %648 = sbr.rel (%p646) target = $region116
        $region115: #{minigpt_forward.1} parent=91 // pred_region
          %649 = dma.done [#allocation12], 32
        $region116: #{minigpt_forward.1} parent=91 // pred_fallthru
          _
        // Predicated region
        $region117: #{minigpt_forward.1} parent=91 // pred_check
          %p650 = pneg %p290
        $region118: #{minigpt_forward.1} parent=91 // pred_check_branch
          %652 = sbr.rel (%p650) target = $region120
        $region119: #{minigpt_forward.1} parent=91 // pred_region
          %653 = dma.done [#allocation12], 32
        $region120: #{minigpt_forward.1} parent=91 // pred_fallthru
          _
        // Predicated region
        $region121: #{minigpt_forward.1} parent=91 // pred_check
          %p654 = pneg %p353
        $region122: #{minigpt_forward.1} parent=91 // pred_check_branch
          %656 = sbr.rel (%p654) target = $region124
        $region123: #{minigpt_forward.1} parent=91 // pred_region
          %657 = dma.done [#allocation15], 4096
        $region124: #{minigpt_forward.1} parent=91 // pred_fallthru
          _
        // Predicated region
        $region125: #{minigpt_forward.1} parent=91 // pred_check
          %p658 = pneg %p374
        $region126: #{minigpt_forward.1} parent=91 // pred_check_branch
          %660 = sbr.rel (%p658) target = $region128
        $region127: #{minigpt_forward.1} parent=91 // pred_region
          %661 = dma.done [#allocation15], 32
        $region128: #{minigpt_forward.1} parent=91 // pred_fallthru
          _
        // Predicated region
        $region129: #{minigpt_forward.1} parent=91 // pred_check
          %p662 = pneg %p395
        $region130: #{minigpt_forward.1} parent=91 // pred_check_branch
          %664 = sbr.rel (%p662) target = $region132
        $region131: #{minigpt_forward.1} parent=91 // pred_region
          %665 = dma.done [#allocation18], 4096
        $region132: #{minigpt_forward.1} parent=91 // pred_fallthru
          _
        %p666 = scmp.lt.s32.totalorder %s38, 1
        %s667 = scalar_select %p666, %s38, 1
        %s668 = smul.addr %s667, 8
        %s669 = scalar_lea.vmem %s0, %s668
        %p670 = pneg %p59
        %p671 = pneg %p56
        %p672 = pneg %p80
        %p673 = pneg %p77
        %p674 = pneg %p101
        %p675 = pneg %p98
        %p676 = pneg %p122
        %p677 = pneg %p119
        %p678 = pneg %p143
        %p679 = pneg %p140
        %p680 = pneg %p164
        %p681 = pneg %p161
        %p682 = pneg %p185
        %p683 = pneg %p182
        %p684 = pneg %p206
        %p685 = pneg %p203
        %p686 = pneg %p227
        %p687 = pneg %p224
        %p688 = pneg %p248
        %p689 = pneg %p245
        %p690 = pneg %p269
        %p691 = pneg %p266
        %p692 = pneg %p290
        %p693 = pneg %p287
        %p694 = pneg %p311
        %p695 = pneg %p308
        %p696 = pneg %p332
        %p697 = pneg %p329
        %p698 = pneg %p353
        %p699 = pneg %p350
        %p700 = pneg %p374
        %p701 = pneg %p371
        %p702 = pneg %p395
        %p703 = pneg %p392
        %p704 = pneg %p416
        %p705 = pneg %p413
        %p706 = pneg %p442
        %p707 = pneg %p439
        %s708 = sand.u32 %s429, 1
        %s709 = scalar_lea.sflag [#allocation4], %s708
        %s710 = sand.u32 %s429, 1
        %s711 = smul.addr %s710, 32
        %s712 = scalar_lea.vmem [#allocation19], %s711
        %p713 = scmp.lt.s32.totalorder %s38, 1
        %s714 = scalar_select %p713, %s38, 1
        %s715 = smul.addr %s714, 8
        %s716 = scalar_lea.vmem %s0, %s715
        %v718 = vld [vmem:[%s716] sm:$0xff]
        %v719 = vlaneseq
        %v720 = vshrl.u32 %v719, 7
        %v721 = vlaneseq
        %v722 = vand.u32 %v721, 127
        %vm723 = vcmp.gt.s32.totalorder %v722, %v720
        %v724 = vsel %vm723, -1e+09, 0.0
        %v725 = vld [vmem:[#allocation2] sm:$0xff]
        %v726 = vld [vmem:[#allocation2 + $0x8] sm:$0xf]
        %v727 = vld [vmem:[#allocation2 + $0xc] sm:$0xff]
        %v728 = vld [vmem:[#allocation2 + $0x14] sm:$0xf]
        %v729 = vld [vmem:[#allocation2 + $0x18] sm:$0xff]
        %v730 = vld [vmem:[#allocation2 + $0x20] sm:$0xf]
        %v731 = vld [vmem:[#allocation2 + $0x24] sm:$0xff]
        %v732 = vld [vmem:[#allocation2 + $0x2c] sm:$0xf]
        %v733 = vld [vmem:[#allocation2 + $0x30] sm:$0xff]
        %v734 = vld [vmem:[#allocation2 + $0x38] sm:$0xf]
        %v735 = vld [vmem:[#allocation2 + $0x3c] sm:$0xff]
        %v736 = vld [vmem:[#allocation2 + $0x44] sm:$0xf]
        %v737 = vld [vmem:[#allocation2 + $0x48] sm:$0xff]
        %v738 = vld [vmem:[#allocation2 + $0x50] sm:$0xf]
        %v739 = vld [vmem:[#allocation2 + $0x54] sm:$0xff]
        %v740 = vld [vmem:[#allocation2 + $0x5c] sm:$0xf]
        %v741 = vld [vmem:[#allocation2 + $0x60] sm:$0xff]
        %v742 = vld [vmem:[#allocation2 + $0x68] sm:$0xf]
        %v743 = vld [vmem:[#allocation2 + $0x6c] sm:$0xff]
        %v744 = vld [vmem:[#allocation2 + $0x74] sm:$0xf]
        %v745 = vld [vmem:[#allocation2 + $0x78] sm:$0xff]
        %v746 = vld [vmem:[#allocation2 + $0x80] sm:$0xf]
        %v747 = vld [vmem:[#allocation2 + $0x84] sm:$0xff]
        %v748 = vld [vmem:[#allocation2 + $0x8c] sm:$0xf]
        %v749 = vld [vmem:[#allocation2 + $0x90] sm:$0xff]
        %v750 = vld [vmem:[#allocation2 + $0x98] sm:$0xf]
        %v751 = vld [vmem:[#allocation2 + $0x9c] sm:$0xff]
        %v752 = vld [vmem:[#allocation2 + $0xa4] sm:$0xf]
        %v753 = vld [vmem:[#allocation2 + $0xa8] sm:$0xff]
        %v754 = vld [vmem:[#allocation2 + $0xb0] sm:$0xf]
        %v755 = vld [vmem:[#allocation2 + $0xb4] sm:$0xff]
        %v756 = vld [vmem:[#allocation2 + $0xbc] sm:$0xf]
        %v757 = vpack.c.bf16 %v718, %v718
        %v758 = vld [vmem:[%s2] sm:$0x7]
        %v760 = vlaneseq
        %v761 = vshrl.u32 %v760, 7
        %v762 = vsub.s32 0, %v761
        %v763 = vrot.slane %v758, %v762
        %v764 = vlaneseq
        %v765 = vshrl.u32 %v764, 7
        %v766 = vsub.s32 1, %v765
        %v767 = vrot.slane %v758, %v766
        %v768 = vlaneseq
        %v769 = vshrl.u32 %v768, 7
        %v770 = vsub.s32 2, %v769
        %v771 = vrot.slane %v758, %v770
        %v807 = vunpack.c.l.b16 %v725
        %v808 = vunpack.c.h.b16 %v725
        %v809 = vunpack.c.l.b16 %v726
        %v810 = vunpack.c.l.b16 %v727
        %v811 = vunpack.c.h.b16 %v727
        %v812 = vunpack.c.l.b16 %v728
        %v813 = vunpack.c.l.b16 %v729
        %v814 = vunpack.c.h.b16 %v729
        %v815 = vunpack.c.l.b16 %v730
        %v816 = vunpack.c.l.b16 %v731
        %v817 = vunpack.c.h.b16 %v731
        %v818 = vunpack.c.l.b16 %v732
        %v819 = vunpack.c.l.b16 %v733
        %v820 = vunpack.c.h.b16 %v733
        %v821 = vunpack.c.l.b16 %v734
        %v822 = vunpack.c.l.b16 %v735
        %v823 = vunpack.c.h.b16 %v735
        %v824 = vunpack.c.l.b16 %v736
        %v825 = vunpack.c.l.b16 %v737
        %v826 = vunpack.c.h.b16 %v737
        %v827 = vunpack.c.l.b16 %v738
        %v828 = vunpack.c.l.b16 %v739
        %v829 = vunpack.c.h.b16 %v739
        %v830 = vunpack.c.l.b16 %v740
        %v831 = vunpack.c.l.b16 %v741
        %v832 = vunpack.c.h.b16 %v741
        %v833 = vunpack.c.l.b16 %v742
        %v834 = vunpack.c.l.b16 %v743
        %v835 = vunpack.c.h.b16 %v743
        %v836 = vunpack.c.l.b16 %v744
        %v837 = vunpack.c.l.b16 %v745
        %v838 = vunpack.c.h.b16 %v745
        %v839 = vunpack.c.l.b16 %v746
        %v840 = vunpack.c.l.b16 %v747
        %v841 = vunpack.c.h.b16 %v747
        %v842 = vunpack.c.l.b16 %v748
        %v843 = vunpack.c.l.b16 %v749
        %v844 = vunpack.c.h.b16 %v749
        %v845 = vunpack.c.l.b16 %v750
        %v846 = vunpack.c.l.b16 %v751
        %v847 = vunpack.c.h.b16 %v751
        %v848 = vunpack.c.l.b16 %v752
        %v849 = vunpack.c.l.b16 %v753
        %v850 = vunpack.c.h.b16 %v753
        %v851 = vunpack.c.l.b16 %v754
        %v852 = vunpack.c.l.b16 %v755
        %v853 = vunpack.c.h.b16 %v755
        %v854 = vunpack.c.l.b16 %v756
        %v855 = vpack.c.b16 %v810, %v807
        %v856 = vpack.c.b16 %v811, %v808
        %v857 = vpack.c.b16 %v812, %v809
        %v858 = vpack.c.b16 %v816, %v813
        %v859 = vpack.c.b16 %v817, %v814
        %v860 = vpack.c.b16 %v818, %v815
        %v861 = vpack.c.b16 %v822, %v819
        %v862 = vpack.c.b16 %v823, %v820
        %v863 = vpack.c.b16 %v824, %v821
        %v864 = vpack.c.b16 %v828, %v825
        %v865 = vpack.c.b16 %v829, %v826
        %v866 = vpack.c.b16 %v830, %v827
        %v867 = vpack.c.b16 %v834, %v831
        %v868 = vpack.c.b16 %v835, %v832
        %v869 = vpack.c.b16 %v836, %v833
        %v870 = vpack.c.b16 %v840, %v837
        %v871 = vpack.c.b16 %v841, %v838
        %v872 = vpack.c.b16 %v842, %v839
        %v873 = vpack.c.b16 %v846, %v843
        %v874 = vpack.c.b16 %v847, %v844
        %v875 = vpack.c.b16 %v848, %v845
        %v876 = vpack.c.b16 %v852, %v849
        %v877 = vpack.c.b16 %v853, %v850
        %v878 = vpack.c.b16 %v854, %v851
        %903 = vmatprep.subr.bf16.mxu0 %v856
        %904 = vmatpush1.bf16.msra.mxu0 %v855
        %905 = vmatprep.subr.bf16.mxu0 %v859
        %906 = vmatpush1.bf16.msra.mxu0 %v858
        %907 = vmatprep.subr.bf16.mxu0 %v862
        %908 = vmatpush1.bf16.msra.mxu0 %v861
        %909 = vmatprep.subr.bf16.mxu0 %v865
        %910 = vmatpush1.bf16.msra.mxu0 %v864
        %911 = vmatprep.subr.bf16.mxu0 %v868
        %912 = vmatpush1.bf16.msra.mxu0 %v867
        %913 = vmatprep.subr.bf16.mxu0 %v871
        %914 = vmatpush1.bf16.msra.mxu0 %v870
        %915 = vmatprep.subr.bf16.mxu0 %v874
        %916 = vmatpush1.bf16.msra.mxu0 %v873
        %917 = vmatprep.subr.bf16.mxu0 %v877
        %918 = vmatpush1.bf16.msra.mxu0 %v876
        %919 = vmatprep.subr.bf16.mxu0 0
        %920 = vmatpush1.bf16.msra.mxu0 0
        %921 = vmatprep.subr.bf16.mxu0 0
        %922 = vmatpush1.bf16.msra.mxu0 0
        %923 = vmatprep.subr.bf16.mxu0 0
        %924 = vmatpush1.bf16.msra.mxu0 0
        %925 = vmatprep.subr.bf16.mxu0 0
        %926 = vmatpush1.bf16.msra.mxu0 0
        %927 = vmatprep.subr.bf16.mxu0 0
        %928 = vmatpush1.bf16.msra.mxu0 0
        %929 = vmatprep.subr.bf16.mxu0 0
        %930 = vmatpush1.bf16.msra.mxu0 0
        %931 = vmatprep.subr.bf16.mxu0 0
        %932 = vmatpush1.bf16.msra.mxu0 0
        %933 = vmatprep.subr.bf16.mxu0 0
        %934 = vmatpush1.bf16.msra.mxu0 0
        %935 = vmatprep.mubr.bf16.mxu0 0
        %936 = vmatmul.mubr.bf16.gmra.mrb[0].mxu0 %v757
        %v937 = vpop.f32.mrb[0].mxu0
        %v938 = vadd.f32 %v763, %v937
        %v939 = vpop.f32.mrb[0].mxu0
        %v940 = vadd.f32 %v767, %v939
        %v941 = vpop.f32.mrb[0].mxu0
        %v942 = vpop.f32.mrb[0].mxu0
        %943 = vdwg.mxu0
        %944 = vmatprep.subr.bf16.mxu0 0
        %945 = vmatpush1.bf16.msra.mxu0 %v857
        %946 = vmatprep.subr.bf16.mxu0 0
        %947 = vmatpush1.bf16.msra.mxu0 %v860
        %948 = vmatprep.subr.bf16.mxu0 0
        %949 = vmatpush1.bf16.msra.mxu0 %v863
        %950 = vmatprep.subr.bf16.mxu0 0
        %951 = vmatpush1.bf16.msra.mxu0 %v866
        %952 = vmatprep.subr.bf16.mxu0 0
        %953 = vmatpush1.bf16.msra.mxu0 %v869
        %954 = vmatprep.subr.bf16.mxu0 0
        %955 = vmatpush1.bf16.msra.mxu0 %v872
        %956 = vmatprep.subr.bf16.mxu0 0
        %957 = vmatpush1.bf16.msra.mxu0 %v875
        %958 = vmatprep.subr.bf16.mxu0 0
        %959 = vmatpush1.bf16.msra.mxu0 %v878
        %960 = vmatprep.subr.bf16.mxu0 0
        %961 = vmatpush1.bf16.msra.mxu0 0
        %962 = vmatprep.subr.bf16.mxu0 0
        %963 = vmatpush1.bf16.msra.mxu0 0
        %964 = vmatprep.subr.bf16.mxu0 0
        %965 = vmatpush1.bf16.msra.mxu0 0
        %966 = vmatprep.subr.bf16.mxu0 0
        %967 = vmatpush1.bf16.msra.mxu0 0
        %968 = vmatprep.subr.bf16.mxu0 0
        %969 = vmatpush1.bf16.msra.mxu0 0
        %970 = vmatprep.subr.bf16.mxu0 0
        %971 = vmatpush1.bf16.msra.mxu0 0
        %972 = vmatprep.subr.bf16.mxu0 0
        %973 = vmatpush1.bf16.msra.mxu0 0
        %974 = vmatprep.subr.bf16.mxu0 0
        %975 = vmatpush1.bf16.msra.mxu0 0
        %976 = vmatprep.mubr.bf16.mxu0 0
        %977 = vmatmul.mubr.bf16.gmra.mrb[0].mxu0 %v757
        %v978 = vpop.f32.mrb[0].mxu0
        %v979 = vadd.f32 %v771, %v978
        %v980 = vpop.f32.mrb[0].mxu0
        %v981 = vpop.f32.mrb[0].mxu0
        %v982 = vpop.f32.mrb[0].mxu0
        %983 = vdwg.mxu0
        %v984 = vpack.c.bf16 %v938, %v938
        %v985 = vpack.c.bf16 %v940, %v940
        %vm986 = vcmask 261120
        %v988 = vsel %vm986, %v984, 0
        %v991 = vsel %vm986, %v985, 0
        %993 = vmatprep.subr.bf16.mxu0 0
        %994 = vmatpush1.bf16.xpose.msra.mxu0 %v991
        %995 = vmatprep.subr.bf16.mxu0 0
        %996 = vmatpush1.bf16.xpose.msra.mxu0 0
        %997 = vmatprep.subr.bf16.mxu0 0
        %998 = vmatpush1.bf16.xpose.msra.mxu0 0
        %999 = vmatprep.subr.bf16.mxu0 0
        %1000 = vmatpush1.bf16.xpose.msra.mxu0 0
        %1001 = vmatprep.subr.bf16.mxu0 0
        %1002 = vmatpush1.bf16.xpose.msra.mxu0 0
        %1003 = vmatprep.subr.bf16.mxu0 0
        %1004 = vmatpush1.bf16.xpose.msra.mxu0 0
        %1005 = vmatprep.subr.bf16.mxu0 0
        %1006 = vmatpush1.bf16.xpose.msra.mxu0 0
        %1007 = vmatprep.subr.bf16.mxu0 0
        %1008 = vmatpush1.bf16.xpose.msra.mxu0 0
        %1009 = vmatprep.subr.bf16.mxu0 0
        %1010 = vmatpush1.bf16.xpose.msra.mxu0 0
        %1011 = vmatprep.subr.bf16.mxu0 0
        %1012 = vmatpush1.bf16.xpose.msra.mxu0 0
        %1013 = vmatprep.subr.bf16.mxu0 0
        %1014 = vmatpush1.bf16.xpose.msra.mxu0 0
        %1015 = vmatprep.subr.bf16.mxu0 0
        %1016 = vmatpush1.bf16.xpose.msra.mxu0 0
        %1017 = vmatprep.subr.bf16.mxu0 0
        %1018 = vmatpush1.bf16.xpose.msra.mxu0 0
        %1019 = vmatprep.subr.bf16.mxu0 0
        %1020 = vmatpush1.bf16.xpose.msra.mxu0 0
        %1021 = vmatprep.subr.bf16.mxu0 0
        %1022 = vmatpush1.bf16.xpose.msra.mxu0 0
        %1023 = vmatprep.subr.bf16.mxu0 0
        %1024 = vmatpush1.bf16.xpose.msra.mxu0 0
        %1025 = vmatprep.mubr.bf16.mxu0 0
        %1026 = vmatmul.mubr.bf16.gmra.mrb[0].mxu0 %v988
        %v1027 = vpop.f32.mrb[0].mxu0
        %v1028 = vadd.f32 0.0, %v1027
        %v1029 = vpop.f32.mrb[0].mxu0
        %v1030 = vpop.f32.mrb[0].mxu0
        %v1031 = vpop.f32.mrb[0].mxu0
        %1032 = vdwg.mxu0
        %v1033 = vmul.f32 %v1028, 0.17677669
        %v1034 = vadd.f32 %v1033, %v724
        %vm1035 = vcmask 64512
        %v1036 = vsel %vm1035, %v1034, -inf
        %1037 = vmax.xlane.f32.xlu0 %v1036
        %v1038 = vpop.xlane.xlu0 %1037
        %v1039 = vsub.f32 %v1034, %v1038
        %v1040 = vmul.f32 %v1039, 1.442695
        %v1041 = vpow.pop %v1040
        %v1042 = vsel %vm1035, %v1041, 0.0
        %1043 = vadd.xlane.f32.xlu0 %v1042
        %v1044 = vpop.xlane.xlu0 %1043
        %v1045 = vrcp.pop %v1044
        %v1046 = vmul.f32 %v1041, %v1045
        %v1047 = vpack.c.bf16 %v1046, %v1046
        %v1048 = vpack.c.bf16 %v979, %v979
        %v1050 = vsel %vm1035, %v1047, 0
        %vm1052 = vcmask 1043456
        %v1054 = vsel %vm1052, %v1048, 0
        %1056 = vmatprep.subr.bf16.mxu0 0
        %1057 = vmatpush1.bf16.msra.mxu0 %v1054
        %1058 = vmatprep.subr.bf16.mxu0 0
        %1059 = vmatpush1.bf16.msra.mxu0 0
        %1060 = vmatprep.subr.bf16.mxu0 0
        %1061 = vmatpush1.bf16.msra.mxu0 0
        %1062 = vmatprep.subr.bf16.mxu0 0
        %1063 = vmatpush1.bf16.msra.mxu0 0
        %1064 = vmatprep.subr.bf16.mxu0 0
        %1065 = vmatpush1.bf16.msra.mxu0 0
        %1066 = vmatprep.subr.bf16.mxu0 0
        %1067 = vmatpush1.bf16.msra.mxu0 0
        %1068 = vmatprep.subr.bf16.mxu0 0
        %1069 = vmatpush1.bf16.msra.mxu0 0
        %1070 = vmatprep.subr.bf16.mxu0 0
        %1071 = vmatpush1.bf16.msra.mxu0 0
        %1072 = vmatprep.subr.bf16.mxu0 0
        %1073 = vmatpush1.bf16.msra.mxu0 0
        %1074 = vmatprep.subr.bf16.mxu0 0
        %1075 = vmatpush1.bf16.msra.mxu0 0
        %1076 = vmatprep.subr.bf16.mxu0 0
        %1077 = vmatpush1.bf16.msra.mxu0 0
        %1078 = vmatprep.subr.bf16.mxu0 0
        %1079 = vmatpush1.bf16.msra.mxu0 0
        %1080 = vmatprep.subr.bf16.mxu0 0
        %1081 = vmatpush1.bf16.msra.mxu0 0
        %1082 = vmatprep.subr.bf16.mxu0 0
        %1083 = vmatpush1.bf16.msra.mxu0 0
        %1084 = vmatprep.subr.bf16.mxu0 0
        %1085 = vmatpush1.bf16.msra.mxu0 0
        %1086 = vmatprep.subr.bf16.mxu0 0
        %1087 = vmatpush1.bf16.msra.mxu0 0
        %1088 = vmatprep.mubr.bf16.mxu0 0
        %1089 = vmatmul.mubr.bf16.gmra.mrb[0].mxu0 %v1050
        %v1090 = vpop.f32.mrb[0].mxu0
        %v1091 = vadd.f32 0.0, %v1090
        %v1092 = vpop.f32.mrb[0].mxu0
        %v1093 = vpop.f32.mrb[0].mxu0
        %v1094 = vpop.f32.mrb[0].mxu0
        %1095 = vdwg.mxu0
        %1097 = vrot.lane.b32.xlu0 %v984, 96
        %v1098 = vpop.permute.xlu0 %1097
        %1100 = vrot.lane.b32.xlu0 %v985, 96
        %v1101 = vpop.permute.xlu0 %1100
        %v1103 = vsel %vm986, %v1098, 0
        %v1106 = vsel %vm986, %v1101, 0
        %1108 = vmatprep.subr.bf16.mxu0 0
        %1109 = vmatpush1.bf16.xpose.msra.mxu0 %v1106
        %1110 = vmatprep.subr.bf16.mxu0 0
        %1111 = vmatpush1.bf16.xpose.msra.mxu0 0
        %1112 = vmatprep.subr.bf16.mxu0 0
        %1113 = vmatpush1.bf16.xpose.msra.mxu0 0
        %1114 = vmatprep.subr.bf16.mxu0 0
        %1115 = vmatpush1.bf16.xpose.msra.mxu0 0
        %1116 = vmatprep.subr.bf16.mxu0 0
        %1117 = vmatpush1.bf16.xpose.msra.mxu0 0
        %1118 = vmatprep.subr.bf16.mxu0 0
        %1119 = vmatpush1.bf16.xpose.msra.mxu0 0
        %1120 = vmatprep.subr.bf16.mxu0 0
        %1121 = vmatpush1.bf16.xpose.msra.mxu0 0
        %1122 = vmatprep.subr.bf16.mxu0 0
        %1123 = vmatpush1.bf16.xpose.msra.mxu0 0
        %1124 = vmatprep.subr.bf16.mxu0 0
        %1125 = vmatpush1.bf16.xpose.msra.mxu0 0
        %1126 = vmatprep.subr.bf16.mxu0 0
        %1127 = vmatpush1.bf16.xpose.msra.mxu0 0
        %1128 = vmatprep.subr.bf16.mxu0 0
        %1129 = vmatpush1.bf16.xpose.msra.mxu0 0
        %1130 = vmatprep.subr.bf16.mxu0 0
        %1131 = vmatpush1.bf16.xpose.msra.mxu0 0
        %1132 = vmatprep.subr.bf16.mxu0 0
        %1133 = vmatpush1.bf16.xpose.msra.mxu0 0
        %1134 = vmatprep.subr.bf16.mxu0 0
        %1135 = vmatpush1.bf16.xpose.msra.mxu0 0
        %1136 = vmatprep.subr.bf16.mxu0 0
        %1137 = vmatpush1.bf16.xpose.msra.mxu0 0
        %1138 = vmatprep.subr.bf16.mxu0 0
        %1139 = vmatpush1.bf16.xpose.msra.mxu0 0
        %1140 = vmatprep.mubr.bf16.mxu0 0
        %1141 = vmatmul.mubr.bf16.gmra.mrb[0].mxu0 %v1103
        %v1142 = vpop.f32.mrb[0].mxu0
        %v1143 = vadd.f32 0.0, %v1142
        %v1144 = vpop.f32.mrb[0].mxu0
        %v1145 = vpop.f32.mrb[0].mxu0
        %v1146 = vpop.f32.mrb[0].mxu0
        %1147 = vdwg.mxu0
        %v1148 = vmul.f32 %v1143, 0.17677669
        %v1149 = vadd.f32 %v1148, %v724
        %v1150 = vsel %vm1035, %v1149, -inf
        %1151 = vmax.xlane.f32.xlu0 %v1150
        %v1152 = vpop.xlane.xlu0 %1151
        %v1153 = vsub.f32 %v1149, %v1152
        %v1154 = vmul.f32 %v1153, 1.442695
        %v1155 = vpow.pop %v1154
        %v1156 = vsel %vm1035, %v1155, 0.0
        %1157 = vadd.xlane.f32.xlu0 %v1156
        %v1158 = vpop.xlane.xlu0 %1157
        %v1159 = vrcp.pop %v1158
        %v1160 = vmul.f32 %v1155, %v1159
        %v1161 = vpack.c.bf16 %v1160, %v1160
        %1163 = vrot.lane.b32.xlu0 %v1048, 96
        %v1164 = vpop.permute.xlu0 %1163
        %v1166 = vsel %vm1035, %v1161, 0
        %v1169 = vsel %vm1052, %v1164, 0
        %1171 = vmatprep.subr.bf16.mxu0 0
        %1172 = vmatpush1.bf16.msra.mxu0 %v1169
        %1173 = vmatprep.subr.bf16.mxu0 0
        %1174 = vmatpush1.bf16.msra.mxu0 0
        %1175 = vmatprep.subr.bf16.mxu0 0
        %1176 = vmatpush1.bf16.msra.mxu0 0
        %1177 = vmatprep.subr.bf16.mxu0 0
        %1178 = vmatpush1.bf16.msra.mxu0 0
        %1179 = vmatprep.subr.bf16.mxu0 0
        %1180 = vmatpush1.bf16.msra.mxu0 0
        %1181 = vmatprep.subr.bf16.mxu0 0
        %1182 = vmatpush1.bf16.msra.mxu0 0
        %1183 = vmatprep.subr.bf16.mxu0 0
        %1184 = vmatpush1.bf16.msra.mxu0 0
        %1185 = vmatprep.subr.bf16.mxu0 0
        %1186 = vmatpush1.bf16.msra.mxu0 0
        %1187 = vmatprep.subr.bf16.mxu0 0
        %1188 = vmatpush1.bf16.msra.mxu0 0
        %1189 = vmatprep.subr.bf16.mxu0 0
        %1190 = vmatpush1.bf16.msra.mxu0 0
        %1191 = vmatprep.subr.bf16.mxu0 0
        %1192 = vmatpush1.bf16.msra.mxu0 0
        %1193 = vmatprep.subr.bf16.mxu0 0
        %1194 = vmatpush1.bf16.msra.mxu0 0
        %1195 = vmatprep.subr.bf16.mxu0 0
        %1196 = vmatpush1.bf16.msra.mxu0 0
        %1197 = vmatprep.subr.bf16.mxu0 0
        %1198 = vmatpush1.bf16.msra.mxu0 0
        %1199 = vmatprep.subr.bf16.mxu0 0
        %1200 = vmatpush1.bf16.msra.mxu0 0
        %1201 = vmatprep.subr.bf16.mxu0 0
        %1202 = vmatpush1.bf16.msra.mxu0 0
        %1203 = vmatprep.mubr.bf16.mxu0 0
        %1204 = vmatmul.mubr.bf16.gmra.mrb[0].mxu0 %v1166
        %v1205 = vpop.f32.mrb[0].mxu0
        %v1206 = vadd.f32 0.0, %v1205
        %v1207 = vpop.f32.mrb[0].mxu0
        %v1208 = vpop.f32.mrb[0].mxu0
        %v1209 = vpop.f32.mrb[0].mxu0
        %1210 = vdwg.mxu0
        %1211 = vrot.lane.b32.xlu0 %v984, 64
        %v1212 = vpop.permute.xlu0 %1211
        %1213 = vrot.lane.b32.xlu0 %v985, 64
        %v1214 = vpop.permute.xlu0 %1213
        %v1216 = vsel %vm986, %v1212, 0
        %v1219 = vsel %vm986, %v1214, 0
        %1221 = vmatprep.subr.bf16.mxu0 0
        %1222 = vmatpush1.bf16.xpose.msra.mxu0 %v1219
        %1223 = vmatprep.subr.bf16.mxu0 0
        %1224 = vmatpush1.bf16.xpose.msra.mxu0 0
        %1225 = vmatprep.subr.bf16.mxu0 0
        %1226 = vmatpush1.bf16.xpose.msra.mxu0 0
        %1227 = vmatprep.subr.bf16.mxu0 0
        %1228 = vmatpush1.bf16.xpose.msra.mxu0 0
        %1229 = vmatprep.subr.bf16.mxu0 0
        %1230 = vmatpush1.bf16.xpose.msra.mxu0 0
        %1231 = vmatprep.subr.bf16.mxu0 0
        %1232 = vmatpush1.bf16.xpose.msra.mxu0 0
        %1233 = vmatprep.subr.bf16.mxu0 0
        %1234 = vmatpush1.bf16.xpose.msra.mxu0 0
        %1235 = vmatprep.subr.bf16.mxu0 0
        %1236 = vmatpush1.bf16.xpose.msra.mxu0 0
        %1237 = vmatprep.subr.bf16.mxu0 0
        %1238 = vmatpush1.bf16.xpose.msra.mxu0 0
        %1239 = vmatprep.subr.bf16.mxu0 0
        %1240 = vmatpush1.bf16.xpose.msra.mxu0 0
        %1241 = vmatprep.subr.bf16.mxu0 0
        %1242 = vmatpush1.bf16.xpose.msra.mxu0 0
        %1243 = vmatprep.subr.bf16.mxu0 0
        %1244 = vmatpush1.bf16.xpose.msra.mxu0 0
        %1245 = vmatprep.subr.bf16.mxu0 0
        %1246 = vmatpush1.bf16.xpose.msra.mxu0 0
        %1247 = vmatprep.subr.bf16.mxu0 0
        %1248 = vmatpush1.bf16.xpose.msra.mxu0 0
        %1249 = vmatprep.subr.bf16.mxu0 0
        %1250 = vmatpush1.bf16.xpose.msra.mxu0 0
        %1251 = vmatprep.subr.bf16.mxu0 0
        %1252 = vmatpush1.bf16.xpose.msra.mxu0 0
        %1253 = vmatprep.mubr.bf16.mxu0 0
        %1254 = vmatmul.mubr.bf16.gmra.mrb[0].mxu0 %v1216
        %v1255 = vpop.f32.mrb[0].mxu0
        %v1256 = vadd.f32 0.0, %v1255
        %v1257 = vpop.f32.mrb[0].mxu0
        %v1258 = vpop.f32.mrb[0].mxu0
        %v1259 = vpop.f32.mrb[0].mxu0
        %1260 = vdwg.mxu0
        %v1261 = vmul.f32 %v1256, 0.17677669
        %v1262 = vadd.f32 %v1261, %v724
        %v1263 = vsel %vm1035, %v1262, -inf
        %1264 = vmax.xlane.f32.xlu0 %v1263
        %v1265 = vpop.xlane.xlu0 %1264
        %v1266 = vsub.f32 %v1262, %v1265
        %v1267 = vmul.f32 %v1266, 1.442695
        %v1268 = vpow.pop %v1267
        %v1269 = vsel %vm1035, %v1268, 0.0
        %1270 = vadd.xlane.f32.xlu0 %v1269
        %v1271 = vpop.xlane.xlu0 %1270
        %v1272 = vrcp.pop %v1271
        %v1273 = vmul.f32 %v1268, %v1272
        %v1274 = vpack.c.bf16 %v1273, %v1273
        %1275 = vrot.lane.b32.xlu0 %v1048, 64
        %v1276 = vpop.permute.xlu0 %1275
        %v1278 = vsel %vm1035, %v1274, 0
        %v1281 = vsel %vm1052, %v1276, 0
        %1283 = vmatprep.subr.bf16.mxu0 0
        %1284 = vmatpush1.bf16.msra.mxu0 %v1281
        %1285 = vmatprep.subr.bf16.mxu0 0
        %1286 = vmatpush1.bf16.msra.mxu0 0
        %1287 = vmatprep.subr.bf16.mxu0 0
        %1288 = vmatpush1.bf16.msra.mxu0 0
        %1289 = vmatprep.subr.bf16.mxu0 0
        %1290 = vmatpush1.bf16.msra.mxu0 0
        %1291 = vmatprep.subr.bf16.mxu0 0
        %1292 = vmatpush1.bf16.msra.mxu0 0
        %1293 = vmatprep.subr.bf16.mxu0 0
        %1294 = vmatpush1.bf16.msra.mxu0 0
        %1295 = vmatprep.subr.bf16.mxu0 0
        %1296 = vmatpush1.bf16.msra.mxu0 0
        %1297 = vmatprep.subr.bf16.mxu0 0
        %1298 = vmatpush1.bf16.msra.mxu0 0
        %1299 = vmatprep.subr.bf16.mxu0 0
        %1300 = vmatpush1.bf16.msra.mxu0 0
        %1301 = vmatprep.subr.bf16.mxu0 0
        %1302 = vmatpush1.bf16.msra.mxu0 0
        %1303 = vmatprep.subr.bf16.mxu0 0
        %1304 = vmatpush1.bf16.msra.mxu0 0
        %1305 = vmatprep.subr.bf16.mxu0 0
        %1306 = vmatpush1.bf16.msra.mxu0 0
        %1307 = vmatprep.subr.bf16.mxu0 0
        %1308 = vmatpush1.bf16.msra.mxu0 0
        %1309 = vmatprep.subr.bf16.mxu0 0
        %1310 = vmatpush1.bf16.msra.mxu0 0
        %1311 = vmatprep.subr.bf16.mxu0 0
        %1312 = vmatpush1.bf16.msra.mxu0 0
        %1313 = vmatprep.subr.bf16.mxu0 0
        %1314 = vmatpush1.bf16.msra.mxu0 0
        %1315 = vmatprep.mubr.bf16.mxu0 0
        %1316 = vmatmul.mubr.bf16.gmra.mrb[0].mxu0 %v1278
        %v1317 = vpop.f32.mrb[0].mxu0
        %v1318 = vadd.f32 0.0, %v1317
        %v1319 = vpop.f32.mrb[0].mxu0
        %v1320 = vpop.f32.mrb[0].mxu0
        %v1321 = vpop.f32.mrb[0].mxu0
        %1322 = vdwg.mxu0
        %1323 = vrot.lane.b32.xlu0 %v984, 32
        %v1324 = vpop.permute.xlu0 %1323
        %1325 = vrot.lane.b32.xlu0 %v985, 32
        %v1326 = vpop.permute.xlu0 %1325
        %v1328 = vsel %vm986, %v1324, 0
        %v1331 = vsel %vm986, %v1326, 0
        %1333 = vmatprep.subr.bf16.mxu0 0
        %1334 = vmatpush1.bf16.xpose.msra.mxu0 %v1331
        %1335 = vmatprep.subr.bf16.mxu0 0
        %1336 = vmatpush1.bf16.xpose.msra.mxu0 0
        %1337 = vmatprep.subr.bf16.mxu0 0
        %1338 = vmatpush1.bf16.xpose.msra.mxu0 0
        %1339 = vmatprep.subr.bf16.mxu0 0
        %1340 = vmatpush1.bf16.xpose.msra.mxu0 0
        %1341 = vmatprep.subr.bf16.mxu0 0
        %1342 = vmatpush1.bf16.xpose.msra.mxu0 0
        %1343 = vmatprep.subr.bf16.mxu0 0
        %1344 = vmatpush1.bf16.xpose.msra.mxu0 0
        %1345 = vmatprep.subr.bf16.mxu0 0
        %1346 = vmatpush1.bf16.xpose.msra.mxu0 0
        %1347 = vmatprep.subr.bf16.mxu0 0
        %1348 = vmatpush1.bf16.xpose.msra.mxu0 0
        %1349 = vmatprep.subr.bf16.mxu0 0
        %1350 = vmatpush1.bf16.xpose.msra.mxu0 0
        %1351 = vmatprep.subr.bf16.mxu0 0
        %1352 = vmatpush1.bf16.xpose.msra.mxu0 0
        %1353 = vmatprep.subr.bf16.mxu0 0
        %1354 = vmatpush1.bf16.xpose.msra.mxu0 0
        %1355 = vmatprep.subr.bf16.mxu0 0
        %1356 = vmatpush1.bf16.xpose.msra.mxu0 0
        %1357 = vmatprep.subr.bf16.mxu0 0
        %1358 = vmatpush1.bf16.xpose.msra.mxu0 0
        %1359 = vmatprep.subr.bf16.mxu0 0
        %1360 = vmatpush1.bf16.xpose.msra.mxu0 0
        %1361 = vmatprep.subr.bf16.mxu0 0
        %1362 = vmatpush1.bf16.xpose.msra.mxu0 0
        %1363 = vmatprep.subr.bf16.mxu0 0
        %1364 = vmatpush1.bf16.xpose.msra.mxu0 0
        %1365 = vmatprep.mubr.bf16.mxu0 0
        %1366 = vmatmul.mubr.bf16.gmra.mrb[0].mxu0 %v1328
        %v1367 = vpop.f32.mrb[0].mxu0
        %v1368 = vadd.f32 0.0, %v1367
        %v1369 = vpop.f32.mrb[0].mxu0
        %v1370 = vpop.f32.mrb[0].mxu0
        %v1371 = vpop.f32.mrb[0].mxu0
        %1372 = vdwg.mxu0
        %v1373 = vmul.f32 %v1368, 0.17677669
        %v1374 = vadd.f32 %v1373, %v724
        %v1375 = vsel %vm1035, %v1374, -inf
        %1376 = vmax.xlane.f32.xlu0 %v1375
        %v1377 = vpop.xlane.xlu0 %1376
        %v1378 = vsub.f32 %v1374, %v1377
        %v1379 = vmul.f32 %v1378, 1.442695
        %v1380 = vpow.pop %v1379
        %v1381 = vsel %vm1035, %v1380, 0.0
        %1382 = vadd.xlane.f32.xlu0 %v1381
        %v1383 = vpop.xlane.xlu0 %1382
        %v1384 = vrcp.pop %v1383
        %v1385 = vmul.f32 %v1380, %v1384
        %v1386 = vpack.c.bf16 %v1385, %v1385
        %1387 = vrot.lane.b32.xlu0 %v1048, 32
        %v1388 = vpop.permute.xlu0 %1387
        %v1390 = vsel %vm1035, %v1386, 0
        %v1393 = vsel %vm1052, %v1388, 0
        %1395 = vmatprep.subr.bf16.mxu0 0
        %1396 = vmatpush1.bf16.msra.mxu0 %v1393
        %1397 = vmatprep.subr.bf16.mxu0 0
        %1398 = vmatpush1.bf16.msra.mxu0 0
        %1399 = vmatprep.subr.bf16.mxu0 0
        %1400 = vmatpush1.bf16.msra.mxu0 0
        %1401 = vmatprep.subr.bf16.mxu0 0
        %1402 = vmatpush1.bf16.msra.mxu0 0
        %1403 = vmatprep.subr.bf16.mxu0 0
        %1404 = vmatpush1.bf16.msra.mxu0 0
        %1405 = vmatprep.subr.bf16.mxu0 0
        %1406 = vmatpush1.bf16.msra.mxu0 0
        %1407 = vmatprep.subr.bf16.mxu0 0
        %1408 = vmatpush1.bf16.msra.mxu0 0
        %1409 = vmatprep.subr.bf16.mxu0 0
        %1410 = vmatpush1.bf16.msra.mxu0 0
        %1411 = vmatprep.subr.bf16.mxu0 0
        %1412 = vmatpush1.bf16.msra.mxu0 0
        %1413 = vmatprep.subr.bf16.mxu0 0
        %1414 = vmatpush1.bf16.msra.mxu0 0
        %1415 = vmatprep.subr.bf16.mxu0 0
        %1416 = vmatpush1.bf16.msra.mxu0 0
        %1417 = vmatprep.subr.bf16.mxu0 0
        %1418 = vmatpush1.bf16.msra.mxu0 0
        %1419 = vmatprep.subr.bf16.mxu0 0
        %1420 = vmatpush1.bf16.msra.mxu0 0
        %1421 = vmatprep.subr.bf16.mxu0 0
        %1422 = vmatpush1.bf16.msra.mxu0 0
        %1423 = vmatprep.subr.bf16.mxu0 0
        %1424 = vmatpush1.bf16.msra.mxu0 0
        %1425 = vmatprep.subr.bf16.mxu0 0
        %1426 = vmatpush1.bf16.msra.mxu0 0
        %1427 = vmatprep.mubr.bf16.mxu0 0
        %1428 = vmatmul.mubr.bf16.gmra.mrb[0].mxu0 %v1390
        %v1429 = vpop.f32.mrb[0].mxu0
        %v1430 = vadd.f32 0.0, %v1429
        %v1431 = vpop.f32.mrb[0].mxu0
        %v1432 = vpop.f32.mrb[0].mxu0
        %v1433 = vpop.f32.mrb[0].mxu0
        %1434 = vdwg.mxu0
        %1436 = vrot.lane.b32.xlu0 %v1206, 32
        %v1437 = vpop.permute.xlu0 %1436
        %1440 = vrot.lane.b32.xlu0 %v1318, 64
        %v1441 = vpop.permute.xlu0 %1440
        %1444 = vrot.lane.b32.xlu0 %v1430, 96
        %v1445 = vpop.permute.xlu0 %1444
        %v1447 = vsel %vm986, %v1091, %v1437
        %vm1448 = vcmask 523264
        %v1449 = vsel %vm1448, %v1447, %v1441
        %vm1450 = vcmask 785408
        %v1451 = vsel %vm1450, %v1449, %v1445
        %v1452 = vld [vmem:[#allocation5] sm:$0xf]
        %v1453 = vld [vmem:[#allocation5 + $0x4] sm:$0xf]
        %v1454 = vld [vmem:[#allocation5 + $0x8] sm:$0xf]
        %v1455 = vld [vmem:[#allocation5 + $0xc] sm:$0xf]
        %v1456 = vld [vmem:[#allocation5 + $0x10] sm:$0xf]
        %v1457 = vld [vmem:[#allocation5 + $0x14] sm:$0xf]
        %v1458 = vld [vmem:[#allocation5 + $0x18] sm:$0xf]
        %v1459 = vld [vmem:[#allocation5 + $0x1c] sm:$0xf]
        %v1460 = vld [vmem:[#allocation5 + $0x20] sm:$0xf]
        %v1461 = vld [vmem:[#allocation5 + $0x24] sm:$0xf]
        %v1462 = vld [vmem:[#allocation5 + $0x28] sm:$0xf]
        %v1463 = vld [vmem:[#allocation5 + $0x2c] sm:$0xf]
        %v1464 = vld [vmem:[#allocation5 + $0x30] sm:$0xf]
        %v1465 = vld [vmem:[#allocation5 + $0x34] sm:$0xf]
        %v1466 = vld [vmem:[#allocation5 + $0x38] sm:$0xf]
        %v1467 = vld [vmem:[#allocation5 + $0x3c] sm:$0xf]
        %v1468 = vpack.c.bf16 %v1451, %v1451
        %v1469 = vld [vmem:[%s4] sm:$0x1]
        %v1471 = vlaneseq
        %v1472 = vshrl.u32 %v1471, 7
        %v1473 = vsub.s32 0, %v1472
        %v1474 = vrot.slane %v1469, %v1473
        %v1492 = vunpack.c.l.b16 %v1452
        %v1493 = vunpack.c.l.b16 %v1453
        %v1494 = vunpack.c.l.b16 %v1454
        %v1495 = vunpack.c.l.b16 %v1455
        %v1496 = vunpack.c.l.b16 %v1456
        %v1497 = vunpack.c.l.b16 %v1457
        %v1498 = vunpack.c.l.b16 %v1458
        %v1499 = vunpack.c.l.b16 %v1459
        %v1500 = vunpack.c.l.b16 %v1460
        %v1501 = vunpack.c.l.b16 %v1461
        %v1502 = vunpack.c.l.b16 %v1462
        %v1503 = vunpack.c.l.b16 %v1463
        %v1504 = vunpack.c.l.b16 %v1464
        %v1505 = vunpack.c.l.b16 %v1465
        %v1506 = vunpack.c.l.b16 %v1466
        %v1507 = vunpack.c.l.b16 %v1467
        %v1508 = vpack.c.b16 %v1493, %v1492
        %v1509 = vpack.c.b16 %v1495, %v1494
        %v1510 = vpack.c.b16 %v1497, %v1496
        %v1511 = vpack.c.b16 %v1499, %v1498
        %v1512 = vpack.c.b16 %v1501, %v1500
        %v1513 = vpack.c.b16 %v1503, %v1502
        %v1514 = vpack.c.b16 %v1505, %v1504
        %v1515 = vpack.c.b16 %v1507, %v1506
        %1524 = vmatprep.subr.bf16.mxu0 0
        %1525 = vmatpush1.bf16.msra.mxu0 %v1508
        %1526 = vmatprep.subr.bf16.mxu0 0
        %1527 = vmatpush1.bf16.msra.mxu0 %v1509
        %1528 = vmatprep.subr.bf16.mxu0 0
        %1529 = vmatpush1.bf16.msra.mxu0 %v1510
        %1530 = vmatprep.subr.bf16.mxu0 0
        %1531 = vmatpush1.bf16.msra.mxu0 %v1511
        %1532 = vmatprep.subr.bf16.mxu0 0
        %1533 = vmatpush1.bf16.msra.mxu0 %v1512
        %1534 = vmatprep.subr.bf16.mxu0 0
        %1535 = vmatpush1.bf16.msra.mxu0 %v1513
        %1536 = vmatprep.subr.bf16.mxu0 0
        %1537 = vmatpush1.bf16.msra.mxu0 %v1514
        %1538 = vmatprep.subr.bf16.mxu0 0
        %1539 = vmatpush1.bf16.msra.mxu0 %v1515
        %1540 = vmatprep.subr.bf16.mxu0 0
        %1541 = vmatpush1.bf16.msra.mxu0 0
        %1542 = vmatprep.subr.bf16.mxu0 0
        %1543 = vmatpush1.bf16.msra.mxu0 0
        %1544 = vmatprep.subr.bf16.mxu0 0
        %1545 = vmatpush1.bf16.msra.mxu0 0
        %1546 = vmatprep.subr.bf16.mxu0 0
        %1547 = vmatpush1.bf16.msra.mxu0 0
        %1548 = vmatprep.subr.bf16.mxu0 0
        %1549 = vmatpush1.bf16.msra.mxu0 0
        %1550 = vmatprep.subr.bf16.mxu0 0
        %1551 = vmatpush1.bf16.msra.mxu0 0
        %1552 = vmatprep.subr.bf16.mxu0 0
        %1553 = vmatpush1.bf16.msra.mxu0 0
        %1554 = vmatprep.subr.bf16.mxu0 0
        %1555 = vmatpush1.bf16.msra.mxu0 0
        %1556 = vmatprep.mubr.bf16.mxu0 0
        %1557 = vmatmul.mubr.bf16.gmra.mrb[0].mxu0 %v1468
        %v1558 = vpop.f32.mrb[0].mxu0
        %v1559 = vadd.f32 %v1474, %v1558
        %v1560 = vpop.f32.mrb[0].mxu0
        %v1561 = vpop.f32.mrb[0].mxu0
        %v1562 = vpop.f32.mrb[0].mxu0
        %1563 = vdwg.mxu0
        %v1564 = vadd.f32 %v718, %v1559
        %v1565 = vld [vmem:[%s6] sm:$0x1]
        %v1566 = vld [vmem:[#allocation7] sm:$0x1]
        %1567 = vadd.xlane.f32.xlu0 %v1564
        %v1568 = vpop.xlane.xlu0 %1567
        %v1569 = vrcp.pop 128.0
        %v1570 = vmul.f32 %v1568, %v1569
        %v1571 = vsub.f32 %v1564, %v1570
        %v1572 = vmul.f32 %v1571, %v1571
        %1573 = vadd.xlane.f32.xlu0 %v1572
        %v1574 = vpop.xlane.xlu0 %1573
        %v1575 = vmul.f32 %v1574, %v1569
        %v1576 = vadd.f32 %v1575, 1e-05
        %v1577 = vrsqrt.pop %v1576
        %v1578 = vmul.f32 %v1571, %v1577
        %v1580 = vlaneseq
        %v1581 = vshrl.u32 %v1580, 7
        %v1582 = vsub.s32 0, %v1581
        %v1583 = vrot.slane %v1565, %v1582
        %v1585 = vmul.f32 %v1578, %v1583
        %v1587 = vlaneseq
        %v1588 = vshrl.u32 %v1587, 7
        %v1589 = vsub.s32 0, %v1588
        %v1590 = vrot.slane %v1566, %v1589
        %v1592 = vadd.f32 %v1585, %v1590
        %v1593 = vld [vmem:[%s5] sm:$0x1]
        %v1595 = vlaneseq
        %v1596 = vshrl.u32 %v1595, 7
        %v1597 = vsub.s32 0, %v1596
        %v1598 = vrot.slane %v1593, %v1597
        %v1600 = vadd.f32 %v1592, %v1598
        %v1601 = vld [vmem:[#allocation8] sm:$0x1]
        %v1602 = vld [vmem:[#allocation10] sm:$0x1]
        %1603 = vadd.xlane.f32.xlu0 %v1600
        %v1604 = vpop.xlane.xlu0 %1603
        %v1605 = vmul.f32 %v1604, %v1569
        %v1606 = vsub.f32 %v1600, %v1605
        %v1607 = vmul.f32 %v1606, %v1606
        %1608 = vadd.xlane.f32.xlu0 %v1607
        %v1609 = vpop.xlane.xlu0 %1608
        %v1610 = vmul.f32 %v1609, %v1569
        %v1611 = vadd.f32 %v1610, 1e-05
        %v1612 = vrsqrt.pop %v1611
        %v1613 = vmul.f32 %v1606, %v1612
        %v1615 = vlaneseq
        %v1616 = vshrl.u32 %v1615, 7
        %v1617 = vsub.s32 0, %v1616
        %v1618 = vrot.slane %v1601, %v1617
        %v1620 = vmul.f32 %v1613, %v1618
        %v1622 = vlaneseq
        %v1623 = vshrl.u32 %v1622, 7
        %v1624 = vsub.s32 0, %v1623
        %v1625 = vrot.slane %v1602, %v1624
        %v1627 = vadd.f32 %v1620, %v1625
        %v1628 = vld [vmem:[%s12] sm:$0xff]
        %v1629 = vld [vmem:[%s12 + $0x8] sm:$0xff]
        %v1630 = vld [vmem:[%s12 + $0x10] sm:$0xff]
        %v1631 = vld [vmem:[%s12 + $0x18] sm:$0xff]
        %v1632 = vld [vmem:[%s12 + $0x20] sm:$0xff]
        %v1633 = vld [vmem:[%s12 + $0x28] sm:$0xff]
        %v1634 = vld [vmem:[%s12 + $0x30] sm:$0xff]
        %v1635 = vld [vmem:[%s12 + $0x38] sm:$0xff]
        %v1636 = vld [vmem:[%s12 + $0x40] sm:$0xff]
        %v1637 = vld [vmem:[%s12 + $0x48] sm:$0xff]
        %v1638 = vld [vmem:[%s12 + $0x50] sm:$0xff]
        %v1639 = vld [vmem:[%s12 + $0x58] sm:$0xff]
        %v1640 = vld [vmem:[%s12 + $0x60] sm:$0xff]
        %v1641 = vld [vmem:[%s12 + $0x68] sm:$0xff]
        %v1642 = vld [vmem:[%s12 + $0x70] sm:$0xff]
        %v1643 = vld [vmem:[%s12 + $0x78] sm:$0xff]
        %v1644 = vpack.c.bf16 %v1627, %v1627
        %v1645 = vld [vmem:[%s13] sm:$0x3]
        %v1647 = vlaneseq
        %v1648 = vshrl.u32 %v1647, 7
        %v1649 = vsub.s32 0, %v1648
        %v1650 = vrot.slane %v1645, %v1649
        %v1651 = vlaneseq
        %v1652 = vshrl.u32 %v1651, 7
        %v1653 = vsub.s32 1, %v1652
        %v1654 = vrot.slane %v1645, %v1653
        %v1673 = vunpack.c.l.b16 %v1628
        %v1674 = vunpack.c.h.b16 %v1628
        %v1675 = vunpack.c.l.b16 %v1629
        %v1676 = vunpack.c.h.b16 %v1629
        %v1677 = vunpack.c.l.b16 %v1630
        %v1678 = vunpack.c.h.b16 %v1630
        %v1679 = vunpack.c.l.b16 %v1631
        %v1680 = vunpack.c.h.b16 %v1631
        %v1681 = vunpack.c.l.b16 %v1632
        %v1682 = vunpack.c.h.b16 %v1632
        %v1683 = vunpack.c.l.b16 %v1633
        %v1684 = vunpack.c.h.b16 %v1633
        %v1685 = vunpack.c.l.b16 %v1634
        %v1686 = vunpack.c.h.b16 %v1634
        %v1687 = vunpack.c.l.b16 %v1635
        %v1688 = vunpack.c.h.b16 %v1635
        %v1689 = vunpack.c.l.b16 %v1636
        %v1690 = vunpack.c.h.b16 %v1636
        %v1691 = vunpack.c.l.b16 %v1637
        %v1692 = vunpack.c.h.b16 %v1637
        %v1693 = vunpack.c.l.b16 %v1638
        %v1694 = vunpack.c.h.b16 %v1638
        %v1695 = vunpack.c.l.b16 %v1639
        %v1696 = vunpack.c.h.b16 %v1639
        %v1697 = vunpack.c.l.b16 %v1640
        %v1698 = vunpack.c.h.b16 %v1640
        %v1699 = vunpack.c.l.b16 %v1641
        %v1700 = vunpack.c.h.b16 %v1641
        %v1701 = vunpack.c.l.b16 %v1642
        %v1702 = vunpack.c.h.b16 %v1642
        %v1703 = vunpack.c.l.b16 %v1643
        %v1704 = vunpack.c.h.b16 %v1643
        %v1705 = vpack.c.b16 %v1675, %v1673
        %v1706 = vpack.c.b16 %v1676, %v1674
        %v1707 = vpack.c.b16 %v1679, %v1677
        %v1708 = vpack.c.b16 %v1680, %v1678
        %v1709 = vpack.c.b16 %v1683, %v1681
        %v1710 = vpack.c.b16 %v1684, %v1682
        %v1711 = vpack.c.b16 %v1687, %v1685
        %v1712 = vpack.c.b16 %v1688, %v1686
        %v1713 = vpack.c.b16 %v1691, %v1689
        %v1714 = vpack.c.b16 %v1692, %v1690
        %v1715 = vpack.c.b16 %v1695, %v1693
        %v1716 = vpack.c.b16 %v1696, %v1694
        %v1717 = vpack.c.b16 %v1699, %v1697
        %v1718 = vpack.c.b16 %v1700, %v1698
        %v1719 = vpack.c.b16 %v1703, %v1701
        %v1720 = vpack.c.b16 %v1704, %v1702
        %1737 = vmatprep.subr.bf16.mxu0 %v1706
        %1738 = vmatpush1.bf16.msra.mxu0 %v1705
        %1739 = vmatprep.subr.bf16.mxu0 %v1708
        %1740 = vmatpush1.bf16.msra.mxu0 %v1707
        %1741 = vmatprep.subr.bf16.mxu0 %v1710
        %1742 = vmatpush1.bf16.msra.mxu0 %v1709
        %1743 = vmatprep.subr.bf16.mxu0 %v1712
        %1744 = vmatpush1.bf16.msra.mxu0 %v1711
        %1745 = vmatprep.subr.bf16.mxu0 %v1714
        %1746 = vmatpush1.bf16.msra.mxu0 %v1713
        %1747 = vmatprep.subr.bf16.mxu0 %v1716
        %1748 = vmatpush1.bf16.msra.mxu0 %v1715
        %1749 = vmatprep.subr.bf16.mxu0 %v1718
        %1750 = vmatpush1.bf16.msra.mxu0 %v1717
        %1751 = vmatprep.subr.bf16.mxu0 %v1720
        %1752 = vmatpush1.bf16.msra.mxu0 %v1719
        %1753 = vmatprep.subr.bf16.mxu0 0
        %1754 = vmatpush1.bf16.msra.mxu0 0
        %1755 = vmatprep.subr.bf16.mxu0 0
        %1756 = vmatpush1.bf16.msra.mxu0 0
        %1757 = vmatprep.subr.bf16.mxu0 0
        %1758 = vmatpush1.bf16.msra.mxu0 0
        %1759 = vmatprep.subr.bf16.mxu0 0
        %1760 = vmatpush1.bf16.msra.mxu0 0
        %1761 = vmatprep.subr.bf16.mxu0 0
        %1762 = vmatpush1.bf16.msra.mxu0 0
        %1763 = vmatprep.subr.bf16.mxu0 0
        %1764 = vmatpush1.bf16.msra.mxu0 0
        %1765 = vmatprep.subr.bf16.mxu0 0
        %1766 = vmatpush1.bf16.msra.mxu0 0
        %1767 = vmatprep.subr.bf16.mxu0 0
        %1768 = vmatpush1.bf16.msra.mxu0 0
        %1769 = vmatprep.mubr.bf16.mxu0 0
        %1770 = vmatmul.mubr.bf16.gmra.mrb[0].mxu0 %v1644
        %v1771 = vpop.f32.mrb[0].mxu0
        %v1772 = vadd.f32 %v1650, %v1771
        %v1773 = vpop.f32.mrb[0].mxu0
        %v1774 = vadd.f32 %v1654, %v1773
        %v1775 = vpop.f32.mrb[0].mxu0
        %v1776 = vpop.f32.mrb[0].mxu0
        %1777 = vdwg.mxu0
        %v1778 = vmax.f32 %v1772, 0.0
        %v1779 = vmax.f32 %v1774, 0.0
        %v1780 = vld [vmem:[#allocation14] sm:$0xf]
        %v1781 = vld [vmem:[#allocation14 + $0x4] sm:$0xf]
        %v1782 = vld [vmem:[#allocation14 + $0x8] sm:$0xf]
        %v1783 = vld [vmem:[#allocation14 + $0xc] sm:$0xf]
        %v1784 = vld [vmem:[#allocation14 + $0x10] sm:$0xf]
        %v1785 = vld [vmem:[#allocation14 + $0x14] sm:$0xf]
        %v1786 = vld [vmem:[#allocation14 + $0x18] sm:$0xf]
        %v1787 = vld [vmem:[#allocation14 + $0x1c] sm:$0xf]
        %v1788 = vld [vmem:[#allocation14 + $0x20] sm:$0xf]
        %v1789 = vld [vmem:[#allocation14 + $0x24] sm:$0xf]
        %v1790 = vld [vmem:[#allocation14 + $0x28] sm:$0xf]
        %v1791 = vld [vmem:[#allocation14 + $0x2c] sm:$0xf]
        %v1792 = vld [vmem:[#allocation14 + $0x30] sm:$0xf]
        %v1793 = vld [vmem:[#allocation14 + $0x34] sm:$0xf]
        %v1794 = vld [vmem:[#allocation14 + $0x38] sm:$0xf]
        %v1795 = vld [vmem:[#allocation14 + $0x3c] sm:$0xf]
        %v1796 = vld [vmem:[#allocation14 + $0x40] sm:$0xf]
        %v1797 = vld [vmem:[#allocation14 + $0x44] sm:$0xf]
        %v1798 = vld [vmem:[#allocation14 + $0x48] sm:$0xf]
        %v1799 = vld [vmem:[#allocation14 + $0x4c] sm:$0xf]
        %v1800 = vld [vmem:[#allocation14 + $0x50] sm:$0xf]
        %v1801 = vld [vmem:[#allocation14 + $0x54] sm:$0xf]
        %v1802 = vld [vmem:[#allocation14 + $0x58] sm:$0xf]
        %v1803 = vld [vmem:[#allocation14 + $0x5c] sm:$0xf]
        %v1804 = vld [vmem:[#allocation14 + $0x60] sm:$0xf]
        %v1805 = vld [vmem:[#allocation14 + $0x64] sm:$0xf]
        %v1806 = vld [vmem:[#allocation14 + $0x68] sm:$0xf]
        %v1807 = vld [vmem:[#allocation14 + $0x6c] sm:$0xf]
        %v1808 = vld [vmem:[#allocation14 + $0x70] sm:$0xf]
        %v1809 = vld [vmem:[#allocation14 + $0x74] sm:$0xf]
        %v1810 = vld [vmem:[#allocation14 + $0x78] sm:$0xf]
        %v1811 = vld [vmem:[#allocation14 + $0x7c] sm:$0xf]
        %v1812 = vpack.c.bf16 %v1778, %v1778
        %v1813 = vpack.c.bf16 %v1779, %v1779
        %v1814 = vld [vmem:[#allocation16] sm:$0x1]
        %v1816 = vlaneseq
        %v1817 = vshrl.u32 %v1816, 7
        %v1818 = vsub.s32 0, %v1817
        %v1819 = vrot.slane %v1814, %v1818
        %v1853 = vunpack.c.l.b16 %v1780
        %v1854 = vunpack.c.l.b16 %v1781
        %v1855 = vunpack.c.l.b16 %v1782
        %v1856 = vunpack.c.l.b16 %v1783
        %v1857 = vunpack.c.l.b16 %v1784
        %v1858 = vunpack.c.l.b16 %v1785
        %v1859 = vunpack.c.l.b16 %v1786
        %v1860 = vunpack.c.l.b16 %v1787
        %v1861 = vunpack.c.l.b16 %v1788
        %v1862 = vunpack.c.l.b16 %v1789
        %v1863 = vunpack.c.l.b16 %v1790
        %v1864 = vunpack.c.l.b16 %v1791
        %v1865 = vunpack.c.l.b16 %v1792
        %v1866 = vunpack.c.l.b16 %v1793
        %v1867 = vunpack.c.l.b16 %v1794
        %v1868 = vunpack.c.l.b16 %v1795
        %v1869 = vunpack.c.l.b16 %v1796
        %v1870 = vunpack.c.l.b16 %v1797
        %v1871 = vunpack.c.l.b16 %v1798
        %v1872 = vunpack.c.l.b16 %v1799
        %v1873 = vunpack.c.l.b16 %v1800
        %v1874 = vunpack.c.l.b16 %v1801
        %v1875 = vunpack.c.l.b16 %v1802
        %v1876 = vunpack.c.l.b16 %v1803
        %v1877 = vunpack.c.l.b16 %v1804
        %v1878 = vunpack.c.l.b16 %v1805
        %v1879 = vunpack.c.l.b16 %v1806
        %v1880 = vunpack.c.l.b16 %v1807
        %v1881 = vunpack.c.l.b16 %v1808
        %v1882 = vunpack.c.l.b16 %v1809
        %v1883 = vunpack.c.l.b16 %v1810
        %v1884 = vunpack.c.l.b16 %v1811
        %v1885 = vpack.c.b16 %v1854, %v1853
        %v1886 = vpack.c.b16 %v1856, %v1855
        %v1887 = vpack.c.b16 %v1858, %v1857
        %v1888 = vpack.c.b16 %v1860, %v1859
        %v1889 = vpack.c.b16 %v1862, %v1861
        %v1890 = vpack.c.b16 %v1864, %v1863
        %v1891 = vpack.c.b16 %v1866, %v1865
        %v1892 = vpack.c.b16 %v1868, %v1867
        %v1893 = vpack.c.b16 %v1870, %v1869
        %v1894 = vpack.c.b16 %v1872, %v1871
        %v1895 = vpack.c.b16 %v1874, %v1873
        %v1896 = vpack.c.b16 %v1876, %v1875
        %v1897 = vpack.c.b16 %v1878, %v1877
        %v1898 = vpack.c.b16 %v1880, %v1879
        %v1899 = vpack.c.b16 %v1882, %v1881
        %v1900 = vpack.c.b16 %v1884, %v1883
        %1917 = vmatprep.subr.bf16.mxu0 0
        %1918 = vmatpush1.bf16.msra.mxu0 %v1885
        %1919 = vmatprep.subr.bf16.mxu0 0
        %1920 = vmatpush1.bf16.msra.mxu0 %v1886
        %1921 = vmatprep.subr.bf16.mxu0 0
        %1922 = vmatpush1.bf16.msra.mxu0 %v1887
        %1923 = vmatprep.subr.bf16.mxu0 0
        %1924 = vmatpush1.bf16.msra.mxu0 %v1888
        %1925 = vmatprep.subr.bf16.mxu0 0
        %1926 = vmatpush1.bf16.msra.mxu0 %v1889
        %1927 = vmatprep.subr.bf16.mxu0 0
        %1928 = vmatpush1.bf16.msra.mxu0 %v1890
        %1929 = vmatprep.subr.bf16.mxu0 0
        %1930 = vmatpush1.bf16.msra.mxu0 %v1891
        %1931 = vmatprep.subr.bf16.mxu0 0
        %1932 = vmatpush1.bf16.msra.mxu0 %v1892
        %1933 = vmatprep.subr.bf16.mxu0 0
        %1934 = vmatpush1.bf16.msra.mxu0 %v1893
        %1935 = vmatprep.subr.bf16.mxu0 0
        %1936 = vmatpush1.bf16.msra.mxu0 %v1894
        %1937 = vmatprep.subr.bf16.mxu0 0
        %1938 = vmatpush1.bf16.msra.mxu0 %v1895
        %1939 = vmatprep.subr.bf16.mxu0 0
        %1940 = vmatpush1.bf16.msra.mxu0 %v1896
        %1941 = vmatprep.subr.bf16.mxu0 0
        %1942 = vmatpush1.bf16.msra.mxu0 %v1897
        %1943 = vmatprep.subr.bf16.mxu0 0
        %1944 = vmatpush1.bf16.msra.mxu0 %v1898
        %1945 = vmatprep.subr.bf16.mxu0 0
        %1946 = vmatpush1.bf16.msra.mxu0 %v1899
        %1947 = vmatprep.subr.bf16.mxu0 0
        %1948 = vmatpush1.bf16.msra.mxu0 %v1900
        %1949 = vmatprep.mubr.bf16.mxu0 %v1813
        %1950 = vmatmul.mubr.bf16.gmra.mrb[0].mxu0 %v1812
        %v1951 = vpop.f32.mrb[0].mxu0
        %v1952 = vadd.f32 %v1819, %v1951
        %v1953 = vpop.f32.mrb[0].mxu0
        %v1954 = vpop.f32.mrb[0].mxu0
        %v1955 = vpop.f32.mrb[0].mxu0
        %1956 = vdwg.mxu0
        %v1957 = vadd.f32 %v1627, %v1952
        %v1958 = vld [vmem:[#allocation11] sm:$0x1]
        %v1959 = vld [vmem:[#allocation13] sm:$0x1]
        %1960 = vadd.xlane.f32.xlu0 %v1957
        %v1961 = vpop.xlane.xlu0 %1960
        %v1962 = vmul.f32 %v1961, %v1569
        %v1963 = vsub.f32 %v1957, %v1962
        %v1964 = vmul.f32 %v1963, %v1963
        %1965 = vadd.xlane.f32.xlu0 %v1964
        %v1966 = vpop.xlane.xlu0 %1965
        %v1967 = vmul.f32 %v1966, %v1569
        %v1968 = vadd.f32 %v1967, 1e-05
        %v1969 = vrsqrt.pop %v1968
        %v1970 = vmul.f32 %v1963, %v1969
        %v1972 = vlaneseq
        %v1973 = vshrl.u32 %v1972, 7
        %v1974 = vsub.s32 0, %v1973
        %v1975 = vrot.slane %v1958, %v1974
        %v1977 = vmul.f32 %v1970, %v1975
        %v1979 = vlaneseq
        %v1980 = vshrl.u32 %v1979, 7
        %v1981 = vsub.s32 0, %v1980
        %v1982 = vrot.slane %v1959, %v1981
        %v1984 = vadd.f32 %v1977, %v1982
        %s1985 = scalar_lea.vmem [#allocation2], 192
        %v1986 = vld [vmem:[%s1985] sm:$0xff]
        %v1987 = vld [vmem:[%s1985 + $0x8] sm:$0xf]
        %v1988 = vld [vmem:[%s1985 + $0xc] sm:$0xff]
        %v1989 = vld [vmem:[%s1985 + $0x14] sm:$0xf]
        %v1990 = vld [vmem:[%s1985 + $0x18] sm:$0xff]
        %v1991 = vld [vmem:[%s1985 + $0x20] sm:$0xf]
        %v1992 = vld [vmem:[%s1985 + $0x24] sm:$0xff]
        %v1993 = vld [vmem:[%s1985 + $0x2c] sm:$0xf]
        %v1994 = vld [vmem:[%s1985 + $0x30] sm:$0xff]
        %v1995 = vld [vmem:[%s1985 + $0x38] sm:$0xf]
        %v1996 = vld [vmem:[%s1985 + $0x3c] sm:$0xff]
        %v1997 = vld [vmem:[%s1985 + $0x44] sm:$0xf]
        %v1998 = vld [vmem:[%s1985 + $0x48] sm:$0xff]
        %v1999 = vld [vmem:[%s1985 + $0x50] sm:$0xf]
        %v2000 = vld [vmem:[%s1985 + $0x54] sm:$0xff]
        %v2001 = vld [vmem:[%s1985 + $0x5c] sm:$0xf]
        %v2002 = vld [vmem:[%s1985 + $0x60] sm:$0xff]
        %v2003 = vld [vmem:[%s1985 + $0x68] sm:$0xf]
        %v2004 = vld [vmem:[%s1985 + $0x6c] sm:$0xff]
        %v2005 = vld [vmem:[%s1985 + $0x74] sm:$0xf]
        %v2006 = vld [vmem:[%s1985 + $0x78] sm:$0xff]
        %v2007 = vld [vmem:[%s1985 + $0x80] sm:$0xf]
        %v2008 = vld [vmem:[%s1985 + $0x84] sm:$0xff]
        %v2009 = vld [vmem:[%s1985 + $0x8c] sm:$0xf]
        %v2010 = vld [vmem:[%s1985 + $0x90] sm:$0xff]
        %v2011 = vld [vmem:[%s1985 + $0x98] sm:$0xf]
        %v2012 = vld [vmem:[%s1985 + $0x9c] sm:$0xff]
        %v2013 = vld [vmem:[%s1985 + $0xa4] sm:$0xf]
        %v2014 = vld [vmem:[%s1985 + $0xa8] sm:$0xff]
        %v2015 = vld [vmem:[%s1985 + $0xb0] sm:$0xf]
        %v2016 = vld [vmem:[%s1985 + $0xb4] sm:$0xff]
        %v2017 = vld [vmem:[%s1985 + $0xbc] sm:$0xf]
        %v2018 = vpack.c.bf16 %v1984, %v1984
        %s2019 = scalar_lea.vmem %s2, 3
        %v2020 = vld [vmem:[%s2019] sm:$0x7]
        %v2022 = vlaneseq
        %v2023 = vshrl.u32 %v2022, 7
        %v2024 = vsub.s32 0, %v2023
        %v2025 = vrot.slane %v2020, %v2024
        %v2026 = vlaneseq
        %v2027 = vshrl.u32 %v2026, 7
        %v2028 = vsub.s32 1, %v2027
        %v2029 = vrot.slane %v2020, %v2028
        %v2030 = vlaneseq
        %v2031 = vshrl.u32 %v2030, 7
        %v2032 = vsub.s32 2, %v2031
        %v2033 = vrot.slane %v2020, %v2032
        %v2069 = vunpack.c.l.b16 %v1986
        %v2070 = vunpack.c.h.b16 %v1986
        %v2071 = vunpack.c.l.b16 %v1987
        %v2072 = vunpack.c.l.b16 %v1988
        %v2073 = vunpack.c.h.b16 %v1988
        %v2074 = vunpack.c.l.b16 %v1989
        %v2075 = vunpack.c.l.b16 %v1990
        %v2076 = vunpack.c.h.b16 %v1990
        %v2077 = vunpack.c.l.b16 %v1991
        %v2078 = vunpack.c.l.b16 %v1992
        %v2079 = vunpack.c.h.b16 %v1992
        %v2080 = vunpack.c.l.b16 %v1993
        %v2081 = vunpack.c.l.b16 %v1994
        %v2082 = vunpack.c.h.b16 %v1994
        %v2083 = vunpack.c.l.b16 %v1995
        %v2084 = vunpack.c.l.b16 %v1996
        %v2085 = vunpack.c.h.b16 %v1996
        %v2086 = vunpack.c.l.b16 %v1997
        %v2087 = vunpack.c.l.b16 %v1998
        %v2088 = vunpack.c.h.b16 %v1998
        %v2089 = vunpack.c.l.b16 %v1999
        %v2090 = vunpack.c.l.b16 %v2000
        %v2091 = vunpack.c.h.b16 %v2000
        %v2092 = vunpack.c.l.b16 %v2001
        %v2093 = vunpack.c.l.b16 %v2002
        %v2094 = vunpack.c.h.b16 %v2002
        %v2095 = vunpack.c.l.b16 %v2003
        %v2096 = vunpack.c.l.b16 %v2004
        %v2097 = vunpack.c.h.b16 %v2004
        %v2098 = vunpack.c.l.b16 %v2005
        %v2099 = vunpack.c.l.b16 %v2006
        %v2100 = vunpack.c.h.b16 %v2006
        %v2101 = vunpack.c.l.b16 %v2007
        %v2102 = vunpack.c.l.b16 %v2008
        %v2103 = vunpack.c.h.b16 %v2008
        %v2104 = vunpack.c.l.b16 %v2009
        %v2105 = vunpack.c.l.b16 %v2010
        %v2106 = vunpack.c.h.b16 %v2010
        %v2107 = vunpack.c.l.b16 %v2011
        %v2108 = vunpack.c.l.b16 %v2012
        %v2109 = vunpack.c.h.b16 %v2012
        %v2110 = vunpack.c.l.b16 %v2013
        %v2111 = vunpack.c.l.b16 %v2014
        %v2112 = vunpack.c.h.b16 %v2014
        %v2113 = vunpack.c.l.b16 %v2015
        %v2114 = vunpack.c.l.b16 %v2016
        %v2115 = vunpack.c.h.b16 %v2016
        %v2116 = vunpack.c.l.b16 %v2017
        %v2117 = vpack.c.b16 %v2072, %v2069
        %v2118 = vpack.c.b16 %v2073, %v2070
        %v2119 = vpack.c.b16 %v2074, %v2071
        %v2120 = vpack.c.b16 %v2078, %v2075
        %v2121 = vpack.c.b16 %v2079, %v2076
        %v2122 = vpack.c.b16 %v2080, %v2077
        %v2123 = vpack.c.b16 %v2084, %v2081
        %v2124 = vpack.c.b16 %v2085, %v2082
        %v2125 = vpack.c.b16 %v2086, %v2083
        %v2126 = vpack.c.b16 %v2090, %v2087
        %v2127 = vpack.c.b16 %v2091, %v2088
        %v2128 = vpack.c.b16 %v2092, %v2089
        %v2129 = vpack.c.b16 %v2096, %v2093
        %v2130 = vpack.c.b16 %v2097, %v2094
        %v2131 = vpack.c.b16 %v2098, %v2095
        %v2132 = vpack.c.b16 %v2102, %v2099
        %v2133 = vpack.c.b16 %v2103, %v2100
        %v2134 = vpack.c.b16 %v2104, %v2101
        %v2135 = vpack.c.b16 %v2108, %v2105
        %v2136 = vpack.c.b16 %v2109, %v2106
        %v2137 = vpack.c.b16 %v2110, %v2107
        %v2138 = vpack.c.b16 %v2114, %v2111
        %v2139 = vpack.c.b16 %v2115, %v2112
        %v2140 = vpack.c.b16 %v2116, %v2113
        %2165 = vmatprep.subr.bf16.mxu0 %v2118
        %2166 = vmatpush1.bf16.msra.mxu0 %v2117
        %2167 = vmatprep.subr.bf16.mxu0 %v2121
        %2168 = vmatpush1.bf16.msra.mxu0 %v2120
        %2169 = vmatprep.subr.bf16.mxu0 %v2124
        %2170 = vmatpush1.bf16.msra.mxu0 %v2123
        %2171 = vmatprep.subr.bf16.mxu0 %v2127
        %2172 = vmatpush1.bf16.msra.mxu0 %v2126
        %2173 = vmatprep.subr.bf16.mxu0 %v2130
        %2174 = vmatpush1.bf16.msra.mxu0 %v2129
        %2175 = vmatprep.subr.bf16.mxu0 %v2133
        %2176 = vmatpush1.bf16.msra.mxu0 %v2132
        %2177 = vmatprep.subr.bf16.mxu0 %v2136
        %2178 = vmatpush1.bf16.msra.mxu0 %v2135
        %2179 = vmatprep.subr.bf16.mxu0 %v2139
        %2180 = vmatpush1.bf16.msra.mxu0 %v2138
        %2181 = vmatprep.subr.bf16.mxu0 0
        %2182 = vmatpush1.bf16.msra.mxu0 0
        %2183 = vmatprep.subr.bf16.mxu0 0
        %2184 = vmatpush1.bf16.msra.mxu0 0
        %2185 = vmatprep.subr.bf16.mxu0 0
        %2186 = vmatpush1.bf16.msra.mxu0 0
        %2187 = vmatprep.subr.bf16.mxu0 0
        %2188 = vmatpush1.bf16.msra.mxu0 0
        %2189 = vmatprep.subr.bf16.mxu0 0
        %2190 = vmatpush1.bf16.msra.mxu0 0
        %2191 = vmatprep.subr.bf16.mxu0 0
        %2192 = vmatpush1.bf16.msra.mxu0 0
        %2193 = vmatprep.subr.bf16.mxu0 0
        %2194 = vmatpush1.bf16.msra.mxu0 0
        %2195 = vmatprep.subr.bf16.mxu0 0
        %2196 = vmatpush1.bf16.msra.mxu0 0
        %2197 = vmatprep.mubr.bf16.mxu0 0
        %2198 = vmatmul.mubr.bf16.gmra.mrb[0].mxu0 %v2018
        %v2199 = vpop.f32.mrb[0].mxu0
        %v2200 = vadd.f32 %v2025, %v2199
        %v2201 = vpop.f32.mrb[0].mxu0
        %v2202 = vadd.f32 %v2029, %v2201
        %v2203 = vpop.f32.mrb[0].mxu0
        %v2204 = vpop.f32.mrb[0].mxu0
        %2205 = vdwg.mxu0
        %2206 = vmatprep.subr.bf16.mxu0 0
        %2207 = vmatpush1.bf16.msra.mxu0 %v2119
        %2208 = vmatprep.subr.bf16.mxu0 0
        %2209 = vmatpush1.bf16.msra.mxu0 %v2122
        %2210 = vmatprep.subr.bf16.mxu0 0
        %2211 = vmatpush1.bf16.msra.mxu0 %v2125
        %2212 = vmatprep.subr.bf16.mxu0 0
        %2213 = vmatpush1.bf16.msra.mxu0 %v2128
        %2214 = vmatprep.subr.bf16.mxu0 0
        %2215 = vmatpush1.bf16.msra.mxu0 %v2131
        %2216 = vmatprep.subr.bf16.mxu0 0
        %2217 = vmatpush1.bf16.msra.mxu0 %v2134
        %2218 = vmatprep.subr.bf16.mxu0 0
        %2219 = vmatpush1.bf16.msra.mxu0 %v2137
        %2220 = vmatprep.subr.bf16.mxu0 0
        %2221 = vmatpush1.bf16.msra.mxu0 %v2140
        %2222 = vmatprep.subr.bf16.mxu0 0
        %2223 = vmatpush1.bf16.msra.mxu0 0
        %2224 = vmatprep.subr.bf16.mxu0 0
        %2225 = vmatpush1.bf16.msra.mxu0 0
        %2226 = vmatprep.subr.bf16.mxu0 0
        %2227 = vmatpush1.bf16.msra.mxu0 0
        %2228 = vmatprep.subr.bf16.mxu0 0
        %2229 = vmatpush1.bf16.msra.mxu0 0
        %2230 = vmatprep.subr.bf16.mxu0 0
        %2231 = vmatpush1.bf16.msra.mxu0 0
        %2232 = vmatprep.subr.bf16.mxu0 0
        %2233 = vmatpush1.bf16.msra.mxu0 0
        %2234 = vmatprep.subr.bf16.mxu0 0
        %2235 = vmatpush1.bf16.msra.mxu0 0
        %2236 = vmatprep.subr.bf16.mxu0 0
        %2237 = vmatpush1.bf16.msra.mxu0 0
        %2238 = vmatprep.mubr.bf16.mxu0 0
        %2239 = vmatmul.mubr.bf16.gmra.mrb[0].mxu0 %v2018
        %v2240 = vpop.f32.mrb[0].mxu0
        %v2241 = vadd.f32 %v2033, %v2240
        %v2242 = vpop.f32.mrb[0].mxu0
        %v2243 = vpop.f32.mrb[0].mxu0
        %v2244 = vpop.f32.mrb[0].mxu0
        %2245 = vdwg.mxu0
        %v2246 = vpack.c.bf16 %v2200, %v2200
        %v2247 = vpack.c.bf16 %v2202, %v2202
        %v2249 = vsel %vm986, %v2246, 0
        %v2252 = vsel %vm986, %v2247, 0
        %2254 = vmatprep.subr.bf16.mxu0 0
        %2255 = vmatpush1.bf16.xpose.msra.mxu0 %v2252
        %2256 = vmatprep.subr.bf16.mxu0 0
        %2257 = vmatpush1.bf16.xpose.msra.mxu0 0
        %2258 = vmatprep.subr.bf16.mxu0 0
        %2259 = vmatpush1.bf16.xpose.msra.mxu0 0
        %2260 = vmatprep.subr.bf16.mxu0 0
        %2261 = vmatpush1.bf16.xpose.msra.mxu0 0
        %2262 = vmatprep.subr.bf16.mxu0 0
        %2263 = vmatpush1.bf16.xpose.msra.mxu0 0
        %2264 = vmatprep.subr.bf16.mxu0 0
        %2265 = vmatpush1.bf16.xpose.msra.mxu0 0
        %2266 = vmatprep.subr.bf16.mxu0 0
        %2267 = vmatpush1.bf16.xpose.msra.mxu0 0
        %2268 = vmatprep.subr.bf16.mxu0 0
        %2269 = vmatpush1.bf16.xpose.msra.mxu0 0
        %2270 = vmatprep.subr.bf16.mxu0 0
        %2271 = vmatpush1.bf16.xpose.msra.mxu0 0
        %2272 = vmatprep.subr.bf16.mxu0 0
        %2273 = vmatpush1.bf16.xpose.msra.mxu0 0
        %2274 = vmatprep.subr.bf16.mxu0 0
        %2275 = vmatpush1.bf16.xpose.msra.mxu0 0
        %2276 = vmatprep.subr.bf16.mxu0 0
        %2277 = vmatpush1.bf16.xpose.msra.mxu0 0
        %2278 = vmatprep.subr.bf16.mxu0 0
        %2279 = vmatpush1.bf16.xpose.msra.mxu0 0
        %2280 = vmatprep.subr.bf16.mxu0 0
        %2281 = vmatpush1.bf16.xpose.msra.mxu0 0
        %2282 = vmatprep.subr.bf16.mxu0 0
        %2283 = vmatpush1.bf16.xpose.msra.mxu0 0
        %2284 = vmatprep.subr.bf16.mxu0 0
        %2285 = vmatpush1.bf16.xpose.msra.mxu0 0
        %2286 = vmatprep.mubr.bf16.mxu0 0
        %2287 = vmatmul.mubr.bf16.gmra.mrb[0].mxu0 %v2249
        %v2288 = vpop.f32.mrb[0].mxu0
        %v2289 = vadd.f32 0.0, %v2288
        %v2290 = vpop.f32.mrb[0].mxu0
        %v2291 = vpop.f32.mrb[0].mxu0
        %v2292 = vpop.f32.mrb[0].mxu0
        %2293 = vdwg.mxu0
        %v2294 = vmul.f32 %v2289, 0.17677669
        %v2295 = vadd.f32 %v2294, %v724
        %v2296 = vsel %vm1035, %v2295, -inf
        %2297 = vmax.xlane.f32.xlu0 %v2296
        %v2298 = vpop.xlane.xlu0 %2297
        %v2299 = vsub.f32 %v2295, %v2298
        %v2300 = vmul.f32 %v2299, 1.442695
        %v2301 = vpow.pop %v2300
        %v2302 = vsel %vm1035, %v2301, 0.0
        %2303 = vadd.xlane.f32.xlu0 %v2302
        %v2304 = vpop.xlane.xlu0 %2303
        %v2305 = vrcp.pop %v2304
        %v2306 = vmul.f32 %v2301, %v2305
        %v2307 = vpack.c.bf16 %v2306, %v2306
        %v2308 = vpack.c.bf16 %v2241, %v2241
        %v2310 = vsel %vm1035, %v2307, 0
        %v2313 = vsel %vm1052, %v2308, 0
        %2315 = vmatprep.subr.bf16.mxu0 0
        %2316 = vmatpush1.bf16.msra.mxu0 %v2313
        %2317 = vmatprep.subr.bf16.mxu0 0
        %2318 = vmatpush1.bf16.msra.mxu0 0
        %2319 = vmatprep.subr.bf16.mxu0 0
        %2320 = vmatpush1.bf16.msra.mxu0 0
        %2321 = vmatprep.subr.bf16.mxu0 0
        %2322 = vmatpush1.bf16.msra.mxu0 0
        %2323 = vmatprep.subr.bf16.mxu0 0
        %2324 = vmatpush1.bf16.msra.mxu0 0
        %2325 = vmatprep.subr.bf16.mxu0 0
        %2326 = vmatpush1.bf16.msra.mxu0 0
        %2327 = vmatprep.subr.bf16.mxu0 0
        %2328 = vmatpush1.bf16.msra.mxu0 0
        %2329 = vmatprep.subr.bf16.mxu0 0
        %2330 = vmatpush1.bf16.msra.mxu0 0
        %2331 = vmatprep.subr.bf16.mxu0 0
        %2332 = vmatpush1.bf16.msra.mxu0 0
        %2333 = vmatprep.subr.bf16.mxu0 0
        %2334 = vmatpush1.bf16.msra.mxu0 0
        %2335 = vmatprep.subr.bf16.mxu0 0
        %2336 = vmatpush1.bf16.msra.mxu0 0
        %2337 = vmatprep.subr.bf16.mxu0 0
        %2338 = vmatpush1.bf16.msra.mxu0 0
        %2339 = vmatprep.subr.bf16.mxu0 0
        %2340 = vmatpush1.bf16.msra.mxu0 0
        %2341 = vmatprep.subr.bf16.mxu0 0
        %2342 = vmatpush1.bf16.msra.mxu0 0
        %2343 = vmatprep.subr.bf16.mxu0 0
        %2344 = vmatpush1.bf16.msra.mxu0 0
        %2345 = vmatprep.subr.bf16.mxu0 0
        %2346 = vmatpush1.bf16.msra.mxu0 0
        %2347 = vmatprep.mubr.bf16.mxu0 0
        %2348 = vmatmul.mubr.bf16.gmra.mrb[0].mxu0 %v2310
        %v2349 = vpop.f32.mrb[0].mxu0
        %v2350 = vadd.f32 0.0, %v2349
        %v2351 = vpop.f32.mrb[0].mxu0
        %v2352 = vpop.f32.mrb[0].mxu0
        %v2353 = vpop.f32.mrb[0].mxu0
        %2354 = vdwg.mxu0
        %2356 = vrot.lane.b32.xlu0 %v2246, 96
        %v2357 = vpop.permute.xlu0 %2356
        %2359 = vrot.lane.b32.xlu0 %v2247, 96
        %v2360 = vpop.permute.xlu0 %2359
        %v2362 = vsel %vm986, %v2357, 0
        %v2365 = vsel %vm986, %v2360, 0
        %2367 = vmatprep.subr.bf16.mxu0 0
        %2368 = vmatpush1.bf16.xpose.msra.mxu0 %v2365
        %2369 = vmatprep.subr.bf16.mxu0 0
        %2370 = vmatpush1.bf16.xpose.msra.mxu0 0
        %2371 = vmatprep.subr.bf16.mxu0 0
        %2372 = vmatpush1.bf16.xpose.msra.mxu0 0
        %2373 = vmatprep.subr.bf16.mxu0 0
        %2374 = vmatpush1.bf16.xpose.msra.mxu0 0
        %2375 = vmatprep.subr.bf16.mxu0 0
        %2376 = vmatpush1.bf16.xpose.msra.mxu0 0
        %2377 = vmatprep.subr.bf16.mxu0 0
        %2378 = vmatpush1.bf16.xpose.msra.mxu0 0
        %2379 = vmatprep.subr.bf16.mxu0 0
        %2380 = vmatpush1.bf16.xpose.msra.mxu0 0
        %2381 = vmatprep.subr.bf16.mxu0 0
        %2382 = vmatpush1.bf16.xpose.msra.mxu0 0
        %2383 = vmatprep.subr.bf16.mxu0 0
        %2384 = vmatpush1.bf16.xpose.msra.mxu0 0
        %2385 = vmatprep.subr.bf16.mxu0 0
        %2386 = vmatpush1.bf16.xpose.msra.mxu0 0
        %2387 = vmatprep.subr.bf16.mxu0 0
        %2388 = vmatpush1.bf16.xpose.msra.mxu0 0
        %2389 = vmatprep.subr.bf16.mxu0 0
        %2390 = vmatpush1.bf16.xpose.msra.mxu0 0
        %2391 = vmatprep.subr.bf16.mxu0 0
        %2392 = vmatpush1.bf16.xpose.msra.mxu0 0
        %2393 = vmatprep.subr.bf16.mxu0 0
        %2394 = vmatpush1.bf16.xpose.msra.mxu0 0
        %2395 = vmatprep.subr.bf16.mxu0 0
        %2396 = vmatpush1.bf16.xpose.msra.mxu0 0
        %2397 = vmatprep.subr.bf16.mxu0 0
        %2398 = vmatpush1.bf16.xpose.msra.mxu0 0
        %2399 = vmatprep.mubr.bf16.mxu0 0
        %2400 = vmatmul.mubr.bf16.gmra.mrb[0].mxu0 %v2362
        %v2401 = vpop.f32.mrb[0].mxu0
        %v2402 = vadd.f32 0.0, %v2401
        %v2403 = vpop.f32.mrb[0].mxu0
        %v2404 = vpop.f32.mrb[0].mxu0
        %v2405 = vpop.f32.mrb[0].mxu0
        %2406 = vdwg.mxu0
        %v2407 = vmul.f32 %v2402, 0.17677669
        %v2408 = vadd.f32 %v2407, %v724
        %v2409 = vsel %vm1035, %v2408, -inf
        %2410 = vmax.xlane.f32.xlu0 %v2409
        %v2411 = vpop.xlane.xlu0 %2410
        %v2412 = vsub.f32 %v2408, %v2411
        %v2413 = vmul.f32 %v2412, 1.442695
        %v2414 = vpow.pop %v2413
        %v2415 = vsel %vm1035, %v2414, 0.0
        %2416 = vadd.xlane.f32.xlu0 %v2415
        %v2417 = vpop.xlane.xlu0 %2416
        %v2418 = vrcp.pop %v2417
        %v2419 = vmul.f32 %v2414, %v2418
        %v2420 = vpack.c.bf16 %v2419, %v2419
        %2422 = vrot.lane.b32.xlu0 %v2308, 96
        %v2423 = vpop.permute.xlu0 %2422
        %v2425 = vsel %vm1035, %v2420, 0
        %v2428 = vsel %vm1052, %v2423, 0
        %2430 = vmatprep.subr.bf16.mxu0 0
        %2431 = vmatpush1.bf16.msra.mxu0 %v2428
        %2432 = vmatprep.subr.bf16.mxu0 0
        %2433 = vmatpush1.bf16.msra.mxu0 0
        %2434 = vmatprep.subr.bf16.mxu0 0
        %2435 = vmatpush1.bf16.msra.mxu0 0
        %2436 = vmatprep.subr.bf16.mxu0 0
        %2437 = vmatpush1.bf16.msra.mxu0 0
        %2438 = vmatprep.subr.bf16.mxu0 0
        %2439 = vmatpush1.bf16.msra.mxu0 0
        %2440 = vmatprep.subr.bf16.mxu0 0
        %2441 = vmatpush1.bf16.msra.mxu0 0
        %2442 = vmatprep.subr.bf16.mxu0 0
        %2443 = vmatpush1.bf16.msra.mxu0 0
        %2444 = vmatprep.subr.bf16.mxu0 0
        %2445 = vmatpush1.bf16.msra.mxu0 0
        %2446 = vmatprep.subr.bf16.mxu0 0
        %2447 = vmatpush1.bf16.msra.mxu0 0
        %2448 = vmatprep.subr.bf16.mxu0 0
        %2449 = vmatpush1.bf16.msra.mxu0 0
        %2450 = vmatprep.subr.bf16.mxu0 0
        %2451 = vmatpush1.bf16.msra.mxu0 0
        %2452 = vmatprep.subr.bf16.mxu0 0
        %2453 = vmatpush1.bf16.msra.mxu0 0
        %2454 = vmatprep.subr.bf16.mxu0 0
        %2455 = vmatpush1.bf16.msra.mxu0 0
        %2456 = vmatprep.subr.bf16.mxu0 0
        %2457 = vmatpush1.bf16.msra.mxu0 0
        %2458 = vmatprep.subr.bf16.mxu0 0
        %2459 = vmatpush1.bf16.msra.mxu0 0
        %2460 = vmatprep.subr.bf16.mxu0 0
        %2461 = vmatpush1.bf16.msra.mxu0 0
        %2462 = vmatprep.mubr.bf16.mxu0 0
        %2463 = vmatmul.mubr.bf16.gmra.mrb[0].mxu0 %v2425
        %v2464 = vpop.f32.mrb[0].mxu0
        %v2465 = vadd.f32 0.0, %v2464
        %v2466 = vpop.f32.mrb[0].mxu0
        %v2467 = vpop.f32.mrb[0].mxu0
        %v2468 = vpop.f32.mrb[0].mxu0
        %2469 = vdwg.mxu0
        %2470 = vrot.lane.b32.xlu0 %v2246, 64
        %v2471 = vpop.permute.xlu0 %2470
        %2472 = vrot.lane.b32.xlu0 %v2247, 64
        %v2473 = vpop.permute.xlu0 %2472
        %v2475 = vsel %vm986, %v2471, 0
        %v2478 = vsel %vm986, %v2473, 0
        %2480 = vmatprep.subr.bf16.mxu0 0
        %2481 = vmatpush1.bf16.xpose.msra.mxu0 %v2478
        %2482 = vmatprep.subr.bf16.mxu0 0
        %2483 = vmatpush1.bf16.xpose.msra.mxu0 0
        %2484 = vmatprep.subr.bf16.mxu0 0
        %2485 = vmatpush1.bf16.xpose.msra.mxu0 0
        %2486 = vmatprep.subr.bf16.mxu0 0
        %2487 = vmatpush1.bf16.xpose.msra.mxu0 0
        %2488 = vmatprep.subr.bf16.mxu0 0
        %2489 = vmatpush1.bf16.xpose.msra.mxu0 0
        %2490 = vmatprep.subr.bf16.mxu0 0
        %2491 = vmatpush1.bf16.xpose.msra.mxu0 0
        %2492 = vmatprep.subr.bf16.mxu0 0
        %2493 = vmatpush1.bf16.xpose.msra.mxu0 0
        %2494 = vmatprep.subr.bf16.mxu0 0
        %2495 = vmatpush1.bf16.xpose.msra.mxu0 0
        %2496 = vmatprep.subr.bf16.mxu0 0
        %2497 = vmatpush1.bf16.xpose.msra.mxu0 0
        %2498 = vmatprep.subr.bf16.mxu0 0
        %2499 = vmatpush1.bf16.xpose.msra.mxu0 0
        %2500 = vmatprep.subr.bf16.mxu0 0
        %2501 = vmatpush1.bf16.xpose.msra.mxu0 0
        %2502 = vmatprep.subr.bf16.mxu0 0
        %2503 = vmatpush1.bf16.xpose.msra.mxu0 0
        %2504 = vmatprep.subr.bf16.mxu0 0
        %2505 = vmatpush1.bf16.xpose.msra.mxu0 0
        %2506 = vmatprep.subr.bf16.mxu0 0
        %2507 = vmatpush1.bf16.xpose.msra.mxu0 0
        %2508 = vmatprep.subr.bf16.mxu0 0
        %2509 = vmatpush1.bf16.xpose.msra.mxu0 0
        %2510 = vmatprep.subr.bf16.mxu0 0
        %2511 = vmatpush1.bf16.xpose.msra.mxu0 0
        %2512 = vmatprep.mubr.bf16.mxu0 0
        %2513 = vmatmul.mubr.bf16.gmra.mrb[0].mxu0 %v2475
        %v2514 = vpop.f32.mrb[0].mxu0
        %v2515 = vadd.f32 0.0, %v2514
        %v2516 = vpop.f32.mrb[0].mxu0
        %v2517 = vpop.f32.mrb[0].mxu0
        %v2518 = vpop.f32.mrb[0].mxu0
        %2519 = vdwg.mxu0
        %v2520 = vmul.f32 %v2515, 0.17677669
        %v2521 = vadd.f32 %v2520, %v724
        %v2522 = vsel %vm1035, %v2521, -inf
        %2523 = vmax.xlane.f32.xlu0 %v2522
        %v2524 = vpop.xlane.xlu0 %2523
        %v2525 = vsub.f32 %v2521, %v2524
        %v2526 = vmul.f32 %v2525, 1.442695
        %v2527 = vpow.pop %v2526
        %v2528 = vsel %vm1035, %v2527, 0.0
        %2529 = vadd.xlane.f32.xlu0 %v2528
        %v2530 = vpop.xlane.xlu0 %2529
        %v2531 = vrcp.pop %v2530
        %v2532 = vmul.f32 %v2527, %v2531
        %v2533 = vpack.c.bf16 %v2532, %v2532
        %2534 = vrot.lane.b32.xlu0 %v2308, 64
        %v2535 = vpop.permute.xlu0 %2534
        %v2537 = vsel %vm1035, %v2533, 0
        %v2540 = vsel %vm1052, %v2535, 0
        %2542 = vmatprep.subr.bf16.mxu0 0
        %2543 = vmatpush1.bf16.msra.mxu0 %v2540
        %2544 = vmatprep.subr.bf16.mxu0 0
        %2545 = vmatpush1.bf16.msra.mxu0 0
        %2546 = vmatprep.subr.bf16.mxu0 0
        %2547 = vmatpush1.bf16.msra.mxu0 0
        %2548 = vmatprep.subr.bf16.mxu0 0
        %2549 = vmatpush1.bf16.msra.mxu0 0
        %2550 = vmatprep.subr.bf16.mxu0 0
        %2551 = vmatpush1.bf16.msra.mxu0 0
        %2552 = vmatprep.subr.bf16.mxu0 0
        %2553 = vmatpush1.bf16.msra.mxu0 0
        %2554 = vmatprep.subr.bf16.mxu0 0
        %2555 = vmatpush1.bf16.msra.mxu0 0
        %2556 = vmatprep.subr.bf16.mxu0 0
        %2557 = vmatpush1.bf16.msra.mxu0 0
        %2558 = vmatprep.subr.bf16.mxu0 0
        %2559 = vmatpush1.bf16.msra.mxu0 0
        %2560 = vmatprep.subr.bf16.mxu0 0
        %2561 = vmatpush1.bf16.msra.mxu0 0
        %2562 = vmatprep.subr.bf16.mxu0 0
        %2563 = vmatpush1.bf16.msra.mxu0 0
        %2564 = vmatprep.subr.bf16.mxu0 0
        %2565 = vmatpush1.bf16.msra.mxu0 0
        %2566 = vmatprep.subr.bf16.mxu0 0
        %2567 = vmatpush1.bf16.msra.mxu0 0
        %2568 = vmatprep.subr.bf16.mxu0 0
        %2569 = vmatpush1.bf16.msra.mxu0 0
        %2570 = vmatprep.subr.bf16.mxu0 0
        %2571 = vmatpush1.bf16.msra.mxu0 0
        %2572 = vmatprep.subr.bf16.mxu0 0
        %2573 = vmatpush1.bf16.msra.mxu0 0
        %2574 = vmatprep.mubr.bf16.mxu0 0
        %2575 = vmatmul.mubr.bf16.gmra.mrb[0].mxu0 %v2537
        %v2576 = vpop.f32.mrb[0].mxu0
        %v2577 = vadd.f32 0.0, %v2576
        %v2578 = vpop.f32.mrb[0].mxu0
        %v2579 = vpop.f32.mrb[0].mxu0
        %v2580 = vpop.f32.mrb[0].mxu0
        %2581 = vdwg.mxu0
        %2582 = vrot.lane.b32.xlu0 %v2246, 32
        %v2583 = vpop.permute.xlu0 %2582
        %2584 = vrot.lane.b32.xlu0 %v2247, 32
        %v2585 = vpop.permute.xlu0 %2584
        %v2587 = vsel %vm986, %v2583, 0
        %v2590 = vsel %vm986, %v2585, 0
        %2592 = vmatprep.subr.bf16.mxu0 0
        %2593 = vmatpush1.bf16.xpose.msra.mxu0 %v2590
        %2594 = vmatprep.subr.bf16.mxu0 0
        %2595 = vmatpush1.bf16.xpose.msra.mxu0 0
        %2596 = vmatprep.subr.bf16.mxu0 0
        %2597 = vmatpush1.bf16.xpose.msra.mxu0 0
        %2598 = vmatprep.subr.bf16.mxu0 0
        %2599 = vmatpush1.bf16.xpose.msra.mxu0 0
        %2600 = vmatprep.subr.bf16.mxu0 0
        %2601 = vmatpush1.bf16.xpose.msra.mxu0 0
        %2602 = vmatprep.subr.bf16.mxu0 0
        %2603 = vmatpush1.bf16.xpose.msra.mxu0 0
        %2604 = vmatprep.subr.bf16.mxu0 0
        %2605 = vmatpush1.bf16.xpose.msra.mxu0 0
        %2606 = vmatprep.subr.bf16.mxu0 0
        %2607 = vmatpush1.bf16.xpose.msra.mxu0 0
        %2608 = vmatprep.subr.bf16.mxu0 0
        %2609 = vmatpush1.bf16.xpose.msra.mxu0 0
        %2610 = vmatprep.subr.bf16.mxu0 0
        %2611 = vmatpush1.bf16.xpose.msra.mxu0 0
        %2612 = vmatprep.subr.bf16.mxu0 0
        %2613 = vmatpush1.bf16.xpose.msra.mxu0 0
        %2614 = vmatprep.subr.bf16.mxu0 0
        %2615 = vmatpush1.bf16.xpose.msra.mxu0 0
        %2616 = vmatprep.subr.bf16.mxu0 0
        %2617 = vmatpush1.bf16.xpose.msra.mxu0 0
        %2618 = vmatprep.subr.bf16.mxu0 0
        %2619 = vmatpush1.bf16.xpose.msra.mxu0 0
        %2620 = vmatprep.subr.bf16.mxu0 0
        %2621 = vmatpush1.bf16.xpose.msra.mxu0 0
        %2622 = vmatprep.subr.bf16.mxu0 0
        %2623 = vmatpush1.bf16.xpose.msra.mxu0 0
        %2624 = vmatprep.mubr.bf16.mxu0 0
        %2625 = vmatmul.mubr.bf16.gmra.mrb[0].mxu0 %v2587
        %v2626 = vpop.f32.mrb[0].mxu0
        %v2627 = vadd.f32 0.0, %v2626
        %v2628 = vpop.f32.mrb[0].mxu0
        %v2629 = vpop.f32.mrb[0].mxu0
        %v2630 = vpop.f32.mrb[0].mxu0
        %2631 = vdwg.mxu0
        %v2632 = vmul.f32 %v2627, 0.17677669
        %v2633 = vadd.f32 %v2632, %v724
        %v2634 = vsel %vm1035, %v2633, -inf
        %2635 = vmax.xlane.f32.xlu0 %v2634
        %v2636 = vpop.xlane.xlu0 %2635
        %v2637 = vsub.f32 %v2633, %v2636
        %v2638 = vmul.f32 %v2637, 1.442695
        %v2639 = vpow.pop %v2638
        %v2640 = vsel %vm1035, %v2639, 0.0
        %2641 = vadd.xlane.f32.xlu0 %v2640
        %v2642 = vpop.xlane.xlu0 %2641
        %v2643 = vrcp.pop %v2642
        %v2644 = vmul.f32 %v2639, %v2643
        %v2645 = vpack.c.bf16 %v2644, %v2644
        %2646 = vrot.lane.b32.xlu0 %v2308, 32
        %v2647 = vpop.permute.xlu0 %2646
        %v2649 = vsel %vm1035, %v2645, 0
        %v2652 = vsel %vm1052, %v2647, 0
        %2654 = vmatprep.subr.bf16.mxu0 0
        %2655 = vmatpush1.bf16.msra.mxu0 %v2652
        %2656 = vmatprep.subr.bf16.mxu0 0
        %2657 = vmatpush1.bf16.msra.mxu0 0
        %2658 = vmatprep.subr.bf16.mxu0 0
        %2659 = vmatpush1.bf16.msra.mxu0 0
        %2660 = vmatprep.subr.bf16.mxu0 0
        %2661 = vmatpush1.bf16.msra.mxu0 0
        %2662 = vmatprep.subr.bf16.mxu0 0
        %2663 = vmatpush1.bf16.msra.mxu0 0
        %2664 = vmatprep.subr.bf16.mxu0 0
        %2665 = vmatpush1.bf16.msra.mxu0 0
        %2666 = vmatprep.subr.bf16.mxu0 0
        %2667 = vmatpush1.bf16.msra.mxu0 0
        %2668 = vmatprep.subr.bf16.mxu0 0
        %2669 = vmatpush1.bf16.msra.mxu0 0
        %2670 = vmatprep.subr.bf16.mxu0 0
        %2671 = vmatpush1.bf16.msra.mxu0 0
        %2672 = vmatprep.subr.bf16.mxu0 0
        %2673 = vmatpush1.bf16.msra.mxu0 0
        %2674 = vmatprep.subr.bf16.mxu0 0
        %2675 = vmatpush1.bf16.msra.mxu0 0
        %2676 = vmatprep.subr.bf16.mxu0 0
        %2677 = vmatpush1.bf16.msra.mxu0 0
        %2678 = vmatprep.subr.bf16.mxu0 0
        %2679 = vmatpush1.bf16.msra.mxu0 0
        %2680 = vmatprep.subr.bf16.mxu0 0
        %2681 = vmatpush1.bf16.msra.mxu0 0
        %2682 = vmatprep.subr.bf16.mxu0 0
        %2683 = vmatpush1.bf16.msra.mxu0 0
        %2684 = vmatprep.subr.bf16.mxu0 0
        %2685 = vmatpush1.bf16.msra.mxu0 0
        %2686 = vmatprep.mubr.bf16.mxu0 0
        %2687 = vmatmul.mubr.bf16.gmra.mrb[0].mxu0 %v2649
        %v2688 = vpop.f32.mrb[0].mxu0
        %v2689 = vadd.f32 0.0, %v2688
        %v2690 = vpop.f32.mrb[0].mxu0
        %v2691 = vpop.f32.mrb[0].mxu0
        %v2692 = vpop.f32.mrb[0].mxu0
        %2693 = vdwg.mxu0
        %2695 = vrot.lane.b32.xlu0 %v2465, 32
        %v2696 = vpop.permute.xlu0 %2695
        %2699 = vrot.lane.b32.xlu0 %v2577, 64
        %v2700 = vpop.permute.xlu0 %2699
        %2703 = vrot.lane.b32.xlu0 %v2689, 96
        %v2704 = vpop.permute.xlu0 %2703
        %v2706 = vsel %vm986, %v2350, %v2696
        %v2707 = vsel %vm1448, %v2706, %v2700
        %v2708 = vsel %vm1450, %v2707, %v2704
        %s2709 = scalar_lea.vmem [#allocation5], 64
        %v2710 = vld [vmem:[%s2709] sm:$0xf]
        %v2711 = vld [vmem:[%s2709 + $0x4] sm:$0xf]
        %v2712 = vld [vmem:[%s2709 + $0x8] sm:$0xf]
        %v2713 = vld [vmem:[%s2709 + $0xc] sm:$0xf]
        %v2714 = vld [vmem:[%s2709 + $0x10] sm:$0xf]
        %v2715 = vld [vmem:[%s2709 + $0x14] sm:$0xf]
        %v2716 = vld [vmem:[%s2709 + $0x18] sm:$0xf]
        %v2717 = vld [vmem:[%s2709 + $0x1c] sm:$0xf]
        %v2718 = vld [vmem:[%s2709 + $0x20] sm:$0xf]
        %v2719 = vld [vmem:[%s2709 + $0x24] sm:$0xf]
        %v2720 = vld [vmem:[%s2709 + $0x28] sm:$0xf]
        %v2721 = vld [vmem:[%s2709 + $0x2c] sm:$0xf]
        %v2722 = vld [vmem:[%s2709 + $0x30] sm:$0xf]
        %v2723 = vld [vmem:[%s2709 + $0x34] sm:$0xf]
        %v2724 = vld [vmem:[%s2709 + $0x38] sm:$0xf]
        %v2725 = vld [vmem:[%s2709 + $0x3c] sm:$0xf]
        %v2726 = vpack.c.bf16 %v2708, %v2708
        %s2727 = scalar_lea.vmem %s4, 1
        %v2728 = vld [vmem:[%s2727] sm:$0x1]
        %v2730 = vlaneseq
        %v2731 = vshrl.u32 %v2730, 7
        %v2732 = vsub.s32 0, %v2731
        %v2733 = vrot.slane %v2728, %v2732
        %v2751 = vunpack.c.l.b16 %v2710
        %v2752 = vunpack.c.l.b16 %v2711
        %v2753 = vunpack.c.l.b16 %v2712
        %v2754 = vunpack.c.l.b16 %v2713
        %v2755 = vunpack.c.l.b16 %v2714
        %v2756 = vunpack.c.l.b16 %v2715
        %v2757 = vunpack.c.l.b16 %v2716
        %v2758 = vunpack.c.l.b16 %v2717
        %v2759 = vunpack.c.l.b16 %v2718
        %v2760 = vunpack.c.l.b16 %v2719
        %v2761 = vunpack.c.l.b16 %v2720
        %v2762 = vunpack.c.l.b16 %v2721
        %v2763 = vunpack.c.l.b16 %v2722
        %v2764 = vunpack.c.l.b16 %v2723
        %v2765 = vunpack.c.l.b16 %v2724
        %v2766 = vunpack.c.l.b16 %v2725
        %v2767 = vpack.c.b16 %v2752, %v2751
        %v2768 = vpack.c.b16 %v2754, %v2753
        %v2769 = vpack.c.b16 %v2756, %v2755
        %v2770 = vpack.c.b16 %v2758, %v2757
        %v2771 = vpack.c.b16 %v2760, %v2759
        %v2772 = vpack.c.b16 %v2762, %v2761
        %v2773 = vpack.c.b16 %v2764, %v2763
        %v2774 = vpack.c.b16 %v2766, %v2765
        %2783 = vmatprep.subr.bf16.mxu0 0
        %2784 = vmatpush1.bf16.msra.mxu0 %v2767
        %2785 = vmatprep.subr.bf16.mxu0 0
        %2786 = vmatpush1.bf16.msra.mxu0 %v2768
        %2787 = vmatprep.subr.bf16.mxu0 0
        %2788 = vmatpush1.bf16.msra.mxu0 %v2769
        %2789 = vmatprep.subr.bf16.mxu0 0
        %2790 = vmatpush1.bf16.msra.mxu0 %v2770
        %2791 = vmatprep.subr.bf16.mxu0 0
        %2792 = vmatpush1.bf16.msra.mxu0 %v2771
        %2793 = vmatprep.subr.bf16.mxu0 0
        %2794 = vmatpush1.bf16.msra.mxu0 %v2772
        %2795 = vmatprep.subr.bf16.mxu0 0
        %2796 = vmatpush1.bf16.msra.mxu0 %v2773
        %2797 = vmatprep.subr.bf16.mxu0 0
        %2798 = vmatpush1.bf16.msra.mxu0 %v2774
        %2799 = vmatprep.subr.bf16.mxu0 0
        %2800 = vmatpush1.bf16.msra.mxu0 0
        %2801 = vmatprep.subr.bf16.mxu0 0
        %2802 = vmatpush1.bf16.msra.mxu0 0
        %2803 = vmatprep.subr.bf16.mxu0 0
        %2804 = vmatpush1.bf16.msra.mxu0 0
        %2805 = vmatprep.subr.bf16.mxu0 0
        %2806 = vmatpush1.bf16.msra.mxu0 0
        %2807 = vmatprep.subr.bf16.mxu0 0
        %2808 = vmatpush1.bf16.msra.mxu0 0
        %2809 = vmatprep.subr.bf16.mxu0 0
        %2810 = vmatpush1.bf16.msra.mxu0 0
        %2811 = vmatprep.subr.bf16.mxu0 0
        %2812 = vmatpush1.bf16.msra.mxu0 0
        %2813 = vmatprep.subr.bf16.mxu0 0
        %2814 = vmatpush1.bf16.msra.mxu0 0
        %2815 = vmatprep.mubr.bf16.mxu0 0
        %2816 = vmatmul.mubr.bf16.gmra.mrb[0].mxu0 %v2726
        %v2817 = vpop.f32.mrb[0].mxu0
        %v2818 = vadd.f32 %v2733, %v2817
        %v2819 = vpop.f32.mrb[0].mxu0
        %v2820 = vpop.f32.mrb[0].mxu0
        %v2821 = vpop.f32.mrb[0].mxu0
        %2822 = vdwg.mxu0
        %v2823 = vadd.f32 %v1984, %v2818
        %s2824 = scalar_lea.vmem %s6, 1
        %v2825 = vld [vmem:[%s2824] sm:$0x1]
        %s2826 = scalar_lea.vmem [#allocation7], 1
        %v2827 = vld [vmem:[%s2826] sm:$0x1]
        %2828 = vadd.xlane.f32.xlu0 %v2823
        %v2829 = vpop.xlane.xlu0 %2828
        %v2830 = vmul.f32 %v2829, %v1569
        %v2831 = vsub.f32 %v2823, %v2830
        %v2832 = vmul.f32 %v2831, %v2831
        %2833 = vadd.xlane.f32.xlu0 %v2832
        %v2834 = vpop.xlane.xlu0 %2833
        %v2835 = vmul.f32 %v2834, %v1569
        %v2836 = vadd.f32 %v2835, 1e-05
        %v2837 = vrsqrt.pop %v2836
        %v2838 = vmul.f32 %v2831, %v2837
        %v2840 = vlaneseq
        %v2841 = vshrl.u32 %v2840, 7
        %v2842 = vsub.s32 0, %v2841
        %v2843 = vrot.slane %v2825, %v2842
        %v2845 = vmul.f32 %v2838, %v2843
        %v2847 = vlaneseq
        %v2848 = vshrl.u32 %v2847, 7
        %v2849 = vsub.s32 0, %v2848
        %v2850 = vrot.slane %v2827, %v2849
        %v2852 = vadd.f32 %v2845, %v2850
        %s2853 = scalar_lea.vmem %s5, 1
        %v2854 = vld [vmem:[%s2853] sm:$0x1]
        %v2856 = vlaneseq
        %v2857 = vshrl.u32 %v2856, 7
        %v2858 = vsub.s32 0, %v2857
        %v2859 = vrot.slane %v2854, %v2858
        %v2861 = vadd.f32 %v2852, %v2859
        %s2862 = scalar_lea.vmem [#allocation8], 1
        %v2863 = vld [vmem:[%s2862] sm:$0x1]
        %s2864 = scalar_lea.vmem [#allocation10], 1
        %v2865 = vld [vmem:[%s2864] sm:$0x1]
        %2866 = vadd.xlane.f32.xlu0 %v2861
        %v2867 = vpop.xlane.xlu0 %2866
        %v2868 = vmul.f32 %v2867, %v1569
        %v2869 = vsub.f32 %v2861, %v2868
        %v2870 = vmul.f32 %v2869, %v2869
        %2871 = vadd.xlane.f32.xlu0 %v2870
        %v2872 = vpop.xlane.xlu0 %2871
        %v2873 = vmul.f32 %v2872, %v1569
        %v2874 = vadd.f32 %v2873, 1e-05
        %v2875 = vrsqrt.pop %v2874
        %v2876 = vmul.f32 %v2869, %v2875
        %v2878 = vlaneseq
        %v2879 = vshrl.u32 %v2878, 7
        %v2880 = vsub.s32 0, %v2879
        %v2881 = vrot.slane %v2863, %v2880
        %v2883 = vmul.f32 %v2876, %v2881
        %v2885 = vlaneseq
        %v2886 = vshrl.u32 %v2885, 7
        %v2887 = vsub.s32 0, %v2886
        %v2888 = vrot.slane %v2865, %v2887
        %v2890 = vadd.f32 %v2883, %v2888
        %s2891 = scalar_lea.vmem %s12, 128
        %v2892 = vld [vmem:[%s2891] sm:$0xff]
        %v2893 = vld [vmem:[%s2891 + $0x8] sm:$0xff]
        %v2894 = vld [vmem:[%s2891 + $0x10] sm:$0xff]
        %v2895 = vld [vmem:[%s2891 + $0x18] sm:$0xff]
        %v2896 = vld [vmem:[%s2891 + $0x20] sm:$0xff]
        %v2897 = vld [vmem:[%s2891 + $0x28] sm:$0xff]
        %v2898 = vld [vmem:[%s2891 + $0x30] sm:$0xff]
        %v2899 = vld [vmem:[%s2891 + $0x38] sm:$0xff]
        %v2900 = vld [vmem:[%s2891 + $0x40] sm:$0xff]
        %v2901 = vld [vmem:[%s2891 + $0x48] sm:$0xff]
        %v2902 = vld [vmem:[%s2891 + $0x50] sm:$0xff]
        %v2903 = vld [vmem:[%s2891 + $0x58] sm:$0xff]
        %v2904 = vld [vmem:[%s2891 + $0x60] sm:$0xff]
        %v2905 = vld [vmem:[%s2891 + $0x68] sm:$0xff]
        %v2906 = vld [vmem:[%s2891 + $0x70] sm:$0xff]
        %v2907 = vld [vmem:[%s2891 + $0x78] sm:$0xff]
        %v2908 = vpack.c.bf16 %v2890, %v2890
        %s2909 = scalar_lea.vmem %s13, 2
        %v2910 = vld [vmem:[%s2909] sm:$0x3]
        %v2912 = vlaneseq
        %v2913 = vshrl.u32 %v2912, 7
        %v2914 = vsub.s32 0, %v2913
        %v2915 = vrot.slane %v2910, %v2914
        %v2916 = vlaneseq
        %v2917 = vshrl.u32 %v2916, 7
        %v2918 = vsub.s32 1, %v2917
        %v2919 = vrot.slane %v2910, %v2918
        %v2938 = vunpack.c.l.b16 %v2892
        %v2939 = vunpack.c.h.b16 %v2892
        %v2940 = vunpack.c.l.b16 %v2893
        %v2941 = vunpack.c.h.b16 %v2893
        %v2942 = vunpack.c.l.b16 %v2894
        %v2943 = vunpack.c.h.b16 %v2894
        %v2944 = vunpack.c.l.b16 %v2895
        %v2945 = vunpack.c.h.b16 %v2895
        %v2946 = vunpack.c.l.b16 %v2896
        %v2947 = vunpack.c.h.b16 %v2896
        %v2948 = vunpack.c.l.b16 %v2897
        %v2949 = vunpack.c.h.b16 %v2897
        %v2950 = vunpack.c.l.b16 %v2898
        %v2951 = vunpack.c.h.b16 %v2898
        %v2952 = vunpack.c.l.b16 %v2899
        %v2953 = vunpack.c.h.b16 %v2899
        %v2954 = vunpack.c.l.b16 %v2900
        %v2955 = vunpack.c.h.b16 %v2900
        %v2956 = vunpack.c.l.b16 %v2901
        %v2957 = vunpack.c.h.b16 %v2901
        %v2958 = vunpack.c.l.b16 %v2902
        %v2959 = vunpack.c.h.b16 %v2902
        %v2960 = vunpack.c.l.b16 %v2903
        %v2961 = vunpack.c.h.b16 %v2903
        %v2962 = vunpack.c.l.b16 %v2904
        %v2963 = vunpack.c.h.b16 %v2904
        %v2964 = vunpack.c.l.b16 %v2905
        %v2965 = vunpack.c.h.b16 %v2905
        %v2966 = vunpack.c.l.b16 %v2906
        %v2967 = vunpack.c.h.b16 %v2906
        %v2968 = vunpack.c.l.b16 %v2907
        %v2969 = vunpack.c.h.b16 %v2907
        %v2970 = vpack.c.b16 %v2940, %v2938
        %v2971 = vpack.c.b16 %v2941, %v2939
        %v2972 = vpack.c.b16 %v2944, %v2942
        %v2973 = vpack.c.b16 %v2945, %v2943
        %v2974 = vpack.c.b16 %v2948, %v2946
        %v2975 = vpack.c.b16 %v2949, %v2947
        %v2976 = vpack.c.b16 %v2952, %v2950
        %v2977 = vpack.c.b16 %v2953, %v2951
        %v2978 = vpack.c.b16 %v2956, %v2954
        %v2979 = vpack.c.b16 %v2957, %v2955
        %v2980 = vpack.c.b16 %v2960, %v2958
        %v2981 = vpack.c.b16 %v2961, %v2959
        %v2982 = vpack.c.b16 %v2964, %v2962
        %v2983 = vpack.c.b16 %v2965, %v2963
        %v2984 = vpack.c.b16 %v2968, %v2966
        %v2985 = vpack.c.b16 %v2969, %v2967
        %3002 = vmatprep.subr.bf16.mxu0 %v2971
        %3003 = vmatpush1.bf16.msra.mxu0 %v2970
        %3004 = vmatprep.subr.bf16.mxu0 %v2973
        %3005 = vmatpush1.bf16.msra.mxu0 %v2972
        %3006 = vmatprep.subr.bf16.mxu0 %v2975
        %3007 = vmatpush1.bf16.msra.mxu0 %v2974
        %3008 = vmatprep.subr.bf16.mxu0 %v2977
        %3009 = vmatpush1.bf16.msra.mxu0 %v2976
        %3010 = vmatprep.subr.bf16.mxu0 %v2979
        %3011 = vmatpush1.bf16.msra.mxu0 %v2978
        %3012 = vmatprep.subr.bf16.mxu0 %v2981
        %3013 = vmatpush1.bf16.msra.mxu0 %v2980
        %3014 = vmatprep.subr.bf16.mxu0 %v2983
        %3015 = vmatpush1.bf16.msra.mxu0 %v2982
        %3016 = vmatprep.subr.bf16.mxu0 %v2985
        %3017 = vmatpush1.bf16.msra.mxu0 %v2984
        %3018 = vmatprep.subr.bf16.mxu0 0
        %3019 = vmatpush1.bf16.msra.mxu0 0
        %3020 = vmatprep.subr.bf16.mxu0 0
        %3021 = vmatpush1.bf16.msra.mxu0 0
        %3022 = vmatprep.subr.bf16.mxu0 0
        %3023 = vmatpush1.bf16.msra.mxu0 0
        %3024 = vmatprep.subr.bf16.mxu0 0
        %3025 = vmatpush1.bf16.msra.mxu0 0
        %3026 = vmatprep.subr.bf16.mxu0 0
        %3027 = vmatpush1.bf16.msra.mxu0 0
        %3028 = vmatprep.subr.bf16.mxu0 0
        %3029 = vmatpush1.bf16.msra.mxu0 0
        %3030 = vmatprep.subr.bf16.mxu0 0
        %3031 = vmatpush1.bf16.msra.mxu0 0
        %3032 = vmatprep.subr.bf16.mxu0 0
        %3033 = vmatpush1.bf16.msra.mxu0 0
        %3034 = vmatprep.mubr.bf16.mxu0 0
        %3035 = vmatmul.mubr.bf16.gmra.mrb[0].mxu0 %v2908
        %v3036 = vpop.f32.mrb[0].mxu0
        %v3037 = vadd.f32 %v2915, %v3036
        %v3038 = vpop.f32.mrb[0].mxu0
        %v3039 = vadd.f32 %v2919, %v3038
        %v3040 = vpop.f32.mrb[0].mxu0
        %v3041 = vpop.f32.mrb[0].mxu0
        %3042 = vdwg.mxu0
        %v3043 = vmax.f32 %v3037, 0.0
        %v3044 = vmax.f32 %v3039, 0.0
        %s3045 = scalar_lea.vmem [#allocation14], 128
        %v3046 = vld [vmem:[%s3045] sm:$0xf]
        %v3047 = vld [vmem:[%s3045 + $0x4] sm:$0xf]
        %v3048 = vld [vmem:[%s3045 + $0x8] sm:$0xf]
        %v3049 = vld [vmem:[%s3045 + $0xc] sm:$0xf]
        %v3050 = vld [vmem:[%s3045 + $0x10] sm:$0xf]
        %v3051 = vld [vmem:[%s3045 + $0x14] sm:$0xf]
        %v3052 = vld [vmem:[%s3045 + $0x18] sm:$0xf]
        %v3053 = vld [vmem:[%s3045 + $0x1c] sm:$0xf]
        %v3054 = vld [vmem:[%s3045 + $0x20] sm:$0xf]
        %v3055 = vld [vmem:[%s3045 + $0x24] sm:$0xf]
        %v3056 = vld [vmem:[%s3045 + $0x28] sm:$0xf]
        %v3057 = vld [vmem:[%s3045 + $0x2c] sm:$0xf]
        %v3058 = vld [vmem:[%s3045 + $0x30] sm:$0xf]
        %v3059 = vld [vmem:[%s3045 + $0x34] sm:$0xf]
        %v3060 = vld [vmem:[%s3045 + $0x38] sm:$0xf]
        %v3061 = vld [vmem:[%s3045 + $0x3c] sm:$0xf]
        %v3062 = vld [vmem:[%s3045 + $0x40] sm:$0xf]
        %v3063 = vld [vmem:[%s3045 + $0x44] sm:$0xf]
        %v3064 = vld [vmem:[%s3045 + $0x48] sm:$0xf]
        %v3065 = vld [vmem:[%s3045 + $0x4c] sm:$0xf]
        %v3066 = vld [vmem:[%s3045 + $0x50] sm:$0xf]
        %v3067 = vld [vmem:[%s3045 + $0x54] sm:$0xf]
        %v3068 = vld [vmem:[%s3045 + $0x58] sm:$0xf]
        %v3069 = vld [vmem:[%s3045 + $0x5c] sm:$0xf]
        %v3070 = vld [vmem:[%s3045 + $0x60] sm:$0xf]
        %v3071 = vld [vmem:[%s3045 + $0x64] sm:$0xf]
        %v3072 = vld [vmem:[%s3045 + $0x68] sm:$0xf]
        %v3073 = vld [vmem:[%s3045 + $0x6c] sm:$0xf]
        %v3074 = vld [vmem:[%s3045 + $0x70] sm:$0xf]
        %v3075 = vld [vmem:[%s3045 + $0x74] sm:$0xf]
        %v3076 = vld [vmem:[%s3045 + $0x78] sm:$0xf]
        %v3077 = vld [vmem:[%s3045 + $0x7c] sm:$0xf]
        %v3078 = vpack.c.bf16 %v3043, %v3043
        %v3079 = vpack.c.bf16 %v3044, %v3044
        %s3080 = scalar_lea.vmem [#allocation16], 1
        %v3081 = vld [vmem:[%s3080] sm:$0x1]
        %v3083 = vlaneseq
        %v3084 = vshrl.u32 %v3083, 7
        %v3085 = vsub.s32 0, %v3084
        %v3086 = vrot.slane %v3081, %v3085
        %v3120 = vunpack.c.l.b16 %v3046
        %v3121 = vunpack.c.l.b16 %v3047
        %v3122 = vunpack.c.l.b16 %v3048
        %v3123 = vunpack.c.l.b16 %v3049
        %v3124 = vunpack.c.l.b16 %v3050
        %v3125 = vunpack.c.l.b16 %v3051
        %v3126 = vunpack.c.l.b16 %v3052
        %v3127 = vunpack.c.l.b16 %v3053
        %v3128 = vunpack.c.l.b16 %v3054
        %v3129 = vunpack.c.l.b16 %v3055
        %v3130 = vunpack.c.l.b16 %v3056
        %v3131 = vunpack.c.l.b16 %v3057
        %v3132 = vunpack.c.l.b16 %v3058
        %v3133 = vunpack.c.l.b16 %v3059
        %v3134 = vunpack.c.l.b16 %v3060
        %v3135 = vunpack.c.l.b16 %v3061
        %v3136 = vunpack.c.l.b16 %v3062
        %v3137 = vunpack.c.l.b16 %v3063
        %v3138 = vunpack.c.l.b16 %v3064
        %v3139 = vunpack.c.l.b16 %v3065
        %v3140 = vunpack.c.l.b16 %v3066
        %v3141 = vunpack.c.l.b16 %v3067
        %v3142 = vunpack.c.l.b16 %v3068
        %v3143 = vunpack.c.l.b16 %v3069
        %v3144 = vunpack.c.l.b16 %v3070
        %v3145 = vunpack.c.l.b16 %v3071
        %v3146 = vunpack.c.l.b16 %v3072
        %v3147 = vunpack.c.l.b16 %v3073
        %v3148 = vunpack.c.l.b16 %v3074
        %v3149 = vunpack.c.l.b16 %v3075
        %v3150 = vunpack.c.l.b16 %v3076
        %v3151 = vunpack.c.l.b16 %v3077
        %v3152 = vpack.c.b16 %v3121, %v3120
        %v3153 = vpack.c.b16 %v3123, %v3122
        %v3154 = vpack.c.b16 %v3125, %v3124
        %v3155 = vpack.c.b16 %v3127, %v3126
        %v3156 = vpack.c.b16 %v3129, %v3128
        %v3157 = vpack.c.b16 %v3131, %v3130
        %v3158 = vpack.c.b16 %v3133, %v3132
        %v3159 = vpack.c.b16 %v3135, %v3134
        %v3160 = vpack.c.b16 %v3137, %v3136
        %v3161 = vpack.c.b16 %v3139, %v3138
        %v3162 = vpack.c.b16 %v3141, %v3140
        %v3163 = vpack.c.b16 %v3143, %v3142
        %v3164 = vpack.c.b16 %v3145, %v3144
        %v3165 = vpack.c.b16 %v3147, %v3146
        %v3166 = vpack.c.b16 %v3149, %v3148
        %v3167 = vpack.c.b16 %v3151, %v3150
        %3184 = vmatprep.subr.bf16.mxu0 0
        %3185 = vmatpush1.bf16.msra.mxu0 %v3152
        %3186 = vmatprep.subr.bf16.mxu0 0
        %3187 = vmatpush1.bf16.msra.mxu0 %v3153
        %3188 = vmatprep.subr.bf16.mxu0 0
        %3189 = vmatpush1.bf16.msra.mxu0 %v3154
        %3190 = vmatprep.subr.bf16.mxu0 0
        %3191 = vmatpush1.bf16.msra.mxu0 %v3155
        %3192 = vmatprep.subr.bf16.mxu0 0
        %3193 = vmatpush1.bf16.msra.mxu0 %v3156
        %3194 = vmatprep.subr.bf16.mxu0 0
        %3195 = vmatpush1.bf16.msra.mxu0 %v3157
        %3196 = vmatprep.subr.bf16.mxu0 0
        %3197 = vmatpush1.bf16.msra.mxu0 %v3158
        %3198 = vmatprep.subr.bf16.mxu0 0
        %3199 = vmatpush1.bf16.msra.mxu0 %v3159
        %3200 = vmatprep.subr.bf16.mxu0 0
        %3201 = vmatpush1.bf16.msra.mxu0 %v3160
        %3202 = vmatprep.subr.bf16.mxu0 0
        %3203 = vmatpush1.bf16.msra.mxu0 %v3161
        %3204 = vmatprep.subr.bf16.mxu0 0
        %3205 = vmatpush1.bf16.msra.mxu0 %v3162
        %3206 = vmatprep.subr.bf16.mxu0 0
        %3207 = vmatpush1.bf16.msra.mxu0 %v3163
        %3208 = vmatprep.subr.bf16.mxu0 0
        %3209 = vmatpush1.bf16.msra.mxu0 %v3164
        %3210 = vmatprep.subr.bf16.mxu0 0
        %3211 = vmatpush1.bf16.msra.mxu0 %v3165
        %3212 = vmatprep.subr.bf16.mxu0 0
        %3213 = vmatpush1.bf16.msra.mxu0 %v3166
        %3214 = vmatprep.subr.bf16.mxu0 0
        %3215 = vmatpush1.bf16.msra.mxu0 %v3167
        %3216 = vmatprep.mubr.bf16.mxu0 %v3079
        %3217 = vmatmul.mubr.bf16.gmra.mrb[0].mxu0 %v3078
        %v3218 = vpop.f32.mrb[0].mxu0
        %v3219 = vadd.f32 %v3086, %v3218
        %v3220 = vpop.f32.mrb[0].mxu0
        %v3221 = vpop.f32.mrb[0].mxu0
        %v3222 = vpop.f32.mrb[0].mxu0
        %3223 = vdwg.mxu0
        %v3224 = vadd.f32 %v2890, %v3219
        %s3225 = scalar_lea.vmem [#allocation11], 1
        %v3226 = vld [vmem:[%s3225] sm:$0x1]
        %s3227 = scalar_lea.vmem [#allocation13], 1
        %v3228 = vld [vmem:[%s3227] sm:$0x1]
        %3229 = vadd.xlane.f32.xlu0 %v3224
        %v3230 = vpop.xlane.xlu0 %3229
        %v3231 = vmul.f32 %v3230, %v1569
        %v3232 = vsub.f32 %v3224, %v3231
        %v3233 = vmul.f32 %v3232, %v3232
        %3234 = vadd.xlane.f32.xlu0 %v3233
        %v3235 = vpop.xlane.xlu0 %3234
        %v3236 = vmul.f32 %v3235, %v1569
        %v3237 = vadd.f32 %v3236, 1e-05
        %v3238 = vrsqrt.pop %v3237
        %v3239 = vmul.f32 %v3232, %v3238
        %v3241 = vlaneseq
        %v3242 = vshrl.u32 %v3241, 7
        %v3243 = vsub.s32 0, %v3242
        %v3244 = vrot.slane %v3226, %v3243
        %v3246 = vmul.f32 %v3239, %v3244
        %v3248 = vlaneseq
        %v3249 = vshrl.u32 %v3248, 7
        %v3250 = vsub.s32 0, %v3249
        %v3251 = vrot.slane %v3228, %v3250
        %v3253 = vadd.f32 %v3246, %v3251
        %v3254 = vld [vmem:[#allocation17] sm:$0xff]
        %v3255 = vld [vmem:[#allocation17 + $0x8] sm:$0xff]
        %v3256 = vld [vmem:[#allocation17 + $0x10] sm:$0xff]
        %v3257 = vld [vmem:[#allocation17 + $0x18] sm:$0xff]
        %v3258 = vld [vmem:[#allocation17 + $0x20] sm:$0xff]
        %v3259 = vld [vmem:[#allocation17 + $0x28] sm:$0xff]
        %v3260 = vld [vmem:[#allocation17 + $0x30] sm:$0xff]
        %v3261 = vld [vmem:[#allocation17 + $0x38] sm:$0xff]
        %v3262 = vld [vmem:[#allocation17 + $0x40] sm:$0xff]
        %v3263 = vld [vmem:[#allocation17 + $0x48] sm:$0xff]
        %v3264 = vld [vmem:[#allocation17 + $0x50] sm:$0xff]
        %v3265 = vld [vmem:[#allocation17 + $0x58] sm:$0xff]
        %v3266 = vld [vmem:[#allocation17 + $0x60] sm:$0xff]
        %v3267 = vld [vmem:[#allocation17 + $0x68] sm:$0xff]
        %v3268 = vld [vmem:[#allocation17 + $0x70] sm:$0xff]
        %v3269 = vld [vmem:[#allocation17 + $0x78] sm:$0xff]
        %v3270 = vld [vmem:[#allocation17 + $0x80] sm:$0xff]
        %v3271 = vld [vmem:[#allocation17 + $0x88] sm:$0xff]
        %v3272 = vld [vmem:[#allocation17 + $0x90] sm:$0xff]
        %v3273 = vld [vmem:[#allocation17 + $0x98] sm:$0xff]
        %v3274 = vld [vmem:[#allocation17 + $0xa0] sm:$0xff]
        %v3275 = vld [vmem:[#allocation17 + $0xa8] sm:$0xff]
        %v3276 = vld [vmem:[#allocation17 + $0xb0] sm:$0xff]
        %v3277 = vld [vmem:[#allocation17 + $0xb8] sm:$0xff]
        %v3278 = vld [vmem:[#allocation17 + $0xc0] sm:$0xff]
        %v3279 = vld [vmem:[#allocation17 + $0xc8] sm:$0xff]
        %v3280 = vld [vmem:[#allocation17 + $0xd0] sm:$0xff]
        %v3281 = vld [vmem:[#allocation17 + $0xd8] sm:$0xff]
        %v3282 = vld [vmem:[#allocation17 + $0xe0] sm:$0xff]
        %v3283 = vld [vmem:[#allocation17 + $0xe8] sm:$0xff]
        %v3284 = vld [vmem:[#allocation17 + $0xf0] sm:$0xff]
        %v3285 = vld [vmem:[#allocation17 + $0xf8] sm:$0xff]
        %v3286 = vpack.c.bf16 %v3253, %v3253
        %v3287 = vld [vmem:[%s17] sm:$0xf]
        %v3289 = vlaneseq
        %v3290 = vshrl.u32 %v3289, 7
        %v3291 = vsub.s32 0, %v3290
        %v3292 = vrot.slane %v3287, %v3291
        %v3293 = vlaneseq
        %v3294 = vshrl.u32 %v3293, 7
        %v3295 = vsub.s32 1, %v3294
        %v3296 = vrot.slane %v3287, %v3295
        %v3297 = vlaneseq
        %v3298 = vshrl.u32 %v3297, 7
        %v3299 = vsub.s32 2, %v3298
        %v3300 = vrot.slane %v3287, %v3299
        %v3301 = vlaneseq
        %v3302 = vshrl.u32 %v3301, 7
        %v3303 = vsub.s32 3, %v3302
        %v3304 = vrot.slane %v3287, %v3303
        %v3341 = vunpack.c.l.b16 %v3254
        %v3342 = vunpack.c.h.b16 %v3254
        %v3343 = vunpack.c.l.b16 %v3255
        %v3344 = vunpack.c.h.b16 %v3255
        %v3345 = vunpack.c.l.b16 %v3256
        %v3346 = vunpack.c.h.b16 %v3256
        %v3347 = vunpack.c.l.b16 %v3257
        %v3348 = vunpack.c.h.b16 %v3257
        %v3349 = vunpack.c.l.b16 %v3258
        %v3350 = vunpack.c.h.b16 %v3258
        %v3351 = vunpack.c.l.b16 %v3259
        %v3352 = vunpack.c.h.b16 %v3259
        %v3353 = vunpack.c.l.b16 %v3260
        %v3354 = vunpack.c.h.b16 %v3260
        %v3355 = vunpack.c.l.b16 %v3261
        %v3356 = vunpack.c.h.b16 %v3261
        %v3357 = vunpack.c.l.b16 %v3262
        %v3358 = vunpack.c.h.b16 %v3262
        %v3359 = vunpack.c.l.b16 %v3263
        %v3360 = vunpack.c.h.b16 %v3263
        %v3361 = vunpack.c.l.b16 %v3264
        %v3362 = vunpack.c.h.b16 %v3264
        %v3363 = vunpack.c.l.b16 %v3265
        %v3364 = vunpack.c.h.b16 %v3265
        %v3365 = vunpack.c.l.b16 %v3266
        %v3366 = vunpack.c.h.b16 %v3266
        %v3367 = vunpack.c.l.b16 %v3267
        %v3368 = vunpack.c.h.b16 %v3267
        %v3369 = vunpack.c.l.b16 %v3268
        %v3370 = vunpack.c.h.b16 %v3268
        %v3371 = vunpack.c.l.b16 %v3269
        %v3372 = vunpack.c.h.b16 %v3269
        %v3373 = vunpack.c.l.b16 %v3270
        %v3374 = vunpack.c.h.b16 %v3270
        %v3375 = vunpack.c.l.b16 %v3271
        %v3376 = vunpack.c.h.b16 %v3271
        %v3377 = vunpack.c.l.b16 %v3272
        %v3378 = vunpack.c.h.b16 %v3272
        %v3379 = vunpack.c.l.b16 %v3273
        %v3380 = vunpack.c.h.b16 %v3273
        %v3381 = vunpack.c.l.b16 %v3274
        %v3382 = vunpack.c.h.b16 %v3274
        %v3383 = vunpack.c.l.b16 %v3275
        %v3384 = vunpack.c.h.b16 %v3275
        %v3385 = vunpack.c.l.b16 %v3276
        %v3386 = vunpack.c.h.b16 %v3276
        %v3387 = vunpack.c.l.b16 %v3277
        %v3388 = vunpack.c.h.b16 %v3277
        %v3389 = vunpack.c.l.b16 %v3278
        %v3390 = vunpack.c.h.b16 %v3278
        %v3391 = vunpack.c.l.b16 %v3279
        %v3392 = vunpack.c.h.b16 %v3279
        %v3393 = vunpack.c.l.b16 %v3280
        %v3394 = vunpack.c.h.b16 %v3280
        %v3395 = vunpack.c.l.b16 %v3281
        %v3396 = vunpack.c.h.b16 %v3281
        %v3397 = vunpack.c.l.b16 %v3282
        %v3398 = vunpack.c.h.b16 %v3282
        %v3399 = vunpack.c.l.b16 %v3283
        %v3400 = vunpack.c.h.b16 %v3283
        %v3401 = vunpack.c.l.b16 %v3284
        %v3402 = vunpack.c.h.b16 %v3284
        %v3403 = vunpack.c.l.b16 %v3285
        %v3404 = vunpack.c.h.b16 %v3285
        %v3405 = vpack.c.b16 %v3345, %v3341
        %v3406 = vpack.c.b16 %v3346, %v3342
        %v3407 = vpack.c.b16 %v3347, %v3343
        %v3408 = vpack.c.b16 %v3348, %v3344
        %v3409 = vpack.c.b16 %v3353, %v3349
        %v3410 = vpack.c.b16 %v3354, %v3350
        %v3411 = vpack.c.b16 %v3355, %v3351
        %v3412 = vpack.c.b16 %v3356, %v3352
        %v3413 = vpack.c.b16 %v3361, %v3357
        %v3414 = vpack.c.b16 %v3362, %v3358
        %v3415 = vpack.c.b16 %v3363, %v3359
        %v3416 = vpack.c.b16 %v3364, %v3360
        %v3417 = vpack.c.b16 %v3369, %v3365
        %v3418 = vpack.c.b16 %v3370, %v3366
        %v3419 = vpack.c.b16 %v3371, %v3367
        %v3420 = vpack.c.b16 %v3372, %v3368
        %v3421 = vpack.c.b16 %v3377, %v3373
        %v3422 = vpack.c.b16 %v3378, %v3374
        %v3423 = vpack.c.b16 %v3379, %v3375
        %v3424 = vpack.c.b16 %v3380, %v3376
        %v3425 = vpack.c.b16 %v3385, %v3381
        %v3426 = vpack.c.b16 %v3386, %v3382
        %v3427 = vpack.c.b16 %v3387, %v3383
        %v3428 = vpack.c.b16 %v3388, %v3384
        %v3429 = vpack.c.b16 %v3393, %v3389
        %v3430 = vpack.c.b16 %v3394, %v3390
        %v3431 = vpack.c.b16 %v3395, %v3391
        %v3432 = vpack.c.b16 %v3396, %v3392
        %v3433 = vpack.c.b16 %v3401, %v3397
        %v3434 = vpack.c.b16 %v3402, %v3398
        %v3435 = vpack.c.b16 %v3403, %v3399
        %v3436 = vpack.c.b16 %v3404, %v3400
        %3469 = vmatprep.subr.bf16.mxu0 %v3406
        %3470 = vmatpush1.bf16.msra.mxu0 %v3405
        %3471 = vmatprep.subr.bf16.mxu0 %v3410
        %3472 = vmatpush1.bf16.msra.mxu0 %v3409
        %3473 = vmatprep.subr.bf16.mxu0 %v3414
        %3474 = vmatpush1.bf16.msra.mxu0 %v3413
        %3475 = vmatprep.subr.bf16.mxu0 %v3418
        %3476 = vmatpush1.bf16.msra.mxu0 %v3417
        %3477 = vmatprep.subr.bf16.mxu0 %v3422
        %3478 = vmatpush1.bf16.msra.mxu0 %v3421
        %3479 = vmatprep.subr.bf16.mxu0 %v3426
        %3480 = vmatpush1.bf16.msra.mxu0 %v3425
        %3481 = vmatprep.subr.bf16.mxu0 %v3430
        %3482 = vmatpush1.bf16.msra.mxu0 %v3429
        %3483 = vmatprep.subr.bf16.mxu0 %v3434
        %3484 = vmatpush1.bf16.msra.mxu0 %v3433
        %3485 = vmatprep.subr.bf16.mxu0 0
        %3486 = vmatpush1.bf16.msra.mxu0 0
        %3487 = vmatprep.subr.bf16.mxu0 0
        %3488 = vmatpush1.bf16.msra.mxu0 0
        %3489 = vmatprep.subr.bf16.mxu0 0
        %3490 = vmatpush1.bf16.msra.mxu0 0
        %3491 = vmatprep.subr.bf16.mxu0 0
        %3492 = vmatpush1.bf16.msra.mxu0 0
        %3493 = vmatprep.subr.bf16.mxu0 0
        %3494 = vmatpush1.bf16.msra.mxu0 0
        %3495 = vmatprep.subr.bf16.mxu0 0
        %3496 = vmatpush1.bf16.msra.mxu0 0
        %3497 = vmatprep.subr.bf16.mxu0 0
        %3498 = vmatpush1.bf16.msra.mxu0 0
        %3499 = vmatprep.subr.bf16.mxu0 0
        %3500 = vmatpush1.bf16.msra.mxu0 0
        %3501 = vmatprep.mubr.bf16.mxu0 0
        %3502 = vmatmul.mubr.bf16.gmra.mrb[0].mxu0 %v3286
        %v3503 = vpop.f32.mrb[0].mxu0
        %v3504 = vadd.f32 %v3292, %v3503
        %v3505 = vpop.f32.mrb[0].mxu0
        %v3506 = vadd.f32 %v3296, %v3505
        %v3507 = vpop.f32.mrb[0].mxu0
        %v3508 = vpop.f32.mrb[0].mxu0
        %3509 = vdwg.mxu0
        %3510 = vmatprep.subr.bf16.mxu0 %v3408
        %3511 = vmatpush1.bf16.msra.mxu0 %v3407
        %3512 = vmatprep.subr.bf16.mxu0 %v3412
        %3513 = vmatpush1.bf16.msra.mxu0 %v3411
        %3514 = vmatprep.subr.bf16.mxu0 %v3416
        %3515 = vmatpush1.bf16.msra.mxu0 %v3415
        %3516 = vmatprep.subr.bf16.mxu0 %v3420
        %3517 = vmatpush1.bf16.msra.mxu0 %v3419
        %3518 = vmatprep.subr.bf16.mxu0 %v3424
        %3519 = vmatpush1.bf16.msra.mxu0 %v3423
        %3520 = vmatprep.subr.bf16.mxu0 %v3428
        %3521 = vmatpush1.bf16.msra.mxu0 %v3427
        %3522 = vmatprep.subr.bf16.mxu0 %v3432
        %3523 = vmatpush1.bf16.msra.mxu0 %v3431
        %3524 = vmatprep.subr.bf16.mxu0 %v3436
        %3525 = vmatpush1.bf16.msra.mxu0 %v3435
        %3526 = vmatprep.subr.bf16.mxu0 0
        %3527 = vmatpush1.bf16.msra.mxu0 0
        %3528 = vmatprep.subr.bf16.mxu0 0
        %3529 = vmatpush1.bf16.msra.mxu0 0
        %3530 = vmatprep.subr.bf16.mxu0 0
        %3531 = vmatpush1.bf16.msra.mxu0 0
        %3532 = vmatprep.subr.bf16.mxu0 0
        %3533 = vmatpush1.bf16.msra.mxu0 0
        %3534 = vmatprep.subr.bf16.mxu0 0
        %3535 = vmatpush1.bf16.msra.mxu0 0
        %3536 = vmatprep.subr.bf16.mxu0 0
        %3537 = vmatpush1.bf16.msra.mxu0 0
        %3538 = vmatprep.subr.bf16.mxu0 0
        %3539 = vmatpush1.bf16.msra.mxu0 0
        %3540 = vmatprep.subr.bf16.mxu0 0
        %3541 = vmatpush1.bf16.msra.mxu0 0
        %3542 = vmatprep.mubr.bf16.mxu0 0
        %3543 = vmatmul.mubr.bf16.gmra.mrb[0].mxu0 %v3286
        %v3544 = vpop.f32.mrb[0].mxu0
        %v3545 = vadd.f32 %v3300, %v3544
        %v3546 = vpop.f32.mrb[0].mxu0
        %v3547 = vadd.f32 %v3304, %v3546
        %v3548 = vpop.f32.mrb[0].mxu0
        %v3549 = vpop.f32.mrb[0].mxu0
        %3550 = vdwg.mxu0
        %3551 = vst [vmem:[%s712] sm:$0xff] %v3504
        %3552 = vst [vmem:[%s712 + $0x8] sm:$0xff] %v3506
        %3553 = vst [vmem:[%s712 + $0x10] sm:$0xff] %v3545
        %3554 = vst [vmem:[%s712 + $0x18] sm:$0xff] %v3547
        %s3555 = sand.u32 %s429, 1
        %s3556 = scalar_lea.sflag [#allocation4], %s3555
        %s3557 = sand.u32 %s429, 1
        %s3558 = smul.addr %s3557, 32
        %s3559 = scalar_lea.vmem [#allocation19], %s3558
        // Predicated region
        $region133: #{minigpt_forward.1} parent=91 // pred_check
          %p3560 = pneg %p439
        $region134: #{minigpt_forward.1} parent=91 // pred_check_branch
          %3562 = sbr.rel (%p3560) target = $region136
        $region135: #{minigpt_forward.1} parent=91 // pred_region
          %s3564 = ssub.s32 512, 512
          %3565 = vsyncadd %s3556, %s3564
          %s3566 = smul.addr %s38, 4
          %s3567 = smul.addr %s3566, 128
          %s3568 = scalar_lea.hbm %s18, %s3567
          %s3570 = sshll.u32 %s3559, 4
          %s3571 = int_to_ptr.vmem [resolvable:$true] %s3570
          %3573 = dma.vmem_to_hbm [thread:$0]  %s3571, 512, %s3568, %s3556
        $region136: #{minigpt_forward.1} parent=91 // pred_fallthru
          _
      $region92: #{minigpt_forward.1} parent=5 // pred_fallthru
        _
      %p3574 = scmp.le.s32.totalorder 2, %s33
      // Predicated region
      $region137: #{minigpt_forward.1} parent=5 // pred_check
        %p3575 = pneg %p3574
      $region138: #{minigpt_forward.1} parent=5 // pred_check_branch
        %3577 = sbr.rel (%p3575) target = $region140
      $region139: #{minigpt_forward.1} parent=5 // pred_region
        %s3578 = ssub.s32 %s33, 2
        // Predicated region
        $region141: #{minigpt_forward.1} parent=139 // pred_check
          %p3579 = pneg %p445
        $region142: #{minigpt_forward.1} parent=139 // pred_check_branch
          %3581 = sbr.rel (%p3579) target = $region144
        $region143: #{minigpt_forward.1} parent=139 // pred_region
          %s3582 = sand.u32 %s430, 1
          %s3583 = scalar_lea.sflag [#allocation4], %s3582
          %s3584 = sand.u32 %s430, 1
          %s3585 = smul.addr %s3584, 32
          %s3586 = scalar_lea.vmem [#allocation19], %s3585
          %3587 = dma.done %s3583, 512
        $region144: #{minigpt_forward.1} parent=139 // pred_fallthru
          _
      $region140: #{minigpt_forward.1} parent=5 // pred_fallthru
        _
    $region6: #{minigpt_forward.1} parent=1 // loop_footer
      %s37 = sadd.s32 1, %s33
    $region7: #{minigpt_forward.1} parent=1 // loop_footer_branch
      %32 = sbr.rel target = $region3
    $region8: #{minigpt_forward.1} parent=1 // loop_exit
      _
    %3588 = vsyncpa [#allocation3], 1
    %s3589 = scalar_lea.sflag [#allocation3], 1
    %3590 = vsyncpa %s3589, 1
    %3591 = vsyncpa [#allocation6], 1
    %3592 = vsyncpa [#allocation9], 1
    %3593 = vsyncpa [#allocation12], 1
    %3594 = vsyncpa [#allocation15], 1
    %3595 = vsyncpa [#allocation18], 1
    %3596 = vsyncpa [#allocation4], 1
    %s3597 = scalar_lea.sflag [#allocation4], 1
    %3598 = vsyncpa %s3597, 1

</llo_original>
